<compile_context>
chip_gen: v7x
topology: tpu7x:2x2x1
jax: 0.10.0
libtpu: 0.0.40
codegen_flags: <defaults>
</compile_context>

<pallas_src>
import functools

import jax
import jax.numpy as jnp
from jax.experimental import pallas as pl
from jax.experimental.pallas import tpu as pltpu

# Layer dimensions from the PyTorch module's __init__.
DIMS = [784, 128, 256, 512, 256, 128, 10]
OUT_PAD = 128  # final layer output lanes padded 10 -> 128 for lane-dense stores


def _cdiv(a, b):
    return -(-a // b)


def _mlp_kernel(x_ref,
                w1, b1, w2, b2, w3, b3, w4, b4, w5, b5, w6, b6,
                o_ref):
    """Fused 6-layer MLP forward for one batch tile.

    x_ref : (TB, 784)   f32  VMEM (cast to bf16 in-kernel)
    wK    : (in_K, out_K) bf16 VMEM,  bK : (1, out_K) f32 VMEM
    o_ref : (TB, 128)   bf16 VMEM  (columns 10..127 are zero padding)
    """
    # f32 -> bf16 cast fused into the kernel (VPU pass, no extra HBM traffic).
    h = x_ref[...].astype(jnp.bfloat16)

    def layer(h, w, b):
        # bf16 x bf16 matmul on the MXU with f32 accumulation.
        acc = jnp.dot(h, w[...], preferred_element_type=jnp.float32)
        # bias-add + ReLU + downcast to bf16 in a single VPU pass.
        return jnp.maximum(acc + b[...], 0.0).astype(jnp.bfloat16)

    h = layer(h, w1, b1)   # 784 -> 128
    h = layer(h, w2, b2)   # 128 -> 256
    h = layer(h, w3, b3)   # 256 -> 512
    h = layer(h, w4, b4)   # 512 -> 256
    h = layer(h, w5, b5)   # 256 -> 128
    # Final layer: no activation, f32 accumulate, bf16 lane-dense 128-wide store.
    acc = jnp.dot(h, w6[...], preferred_element_type=jnp.float32) + b6[...]
    o_ref[...] = acc.astype(o_ref.dtype)


def _dual_tensorcore():
    """True iff this chip generation exposes >1 TensorCore per device
    (v7x; also v4/v5p megacore).  v5e/v6e are single-TC."""
    try:
        kind = jax.devices()[0].device_kind.lower()
    except Exception:
        return False
    return any(tag in kind for tag in ("v7", "v4", "v5p"))


def _pick_tile_b(batch, dual_tc, cap=1024):
    """128-aligned batch tile.

    Single-TC chips: one big tile (batch rounded up to 128, capped at `cap`)
    -> no per-grid-step overhead, maximal MXU M fill, minimal batch padding.
    Dual-TC chips: >=2 tiles (>=4 when batch >= 1024), each <= 512 rows, so
    the 'parallel' grid axis load-balances across both TensorCores.
    """
    b128 = _cdiv(max(batch, 1), 128) * 128
    n128 = b128 // 128
    if dual_tc:
        target = 4 if batch >= 1024 else 2
        steps = max(target, _cdiv(b128, 512))
    else:
        steps = _cdiv(b128, cap)
    tile = _cdiv(n128, steps) * 128
    return max(128, min(tile, cap))


@functools.partial(jax.jit, static_argnames=("tile_b",))
def _encoder_net_forward_impl(x, params, tile_b):
    B, d_in = x.shape
    n_tiles = _cdiv(B, tile_b)
    B_pad = n_tiles * tile_b

    # Only wrapper pre-op left: zero-pad the batch tail (skipped when aligned).
    x_in = x if B_pad == B else jnp.pad(x, ((0, B_pad - B), (0, 0)))

    # Weights -> bf16 (in, out); biases -> f32 (1, out). Last layer padded to
    # 128 output lanes with zeros so the kernel writes a lane-dense slab.
    kernel_args = []
    weight_specs = []
    for k in range(6):
        d_in_k, d_out_k = DIMS[k], DIMS[k + 1]
        w = params[2 * k].astype(jnp.bfloat16)
        b = params[2 * k + 1].astype(jnp.float32).reshape(1, d_out_k)
        if k == 5:
            w = jnp.pad(w, ((0, 0), (0, OUT_PAD - d_out_k)))
            b = jnp.pad(b, ((0, 0), (0, OUT_PAD - d_out_k)))
            d_out_k = OUT_PAD
        kernel_args += [w, b]
        # Constant index_map -> Pallas elides re-DMA across grid steps: every
        # weight/bias block is fetched from HBM exactly once per call.
        weight_specs.append(pl.BlockSpec((d_in_k, d_out_k), lambda i: (0, 0)))
        weight_specs.append(pl.BlockSpec((1, d_out_k), lambda i: (0, 0)))

    out = pl.pallas_call(
        _mlp_kernel,
        out_shape=jax.ShapeDtypeStruct((B_pad, OUT_PAD), jnp.bfloat16),
        grid_spec=pltpu.PrefetchScalarGridSpec(
            num_scalar_prefetch=0,
            grid=(n_tiles,),
            in_specs=[pl.BlockSpec((tile_b, DIMS[0]), lambda i: (i, 0))]
                     + weight_specs,
            out_specs=pl.BlockSpec((tile_b, OUT_PAD), lambda i: (i, 0)),
        ),
        compiler_params=pltpu.CompilerParams(
            dimension_semantics=("parallel",),
            vmem_limit_bytes=32 * 1024 * 1024,
        ),
    )(x_in, *kernel_args)

    # Drop batch padding + the 118 padded logit columns; restore f32 logits.
    return out[:B, :DIMS[-1]].astype(jnp.float32)


def encoder_net_forward(x, params, tile_b=None):
    """Run the fused EncoderNet forward.  x: (B, 784) f32 -> (B, 10) f32.

    Note: activations/weights run in bf16 with f32 MXU accumulation, so
    results differ from the f32 PyTorch module by bf16 rounding (~0.4% rel)."""
    B, d_in = x.shape
    assert d_in == DIMS[0]
    if tile_b is None:
        tile_b = _pick_tile_b(B, _dual_tensorcore())
    assert tile_b % 128 == 0, "tile_b must be a multiple of 128"
    return _encoder_net_forward_impl(x, params, tile_b)


def init_params(key):
    """PyTorch-Linear-style init (uniform in +/- 1/sqrt(fan_in)).

    Weights stored as (in_features, out_features) f32, biases as (1, out) f32;
    the wrapper handles bf16 casting / padding."""
    params = []
    for k in range(6):
        d_in, d_out = DIMS[k], DIMS[k + 1]
        key, kw, kb = jax.random.split(key, 3)
        bound = 1.0 / jnp.sqrt(jnp.float32(d_in))
        w = jax.random.uniform(kw, (d_in, d_out), jnp.float32, -bound, bound)
        b = jax.random.uniform(kb, (1, d_out), jnp.float32, -bound, bound)
        params.append(w)
        params.append(b)
    return params


def reference_forward_f32(x, params):
    """Plain-JAX f32 reference (original module semantics)."""
    h = x
    for k in range(6):
        w, b = params[2 * k], params[2 * k + 1]
        h = h @ w + b
        if k < 5:
            h = jnp.maximum(h, 0.0)
    return h


def reference_forward_bf16(x, params):
    """Plain-JAX reference matching the kernel's bf16 / f32-accumulate path."""
    h = x.astype(jnp.bfloat16)
    for k in range(6):
        w = params[2 * k].astype(jnp.bfloat16)
        b = params[2 * k + 1].astype(jnp.float32)
        acc = jnp.dot(h, w, preferred_element_type=jnp.float32) + b
        if k < 5:
            h = jnp.maximum(acc, 0.0).astype(jnp.bfloat16)
        else:
            h = acc.astype(jnp.bfloat16).astype(jnp.float32)  # bf16 store in kernel
    return h


if __name__ == "__main__":
    key = jax.random.PRNGKey(0)
    k_params, k_x = jax.random.split(key)

    params = init_params(k_params)

    B = 300  # deliberately NOT 128-aligned -> exercises batch padding
    x = jax.random.normal(k_x, (B, DIMS[0]), jnp.float32)

    out = encoder_net_forward(x, params)  # tile_b auto-picked per chip generation
    out = jax.block_until_ready(out)
    assert out.shape == (B, 10), out.shape

    ref_match = reference_forward_bf16(x, params)   # same numeric path
    ref_f32 = reference_forward_f32(x, params)      # original f32 semantics
    assert jnp.allclose(out, ref_match, atol=2e-2, rtol=2e-2), \
        "mismatch vs bf16-matched reference"
    assert jnp.allclose(out, ref_f32, atol=1e-1, rtol=1e-1), \
        "mismatch vs f32 reference"

    print("KERNEL_OK")
</pallas_src>

<mosaic_0001>
module attributes {stable_mosaic.version = 11 : i64} {
  func.func @_mlp_kernel(%arg0: i32, %arg1: memref<384x784xf32, #tpu.memory_space<vmem>>, %arg2: memref<784x128xbf16, #tpu.memory_space<vmem>>, %arg3: memref<1x128xf32, #tpu.memory_space<vmem>>, %arg4: memref<128x256xbf16, #tpu.memory_space<vmem>>, %arg5: memref<1x256xf32, #tpu.memory_space<vmem>>, %arg6: memref<256x512xbf16, #tpu.memory_space<vmem>>, %arg7: memref<1x512xf32, #tpu.memory_space<vmem>>, %arg8: memref<512x256xbf16, #tpu.memory_space<vmem>>, %arg9: memref<1x256xf32, #tpu.memory_space<vmem>>, %arg10: memref<256x128xbf16, #tpu.memory_space<vmem>>, %arg11: memref<1x128xf32, #tpu.memory_space<vmem>>, %arg12: memref<128x128xbf16, #tpu.memory_space<vmem>>, %arg13: memref<1x128xf32, #tpu.memory_space<vmem>>, %arg14: memref<384x128xbf16, #tpu.memory_space<vmem>>) attributes {dimension_semantics = [#tpu.dimension_semantics<parallel>], iteration_bounds = array<i64: 1>, scalar_prefetch = 0 : i64, scratch_operands = 0 : i64, tpu.core_type = #tpu.core_type<tc>, window_params = [{transform_indices = @transform_0, window_bounds = array<i64: 384, 784>}, {pipeline_mode = #tpu.pipeline_mode<synchronous>, transform_indices = @transform_1, window_bounds = array<i64: 784, 128>}, {pipeline_mode = #tpu.pipeline_mode<synchronous>, transform_indices = @transform_2, window_bounds = array<i64: 1, 128>}, {pipeline_mode = #tpu.pipeline_mode<synchronous>, transform_indices = @transform_3, window_bounds = array<i64: 128, 256>}, {pipeline_mode = #tpu.pipeline_mode<synchronous>, transform_indices = @transform_4, window_bounds = array<i64: 1, 256>}, {pipeline_mode = #tpu.pipeline_mode<synchronous>, transform_indices = @transform_5, window_bounds = array<i64: 256, 512>}, {pipeline_mode = #tpu.pipeline_mode<synchronous>, transform_indices = @transform_6, window_bounds = array<i64: 1, 512>}, {pipeline_mode = #tpu.pipeline_mode<synchronous>, transform_indices = @transform_7, window_bounds = array<i64: 512, 256>}, {pipeline_mode = #tpu.pipeline_mode<synchronous>, transform_indices = @transform_8, window_bounds = array<i64: 1, 256>}, {pipeline_mode = #tpu.pipeline_mode<synchronous>, transform_indices = @transform_9, window_bounds = array<i64: 256, 128>}, {pipeline_mode = #tpu.pipeline_mode<synchronous>, transform_indices = @transform_10, window_bounds = array<i64: 1, 128>}, {pipeline_mode = #tpu.pipeline_mode<synchronous>, transform_indices = @transform_11, window_bounds = array<i64: 128, 128>}, {pipeline_mode = #tpu.pipeline_mode<synchronous>, transform_indices = @transform_12, window_bounds = array<i64: 1, 128>}, {transform_indices = @transform_13, window_bounds = array<i64: 384, 128>}]} {
    %c0 = arith.constant 0 : index
    %c0_0 = arith.constant 0 : index
    %0 = vector.load %arg1[%c0, %c0_0] : memref<384x784xf32, #tpu.memory_space<vmem>>, vector<384x784xf32>
    %1 = arith.truncf %0 : vector<384x784xf32> to vector<384x784xbf16>
    %c0_1 = arith.constant 0 : index
    %c0_2 = arith.constant 0 : index
    %2 = vector.load %arg2[%c0_1, %c0_2] : memref<784x128xbf16, #tpu.memory_space<vmem>>, vector<784x128xbf16>
    %cst = arith.constant dense<0.000000e+00> : vector<384x128xf32>
    %3 = tpu.matmul %1, %2, %cst {dimension_numbers = #tpu.dot_dimension_numbers<[1], [0], [0], [1], [0, 0, 1, 1], [], []>} : vector<384x784xbf16>, vector<784x128xbf16>, vector<384x128xf32> -> vector<384x128xf32>
    %c0_3 = arith.constant 0 : index
    %c0_4 = arith.constant 0 : index
    %4 = vector.load %arg3[%c0_3, %c0_4] : memref<1x128xf32, #tpu.memory_space<vmem>>, vector<1x128xf32>
    %5 = vector.broadcast %4 : vector<1x128xf32> to vector<384x128xf32>
    %6 = arith.addf %3, %5 : vector<384x128xf32>
    %cst_5 = arith.constant 0.000000e+00 : f32
    %7 = vector.broadcast %cst_5 : f32 to vector<384x128xf32>
    %8 = arith.maximumf %6, %7 : vector<384x128xf32>
    %9 = arith.truncf %8 : vector<384x128xf32> to vector<384x128xbf16>
    %c0_6 = arith.constant 0 : index
    %c0_7 = arith.constant 0 : index
    %10 = vector.load %arg4[%c0_6, %c0_7] : memref<128x256xbf16, #tpu.memory_space<vmem>>, vector<128x256xbf16>
    %cst_8 = arith.constant dense<0.000000e+00> : vector<384x256xf32>
    %11 = tpu.matmul %9, %10, %cst_8 {dimension_numbers = #tpu.dot_dimension_numbers<[1], [0], [0], [1], [0, 0, 1, 1], [], []>} : vector<384x128xbf16>, vector<128x256xbf16>, vector<384x256xf32> -> vector<384x256xf32>
    %c0_9 = arith.constant 0 : index
    %c0_10 = arith.constant 0 : index
    %12 = vector.load %arg5[%c0_9, %c0_10] : memref<1x256xf32, #tpu.memory_space<vmem>>, vector<1x256xf32>
    %13 = vector.broadcast %12 : vector<1x256xf32> to vector<384x256xf32>
    %14 = arith.addf %11, %13 : vector<384x256xf32>
    %cst_11 = arith.constant 0.000000e+00 : f32
    %15 = vector.broadcast %cst_11 : f32 to vector<384x256xf32>
    %16 = arith.maximumf %14, %15 : vector<384x256xf32>
    %17 = arith.truncf %16 : vector<384x256xf32> to vector<384x256xbf16>
    %c0_12 = arith.constant 0 : index
    %c0_13 = arith.constant 0 : index
    %18 = vector.load %arg6[%c0_12, %c0_13] : memref<256x512xbf16, #tpu.memory_space<vmem>>, vector<256x512xbf16>
    %cst_14 = arith.constant dense<0.000000e+00> : vector<384x512xf32>
    %19 = tpu.matmul %17, %18, %cst_14 {dimension_numbers = #tpu.dot_dimension_numbers<[1], [0], [0], [1], [0, 0, 1, 1], [], []>} : vector<384x256xbf16>, vector<256x512xbf16>, vector<384x512xf32> -> vector<384x512xf32>
    %c0_15 = arith.constant 0 : index
    %c0_16 = arith.constant 0 : index
    %20 = vector.load %arg7[%c0_15, %c0_16] : memref<1x512xf32, #tpu.memory_space<vmem>>, vector<1x512xf32>
    %21 = vector.broadcast %20 : vector<1x512xf32> to vector<384x512xf32>
    %22 = arith.addf %19, %21 : vector<384x512xf32>
    %cst_17 = arith.constant 0.000000e+00 : f32
    %23 = vector.broadcast %cst_17 : f32 to vector<384x512xf32>
    %24 = arith.maximumf %22, %23 : vector<384x512xf32>
    %25 = arith.truncf %24 : vector<384x512xf32> to vector<384x512xbf16>
    %c0_18 = arith.constant 0 : index
    %c0_19 = arith.constant 0 : index
    %26 = vector.load %arg8[%c0_18, %c0_19] : memref<512x256xbf16, #tpu.memory_space<vmem>>, vector<512x256xbf16>
    %cst_20 = arith.constant dense<0.000000e+00> : vector<384x256xf32>
    %27 = tpu.matmul %25, %26, %cst_20 {dimension_numbers = #tpu.dot_dimension_numbers<[1], [0], [0], [1], [0, 0, 1, 1], [], []>} : vector<384x512xbf16>, vector<512x256xbf16>, vector<384x256xf32> -> vector<384x256xf32>
    %c0_21 = arith.constant 0 : index
    %c0_22 = arith.constant 0 : index
    %28 = vector.load %arg9[%c0_21, %c0_22] : memref<1x256xf32, #tpu.memory_space<vmem>>, vector<1x256xf32>
    %29 = vector.broadcast %28 : vector<1x256xf32> to vector<384x256xf32>
    %30 = arith.addf %27, %29 : vector<384x256xf32>
    %cst_23 = arith.constant 0.000000e+00 : f32
    %31 = vector.broadcast %cst_23 : f32 to vector<384x256xf32>
    %32 = arith.maximumf %30, %31 : vector<384x256xf32>
    %33 = arith.truncf %32 : vector<384x256xf32> to vector<384x256xbf16>
    %c0_24 = arith.constant 0 : index
    %c0_25 = arith.constant 0 : index
    %34 = vector.load %arg10[%c0_24, %c0_25] : memref<256x128xbf16, #tpu.memory_space<vmem>>, vector<256x128xbf16>
    %cst_26 = arith.constant dense<0.000000e+00> : vector<384x128xf32>
    %35 = tpu.matmul %33, %34, %cst_26 {dimension_numbers = #tpu.dot_dimension_numbers<[1], [0], [0], [1], [0, 0, 1, 1], [], []>} : vector<384x256xbf16>, vector<256x128xbf16>, vector<384x128xf32> -> vector<384x128xf32>
    %c0_27 = arith.constant 0 : index
    %c0_28 = arith.constant 0 : index
    %36 = vector.load %arg11[%c0_27, %c0_28] : memref<1x128xf32, #tpu.memory_space<vmem>>, vector<1x128xf32>
    %37 = vector.broadcast %36 : vector<1x128xf32> to vector<384x128xf32>
    %38 = arith.addf %35, %37 : vector<384x128xf32>
    %cst_29 = arith.constant 0.000000e+00 : f32
    %39 = vector.broadcast %cst_29 : f32 to vector<384x128xf32>
    %40 = arith.maximumf %38, %39 : vector<384x128xf32>
    %41 = arith.truncf %40 : vector<384x128xf32> to vector<384x128xbf16>
    %c0_30 = arith.constant 0 : index
    %c0_31 = arith.constant 0 : index
    %42 = vector.load %arg12[%c0_30, %c0_31] : memref<128x128xbf16, #tpu.memory_space<vmem>>, vector<128x128xbf16>
    %cst_32 = arith.constant dense<0.000000e+00> : vector<384x128xf32>
    %43 = tpu.matmul %41, %42, %cst_32 {dimension_numbers = #tpu.dot_dimension_numbers<[1], [0], [0], [1], [0, 0, 1, 1], [], []>} : vector<384x128xbf16>, vector<128x128xbf16>, vector<384x128xf32> -> vector<384x128xf32>
    %c0_33 = arith.constant 0 : index
    %c0_34 = arith.constant 0 : index
    %44 = vector.load %arg13[%c0_33, %c0_34] : memref<1x128xf32, #tpu.memory_space<vmem>>, vector<1x128xf32>
    %45 = vector.broadcast %44 : vector<1x128xf32> to vector<384x128xf32>
    %46 = arith.addf %43, %45 : vector<384x128xf32>
    %47 = arith.truncf %46 : vector<384x128xf32> to vector<384x128xbf16>
    %c0_35 = arith.constant 0 : index
    %c0_36 = arith.constant 0 : index
    %48 = vector.load %arg14[%c0_35, %c0_36] : memref<384x128xbf16, #tpu.memory_space<vmem>>, vector<384x128xbf16>
    tpu.vector_store %arg14[%c0_35, %c0_36], %47 {strides = array<i32>} : memref<384x128xbf16, #tpu.memory_space<vmem>>, vector<384x128xbf16>,
    return
  }
  func.func @transform_0(%arg0: i32) -> (i32, i32) {
    %c0_i32 = arith.constant 0 : i32
    %c0_i32_0 = arith.constant 0 : i32
    return %arg0, %c0_i32 : i32, i32
  }
  func.func @transform_1(%arg0: i32) -> (i32, i32) {
    %c0_i32 = arith.constant 0 : i32
    %c0_i32_0 = arith.constant 0 : i32
    %c0_i32_1 = arith.constant 0 : i32
    return %c0_i32, %c0_i32_0 : i32, i32
  }
  func.func @transform_2(%arg0: i32) -> (i32, i32) {
    %c0_i32 = arith.constant 0 : i32
    %c0_i32_0 = arith.constant 0 : i32
    %c0_i32_1 = arith.constant 0 : i32
    return %c0_i32, %c0_i32_0 : i32, i32
  }
  func.func @transform_3(%arg0: i32) -> (i32, i32) {
    %c0_i32 = arith.constant 0 : i32
    %c0_i32_0 = arith.constant 0 : i32
    %c0_i32_1 = arith.constant 0 : i32
    return %c0_i32, %c0_i32_0 : i32, i32
  }
  func.func @transform_4(%arg0: i32) -> (i32, i32) {
    %c0_i32 = arith.constant 0 : i32
    %c0_i32_0 = arith.constant 0 : i32
    %c0_i32_1 = arith.constant 0 : i32
    return %c0_i32, %c0_i32_0 : i32, i32
  }
  func.func @transform_5(%arg0: i32) -> (i32, i32) {
    %c0_i32 = arith.constant 0 : i32
    %c0_i32_0 = arith.constant 0 : i32
    %c0_i32_1 = arith.constant 0 : i32
    return %c0_i32, %c0_i32_0 : i32, i32
  }
  func.func @transform_6(%arg0: i32) -> (i32, i32) {
    %c0_i32 = arith.constant 0 : i32
    %c0_i32_0 = arith.constant 0 : i32
    %c0_i32_1 = arith.constant 0 : i32
    return %c0_i32, %c0_i32_0 : i32, i32
  }
  func.func @transform_7(%arg0: i32) -> (i32, i32) {
    %c0_i32 = arith.constant 0 : i32
    %c0_i32_0 = arith.constant 0 : i32
    %c0_i32_1 = arith.constant 0 : i32
    return %c0_i32, %c0_i32_0 : i32, i32
  }
  func.func @transform_8(%arg0: i32) -> (i32, i32) {
    %c0_i32 = arith.constant 0 : i32
    %c0_i32_0 = arith.constant 0 : i32
    %c0_i32_1 = arith.constant 0 : i32
    return %c0_i32, %c0_i32_0 : i32, i32
  }
  func.func @transform_9(%arg0: i32) -> (i32, i32) {
    %c0_i32 = arith.constant 0 : i32
    %c0_i32_0 = arith.constant 0 : i32
    %c0_i32_1 = arith.constant 0 : i32
    return %c0_i32, %c0_i32_0 : i32, i32
  }
  func.func @transform_10(%arg0: i32) -> (i32, i32) {
    %c0_i32 = arith.constant 0 : i32
    %c0_i32_0 = arith.constant 0 : i32
    %c0_i32_1 = arith.constant 0 : i32
    return %c0_i32, %c0_i32_0 : i32, i32
  }
  func.func @transform_11(%arg0: i32) -> (i32, i32) {
    %c0_i32 = arith.constant 0 : i32
    %c0_i32_0 = arith.constant 0 : i32
    %c0_i32_1 = arith.constant 0 : i32
    return %c0_i32, %c0_i32_0 : i32, i32
  }
  func.func @transform_12(%arg0: i32) -> (i32, i32) {
    %c0_i32 = arith.constant 0 : i32
    %c0_i32_0 = arith.constant 0 : i32
    %c0_i32_1 = arith.constant 0 : i32
    return %c0_i32, %c0_i32_0 : i32, i32
  }
  func.func @transform_13(%arg0: i32) -> (i32, i32) {
    %c0_i32 = arith.constant 0 : i32
    %c0_i32_0 = arith.constant 0 : i32
    return %arg0, %c0_i32 : i32, i32
  }
}

</mosaic_0001>

<llo_original>
// kernel: _encoder_net_forward_impl.1
$region0: #{_encoder_net_forward_impl.1}
  #allocation0 [shape = 'u32[]', space=smem, size = 0x4, offset = 0x4, fixed_abs, tag = 'smem constant byte address 0x4 - core index']
  #allocation1 [shape = 'u32[144,128]{1,0:T(1,128)}', space=vmem, size = 0x12000, scoped, tag = 'internal scratch']
  %s0 = inlined_call_operand.vmem [shape: f32[384,784], index: 0, kind: input, shape index: {}]
  %s1 = inlined_call_operand.vmem [shape: bf16[784,128], index: 1, kind: input, shape index: {}]
  %s2 = inlined_call_operand.vmem [shape: f32[1,128], index: 2, kind: input, shape index: {}]
  %s3 = inlined_call_operand.vmem [shape: bf16[128,256], index: 3, kind: input, shape index: {}]
  %s4 = inlined_call_operand.vmem [shape: f32[1,256], index: 4, kind: input, shape index: {}]
  %s5 = inlined_call_operand.vmem [shape: bf16[256,512], index: 5, kind: input, shape index: {}]
  %s6 = inlined_call_operand.vmem [shape: f32[1,512], index: 6, kind: input, shape index: {}]
  %s7 = inlined_call_operand.vmem [shape: bf16[512,256], index: 7, kind: input, shape index: {}]
  %s8 = inlined_call_operand.vmem [shape: f32[1,256], index: 8, kind: input, shape index: {}]
  %s9 = inlined_call_operand.vmem [shape: bf16[256,128], index: 9, kind: input, shape index: {}]
  %s10 = inlined_call_operand.vmem [shape: f32[1,128], index: 10, kind: input, shape index: {}]
  %s11 = inlined_call_operand.vmem [shape: bf16[128,128], index: 11, kind: input, shape index: {}]
  %s12 = inlined_call_operand.vmem [shape: f32[1,128], index: 12, kind: input, shape index: {}]
  %s13 = inlined_call_operand.vmem [shape: bf16[384,128], index: 13, kind: output, shape index: {}]
  %s14 = sld [smem:[#allocation0]]
  $region62: #{_encoder_net_forward_impl.1} parent=0
    _
  %s16 = ssub.s32 1, %s14
  %s17 = scalar_select 0, %s16, %s14
  // Predicated region
  $region2: #{_encoder_net_forward_impl.1} parent=0 // pred_check
    _
  $region3: #{_encoder_net_forward_impl.1} parent=0 // pred_check_branch
    %19 = sbr.rel (0) target = $region5
  $region4: #{_encoder_net_forward_impl.1} parent=0 // pred_region
    _
  $region5: #{_encoder_net_forward_impl.1} parent=0 // pred_fallthru
    _
  // Predicated region
  $region6: #{_encoder_net_forward_impl.1} parent=0 // pred_check
    _
  $region7: #{_encoder_net_forward_impl.1} parent=0 // pred_check_branch
    %21 = sbr.rel (0) target = $region9
  $region8: #{_encoder_net_forward_impl.1} parent=0 // pred_region
    _
  $region9: #{_encoder_net_forward_impl.1} parent=0 // pred_fallthru
    _
  // Predicated region
  $region10: #{_encoder_net_forward_impl.1} parent=0 // pred_check
    _
  $region11: #{_encoder_net_forward_impl.1} parent=0 // pred_check_branch
    %23 = sbr.rel (0) target = $region13
  $region12: #{_encoder_net_forward_impl.1} parent=0 // pred_region
    _
  $region13: #{_encoder_net_forward_impl.1} parent=0 // pred_fallthru
    _
  // Predicated region
  $region14: #{_encoder_net_forward_impl.1} parent=0 // pred_check
    _
  $region15: #{_encoder_net_forward_impl.1} parent=0 // pred_check_branch
    %25 = sbr.rel (0) target = $region17
  $region16: #{_encoder_net_forward_impl.1} parent=0 // pred_region
    _
  $region17: #{_encoder_net_forward_impl.1} parent=0 // pred_fallthru
    _
  // Predicated region
  $region18: #{_encoder_net_forward_impl.1} parent=0 // pred_check
    _
  $region19: #{_encoder_net_forward_impl.1} parent=0 // pred_check_branch
    %27 = sbr.rel (0) target = $region21
  $region20: #{_encoder_net_forward_impl.1} parent=0 // pred_region
    _
  $region21: #{_encoder_net_forward_impl.1} parent=0 // pred_fallthru
    _
  // Predicated region
  $region22: #{_encoder_net_forward_impl.1} parent=0 // pred_check
    _
  $region23: #{_encoder_net_forward_impl.1} parent=0 // pred_check_branch
    %29 = sbr.rel (0) target = $region25
  $region24: #{_encoder_net_forward_impl.1} parent=0 // pred_region
    _
  $region25: #{_encoder_net_forward_impl.1} parent=0 // pred_fallthru
    _
  // Predicated region
  $region26: #{_encoder_net_forward_impl.1} parent=0 // pred_check
    _
  $region27: #{_encoder_net_forward_impl.1} parent=0 // pred_check_branch
    %31 = sbr.rel (0) target = $region29
  $region28: #{_encoder_net_forward_impl.1} parent=0 // pred_region
    _
  $region29: #{_encoder_net_forward_impl.1} parent=0 // pred_fallthru
    _
  // Predicated region
  $region30: #{_encoder_net_forward_impl.1} parent=0 // pred_check
    _
  $region31: #{_encoder_net_forward_impl.1} parent=0 // pred_check_branch
    %33 = sbr.rel (0) target = $region33
  $region32: #{_encoder_net_forward_impl.1} parent=0 // pred_region
    _
  $region33: #{_encoder_net_forward_impl.1} parent=0 // pred_fallthru
    _
  // Predicated region
  $region34: #{_encoder_net_forward_impl.1} parent=0 // pred_check
    _
  $region35: #{_encoder_net_forward_impl.1} parent=0 // pred_check_branch
    %35 = sbr.rel (0) target = $region37
  $region36: #{_encoder_net_forward_impl.1} parent=0 // pred_region
    _
  $region37: #{_encoder_net_forward_impl.1} parent=0 // pred_fallthru
    _
  // Predicated region
  $region38: #{_encoder_net_forward_impl.1} parent=0 // pred_check
    _
  $region39: #{_encoder_net_forward_impl.1} parent=0 // pred_check_branch
    %37 = sbr.rel (0) target = $region41
  $region40: #{_encoder_net_forward_impl.1} parent=0 // pred_region
    _
  $region41: #{_encoder_net_forward_impl.1} parent=0 // pred_fallthru
    _
  // Predicated region
  $region42: #{_encoder_net_forward_impl.1} parent=0 // pred_check
    _
  $region43: #{_encoder_net_forward_impl.1} parent=0 // pred_check_branch
    %39 = sbr.rel (0) target = $region45
  $region44: #{_encoder_net_forward_impl.1} parent=0 // pred_region
    _
  $region45: #{_encoder_net_forward_impl.1} parent=0 // pred_fallthru
    _
  // Predicated region
  $region46: #{_encoder_net_forward_impl.1} parent=0 // pred_check
    _
  $region47: #{_encoder_net_forward_impl.1} parent=0 // pred_check_branch
    %41 = sbr.rel (0) target = $region49
  $region48: #{_encoder_net_forward_impl.1} parent=0 // pred_region
    _
  $region49: #{_encoder_net_forward_impl.1} parent=0 // pred_fallthru
    _
  // Predicated region
  $region50: #{_encoder_net_forward_impl.1} parent=0 // pred_check
    _
  $region51: #{_encoder_net_forward_impl.1} parent=0 // pred_check_branch
    %43 = sbr.rel (0) target = $region53
  $region52: #{_encoder_net_forward_impl.1} parent=0 // pred_region
    _
  $region53: #{_encoder_net_forward_impl.1} parent=0 // pred_fallthru
    _
  %v45 = vld [vmem:[%s0] sm:$0xff]
  %v46 = vld [vmem:[%s0 + $0x8] sm:$0xff]
  %v47 = vld [vmem:[%s0 + $0x10] sm:$0xff]
  %v48 = vld [vmem:[%s0 + $0x18] sm:$0xff]
  %v49 = vld [vmem:[%s0 + $0x20] sm:$0xff]
  %v50 = vld [vmem:[%s0 + $0x28] sm:$0xff]
  %v51 = vld [vmem:[%s0 + $0x30] sm:$0xff]
  %v52 = vld [vmem:[%s0 + $0x38] sm:$0xff]
  %v53 = vld [vmem:[%s0 + $0x40] sm:$0xff]
  %v54 = vld [vmem:[%s0 + $0x48] sm:$0xff]
  %v55 = vld [vmem:[%s0 + $0x50] sm:$0xff]
  %v56 = vld [vmem:[%s0 + $0x58] sm:$0xff]
  %v57 = vld [vmem:[%s0 + $0x60] sm:$0xff]
  %v58 = vld [vmem:[%s0 + $0x68] sm:$0xff]
  %v59 = vld [vmem:[%s0 + $0x70] sm:$0xff]
  %v60 = vld [vmem:[%s0 + $0x78] sm:$0xff]
  %v61 = vld [vmem:[%s0 + $0x80] sm:$0xff]
  %v62 = vld [vmem:[%s0 + $0x88] sm:$0xff]
  %v63 = vld [vmem:[%s0 + $0x90] sm:$0xff]
  %v64 = vld [vmem:[%s0 + $0x98] sm:$0xff]
  %v65 = vld [vmem:[%s0 + $0xa0] sm:$0xff]
  %v66 = vld [vmem:[%s0 + $0xa8] sm:$0xff]
  %v67 = vld [vmem:[%s0 + $0xb0] sm:$0xff]
  %v68 = vld [vmem:[%s0 + $0xb8] sm:$0xff]
  %v69 = vld [vmem:[%s0 + $0xc0] sm:$0xff]
  %v70 = vld [vmem:[%s0 + $0xc8] sm:$0xff]
  %v71 = vld [vmem:[%s0 + $0xd0] sm:$0xff]
  %v72 = vld [vmem:[%s0 + $0xd8] sm:$0xff]
  %v73 = vld [vmem:[%s0 + $0xe0] sm:$0xff]
  %v74 = vld [vmem:[%s0 + $0xe8] sm:$0xff]
  %v75 = vld [vmem:[%s0 + $0xf0] sm:$0xff]
  %v76 = vld [vmem:[%s0 + $0xf8] sm:$0xff]
  %v77 = vld [vmem:[%s0 + $0x100] sm:$0xff]
  %v78 = vld [vmem:[%s0 + $0x108] sm:$0xff]
  %v79 = vld [vmem:[%s0 + $0x110] sm:$0xff]
  %v80 = vld [vmem:[%s0 + $0x118] sm:$0xff]
  %v81 = vld [vmem:[%s0 + $0x120] sm:$0xff]
  %v82 = vld [vmem:[%s0 + $0x128] sm:$0xff]
  %v83 = vld [vmem:[%s0 + $0x130] sm:$0xff]
  %v84 = vld [vmem:[%s0 + $0x138] sm:$0xff]
  %v85 = vld [vmem:[%s0 + $0x140] sm:$0xff]
  %v86 = vld [vmem:[%s0 + $0x148] sm:$0xff]
  %v87 = vld [vmem:[%s0 + $0x150] sm:$0xff]
  %v88 = vld [vmem:[%s0 + $0x158] sm:$0xff]
  %v89 = vld [vmem:[%s0 + $0x160] sm:$0xff]
  %v90 = vld [vmem:[%s0 + $0x168] sm:$0xff]
  %v91 = vld [vmem:[%s0 + $0x170] sm:$0xff]
  %v92 = vld [vmem:[%s0 + $0x178] sm:$0xff]
  %v93 = vld [vmem:[%s0 + $0x180] sm:$0xff]
  %v94 = vld [vmem:[%s0 + $0x188] sm:$0xff]
  %v95 = vld [vmem:[%s0 + $0x190] sm:$0xff]
  %v96 = vld [vmem:[%s0 + $0x198] sm:$0xff]
  %v97 = vld [vmem:[%s0 + $0x1a0] sm:$0xff]
  %v98 = vld [vmem:[%s0 + $0x1a8] sm:$0xff]
  %v99 = vld [vmem:[%s0 + $0x1b0] sm:$0xff]
  %v100 = vld [vmem:[%s0 + $0x1b8] sm:$0xff]
  %v101 = vld [vmem:[%s0 + $0x1c0] sm:$0xff]
  %v102 = vld [vmem:[%s0 + $0x1c8] sm:$0xff]
  %v103 = vld [vmem:[%s0 + $0x1d0] sm:$0xff]
  %v104 = vld [vmem:[%s0 + $0x1d8] sm:$0xff]
  %v105 = vld [vmem:[%s0 + $0x1e0] sm:$0xff]
  %v106 = vld [vmem:[%s0 + $0x1e8] sm:$0xff]
  %v107 = vld [vmem:[%s0 + $0x1f0] sm:$0xff]
  %v108 = vld [vmem:[%s0 + $0x1f8] sm:$0xff]
  %v109 = vld [vmem:[%s0 + $0x200] sm:$0xff]
  %v110 = vld [vmem:[%s0 + $0x208] sm:$0xff]
  %v111 = vld [vmem:[%s0 + $0x210] sm:$0xff]
  %v112 = vld [vmem:[%s0 + $0x218] sm:$0xff]
  %v113 = vld [vmem:[%s0 + $0x220] sm:$0xff]
  %v114 = vld [vmem:[%s0 + $0x228] sm:$0xff]
  %v115 = vld [vmem:[%s0 + $0x230] sm:$0xff]
  %v116 = vld [vmem:[%s0 + $0x238] sm:$0xff]
  %v117 = vld [vmem:[%s0 + $0x240] sm:$0xff]
  %v118 = vld [vmem:[%s0 + $0x248] sm:$0xff]
  %v119 = vld [vmem:[%s0 + $0x250] sm:$0xff]
  %v120 = vld [vmem:[%s0 + $0x258] sm:$0xff]
  %v121 = vld [vmem:[%s0 + $0x260] sm:$0xff]
  %v122 = vld [vmem:[%s0 + $0x268] sm:$0xff]
  %v123 = vld [vmem:[%s0 + $0x270] sm:$0xff]
  %v124 = vld [vmem:[%s0 + $0x278] sm:$0xff]
  %v125 = vld [vmem:[%s0 + $0x280] sm:$0xff]
  %v126 = vld [vmem:[%s0 + $0x288] sm:$0xff]
  %v127 = vld [vmem:[%s0 + $0x290] sm:$0xff]
  %v128 = vld [vmem:[%s0 + $0x298] sm:$0xff]
  %v129 = vld [vmem:[%s0 + $0x2a0] sm:$0xff]
  %v130 = vld [vmem:[%s0 + $0x2a8] sm:$0xff]
  %v131 = vld [vmem:[%s0 + $0x2b0] sm:$0xff]
  %v132 = vld [vmem:[%s0 + $0x2b8] sm:$0xff]
  %v133 = vld [vmem:[%s0 + $0x2c0] sm:$0xff]
  %v134 = vld [vmem:[%s0 + $0x2c8] sm:$0xff]
  %v135 = vld [vmem:[%s0 + $0x2d0] sm:$0xff]
  %v136 = vld [vmem:[%s0 + $0x2d8] sm:$0xff]
  %v137 = vld [vmem:[%s0 + $0x2e0] sm:$0xff]
  %v138 = vld [vmem:[%s0 + $0x2e8] sm:$0xff]
  %v139 = vld [vmem:[%s0 + $0x2f0] sm:$0xff]
  %v140 = vld [vmem:[%s0 + $0x2f8] sm:$0xff]
  %v141 = vld [vmem:[%s0 + $0x300] sm:$0xff]
  %v142 = vld [vmem:[%s0 + $0x308] sm:$0xff]
  %v143 = vld [vmem:[%s0 + $0x310] sm:$0xff]
  %v144 = vld [vmem:[%s0 + $0x318] sm:$0xff]
  %v145 = vld [vmem:[%s0 + $0x320] sm:$0xff]
  %v146 = vld [vmem:[%s0 + $0x328] sm:$0xff]
  %v147 = vld [vmem:[%s0 + $0x330] sm:$0xff]
  %v148 = vld [vmem:[%s0 + $0x338] sm:$0xff]
  %v149 = vld [vmem:[%s0 + $0x340] sm:$0xff]
  %v150 = vld [vmem:[%s0 + $0x348] sm:$0xff]
  %v151 = vld [vmem:[%s0 + $0x350] sm:$0xff]
  %v152 = vld [vmem:[%s0 + $0x358] sm:$0xff]
  %v153 = vld [vmem:[%s0 + $0x360] sm:$0xff]
  %v154 = vld [vmem:[%s0 + $0x368] sm:$0xff]
  %v155 = vld [vmem:[%s0 + $0x370] sm:$0xff]
  %v156 = vld [vmem:[%s0 + $0x378] sm:$0xff]
  %v157 = vld [vmem:[%s0 + $0x380] sm:$0xff]
  %v158 = vld [vmem:[%s0 + $0x388] sm:$0xff]
  %v159 = vld [vmem:[%s0 + $0x390] sm:$0xff]
  %v160 = vld [vmem:[%s0 + $0x398] sm:$0xff]
  %v161 = vld [vmem:[%s0 + $0x3a0] sm:$0xff]
  %v162 = vld [vmem:[%s0 + $0x3a8] sm:$0xff]
  %v163 = vld [vmem:[%s0 + $0x3b0] sm:$0xff]
  %v164 = vld [vmem:[%s0 + $0x3b8] sm:$0xff]
  %v165 = vld [vmem:[%s0 + $0x3c0] sm:$0xff]
  %v166 = vld [vmem:[%s0 + $0x3c8] sm:$0xff]
  %v167 = vld [vmem:[%s0 + $0x3d0] sm:$0xff]
  %v168 = vld [vmem:[%s0 + $0x3d8] sm:$0xff]
  %v169 = vld [vmem:[%s0 + $0x3e0] sm:$0xff]
  %v170 = vld [vmem:[%s0 + $0x3e8] sm:$0xff]
  %v171 = vld [vmem:[%s0 + $0x3f0] sm:$0xff]
  %v172 = vld [vmem:[%s0 + $0x3f8] sm:$0xff]
  %v173 = vld [vmem:[%s0 + $0x400] sm:$0xff]
  %v174 = vld [vmem:[%s0 + $0x408] sm:$0xff]
  %v175 = vld [vmem:[%s0 + $0x410] sm:$0xff]
  %v176 = vld [vmem:[%s0 + $0x418] sm:$0xff]
  %v177 = vld [vmem:[%s0 + $0x420] sm:$0xff]
  %v178 = vld [vmem:[%s0 + $0x428] sm:$0xff]
  %v179 = vld [vmem:[%s0 + $0x430] sm:$0xff]
  %v180 = vld [vmem:[%s0 + $0x438] sm:$0xff]
  %v181 = vld [vmem:[%s0 + $0x440] sm:$0xff]
  %v182 = vld [vmem:[%s0 + $0x448] sm:$0xff]
  %v183 = vld [vmem:[%s0 + $0x450] sm:$0xff]
  %v184 = vld [vmem:[%s0 + $0x458] sm:$0xff]
  %v185 = vld [vmem:[%s0 + $0x460] sm:$0xff]
  %v186 = vld [vmem:[%s0 + $0x468] sm:$0xff]
  %v187 = vld [vmem:[%s0 + $0x470] sm:$0xff]
  %v188 = vld [vmem:[%s0 + $0x478] sm:$0xff]
  %v189 = vld [vmem:[%s0 + $0x480] sm:$0xff]
  %v190 = vld [vmem:[%s0 + $0x488] sm:$0xff]
  %v191 = vld [vmem:[%s0 + $0x490] sm:$0xff]
  %v192 = vld [vmem:[%s0 + $0x498] sm:$0xff]
  %v193 = vld [vmem:[%s0 + $0x4a0] sm:$0xff]
  %v194 = vld [vmem:[%s0 + $0x4a8] sm:$0xff]
  %v195 = vld [vmem:[%s0 + $0x4b0] sm:$0xff]
  %v196 = vld [vmem:[%s0 + $0x4b8] sm:$0xff]
  %v197 = vld [vmem:[%s0 + $0x4c0] sm:$0xff]
  %v198 = vld [vmem:[%s0 + $0x4c8] sm:$0xff]
  %v199 = vld [vmem:[%s0 + $0x4d0] sm:$0xff]
  %v200 = vld [vmem:[%s0 + $0x4d8] sm:$0xff]
  %v201 = vld [vmem:[%s0 + $0x4e0] sm:$0xff]
  %v202 = vld [vmem:[%s0 + $0x4e8] sm:$0xff]
  %v203 = vld [vmem:[%s0 + $0x4f0] sm:$0xff]
  %v204 = vld [vmem:[%s0 + $0x4f8] sm:$0xff]
  %v205 = vld [vmem:[%s0 + $0x500] sm:$0xff]
  %v206 = vld [vmem:[%s0 + $0x508] sm:$0xff]
  %v207 = vld [vmem:[%s0 + $0x510] sm:$0xff]
  %v208 = vld [vmem:[%s0 + $0x518] sm:$0xff]
  %v209 = vld [vmem:[%s0 + $0x520] sm:$0xff]
  %v210 = vld [vmem:[%s0 + $0x528] sm:$0xff]
  %v211 = vld [vmem:[%s0 + $0x530] sm:$0xff]
  %v212 = vld [vmem:[%s0 + $0x538] sm:$0xff]
  %v213 = vld [vmem:[%s0 + $0x540] sm:$0xff]
  %v214 = vld [vmem:[%s0 + $0x548] sm:$0xff]
  %v215 = vld [vmem:[%s0 + $0x550] sm:$0xff]
  %v216 = vld [vmem:[%s0 + $0x558] sm:$0xff]
  %v217 = vld [vmem:[%s0 + $0x560] sm:$0xff]
  %v218 = vld [vmem:[%s0 + $0x568] sm:$0xff]
  %v219 = vld [vmem:[%s0 + $0x570] sm:$0xff]
  %v220 = vld [vmem:[%s0 + $0x578] sm:$0xff]
  %v221 = vld [vmem:[%s0 + $0x580] sm:$0xff]
  %v222 = vld [vmem:[%s0 + $0x588] sm:$0xff]
  %v223 = vld [vmem:[%s0 + $0x590] sm:$0xff]
  %v224 = vld [vmem:[%s0 + $0x598] sm:$0xff]
  %v225 = vld [vmem:[%s0 + $0x5a0] sm:$0xff]
  %v226 = vld [vmem:[%s0 + $0x5a8] sm:$0xff]
  %v227 = vld [vmem:[%s0 + $0x5b0] sm:$0xff]
  %v228 = vld [vmem:[%s0 + $0x5b8] sm:$0xff]
  %v229 = vld [vmem:[%s0 + $0x5c0] sm:$0xff]
  %v230 = vld [vmem:[%s0 + $0x5c8] sm:$0xff]
  %v231 = vld [vmem:[%s0 + $0x5d0] sm:$0xff]
  %v232 = vld [vmem:[%s0 + $0x5d8] sm:$0xff]
  %v233 = vld [vmem:[%s0 + $0x5e0] sm:$0xff]
  %v234 = vld [vmem:[%s0 + $0x5e8] sm:$0xff]
  %v235 = vld [vmem:[%s0 + $0x5f0] sm:$0xff]
  %v236 = vld [vmem:[%s0 + $0x5f8] sm:$0xff]
  %v237 = vld [vmem:[%s0 + $0x600] sm:$0xff]
  %v238 = vld [vmem:[%s0 + $0x608] sm:$0xff]
  %v239 = vld [vmem:[%s0 + $0x610] sm:$0xff]
  %v240 = vld [vmem:[%s0 + $0x618] sm:$0xff]
  %v241 = vld [vmem:[%s0 + $0x620] sm:$0xff]
  %v242 = vld [vmem:[%s0 + $0x628] sm:$0xff]
  %v243 = vld [vmem:[%s0 + $0x630] sm:$0xff]
  %v244 = vld [vmem:[%s0 + $0x638] sm:$0xff]
  %v245 = vld [vmem:[%s0 + $0x640] sm:$0xff]
  %v246 = vld [vmem:[%s0 + $0x648] sm:$0xff]
  %v247 = vld [vmem:[%s0 + $0x650] sm:$0xff]
  %v248 = vld [vmem:[%s0 + $0x658] sm:$0xff]
  %v249 = vld [vmem:[%s0 + $0x660] sm:$0xff]
  %v250 = vld [vmem:[%s0 + $0x668] sm:$0xff]
  %v251 = vld [vmem:[%s0 + $0x670] sm:$0xff]
  %v252 = vld [vmem:[%s0 + $0x678] sm:$0xff]
  %v253 = vld [vmem:[%s0 + $0x680] sm:$0xff]
  %v254 = vld [vmem:[%s0 + $0x688] sm:$0xff]
  %v255 = vld [vmem:[%s0 + $0x690] sm:$0xff]
  %v256 = vld [vmem:[%s0 + $0x698] sm:$0xff]
  %v257 = vld [vmem:[%s0 + $0x6a0] sm:$0xff]
  %v258 = vld [vmem:[%s0 + $0x6a8] sm:$0xff]
  %v259 = vld [vmem:[%s0 + $0x6b0] sm:$0xff]
  %v260 = vld [vmem:[%s0 + $0x6b8] sm:$0xff]
  %v261 = vld [vmem:[%s0 + $0x6c0] sm:$0xff]
  %v262 = vld [vmem:[%s0 + $0x6c8] sm:$0xff]
  %v263 = vld [vmem:[%s0 + $0x6d0] sm:$0xff]
  %v264 = vld [vmem:[%s0 + $0x6d8] sm:$0xff]
  %v265 = vld [vmem:[%s0 + $0x6e0] sm:$0xff]
  %v266 = vld [vmem:[%s0 + $0x6e8] sm:$0xff]
  %v267 = vld [vmem:[%s0 + $0x6f0] sm:$0xff]
  %v268 = vld [vmem:[%s0 + $0x6f8] sm:$0xff]
  %v269 = vld [vmem:[%s0 + $0x700] sm:$0xff]
  %v270 = vld [vmem:[%s0 + $0x708] sm:$0xff]
  %v271 = vld [vmem:[%s0 + $0x710] sm:$0xff]
  %v272 = vld [vmem:[%s0 + $0x718] sm:$0xff]
  %v273 = vld [vmem:[%s0 + $0x720] sm:$0xff]
  %v274 = vld [vmem:[%s0 + $0x728] sm:$0xff]
  %v275 = vld [vmem:[%s0 + $0x730] sm:$0xff]
  %v276 = vld [vmem:[%s0 + $0x738] sm:$0xff]
  %v277 = vld [vmem:[%s0 + $0x740] sm:$0xff]
  %v278 = vld [vmem:[%s0 + $0x748] sm:$0xff]
  %v279 = vld [vmem:[%s0 + $0x750] sm:$0xff]
  %v280 = vld [vmem:[%s0 + $0x758] sm:$0xff]
  %v281 = vld [vmem:[%s0 + $0x760] sm:$0xff]
  %v282 = vld [vmem:[%s0 + $0x768] sm:$0xff]
  %v283 = vld [vmem:[%s0 + $0x770] sm:$0xff]
  %v284 = vld [vmem:[%s0 + $0x778] sm:$0xff]
  %v285 = vld [vmem:[%s0 + $0x780] sm:$0xff]
  %v286 = vld [vmem:[%s0 + $0x788] sm:$0xff]
  %v287 = vld [vmem:[%s0 + $0x790] sm:$0xff]
  %v288 = vld [vmem:[%s0 + $0x798] sm:$0xff]
  %v289 = vld [vmem:[%s0 + $0x7a0] sm:$0xff]
  %v290 = vld [vmem:[%s0 + $0x7a8] sm:$0xff]
  %v291 = vld [vmem:[%s0 + $0x7b0] sm:$0xff]
  %v292 = vld [vmem:[%s0 + $0x7b8] sm:$0xff]
  %v293 = vld [vmem:[%s0 + $0x7c0] sm:$0xff]
  %v294 = vld [vmem:[%s0 + $0x7c8] sm:$0xff]
  %v295 = vld [vmem:[%s0 + $0x7d0] sm:$0xff]
  %v296 = vld [vmem:[%s0 + $0x7d8] sm:$0xff]
  %v297 = vld [vmem:[%s0 + $0x7e0] sm:$0xff]
  %v298 = vld [vmem:[%s0 + $0x7e8] sm:$0xff]
  %v299 = vld [vmem:[%s0 + $0x7f0] sm:$0xff]
  %v300 = vld [vmem:[%s0 + $0x7f8] sm:$0xff]
  %v301 = vld [vmem:[%s0 + $0x800] sm:$0xff]
  %v302 = vld [vmem:[%s0 + $0x808] sm:$0xff]
  %v303 = vld [vmem:[%s0 + $0x810] sm:$0xff]
  %v304 = vld [vmem:[%s0 + $0x818] sm:$0xff]
  %v305 = vld [vmem:[%s0 + $0x820] sm:$0xff]
  %v306 = vld [vmem:[%s0 + $0x828] sm:$0xff]
  %v307 = vld [vmem:[%s0 + $0x830] sm:$0xff]
  %v308 = vld [vmem:[%s0 + $0x838] sm:$0xff]
  %v309 = vld [vmem:[%s0 + $0x840] sm:$0xff]
  %v310 = vld [vmem:[%s0 + $0x848] sm:$0xff]
  %v311 = vld [vmem:[%s0 + $0x850] sm:$0xff]
  %v312 = vld [vmem:[%s0 + $0x858] sm:$0xff]
  %v313 = vld [vmem:[%s0 + $0x860] sm:$0xff]
  %v314 = vld [vmem:[%s0 + $0x868] sm:$0xff]
  %v315 = vld [vmem:[%s0 + $0x870] sm:$0xff]
  %v316 = vld [vmem:[%s0 + $0x878] sm:$0xff]
  %v317 = vld [vmem:[%s0 + $0x880] sm:$0xff]
  %v318 = vld [vmem:[%s0 + $0x888] sm:$0xff]
  %v319 = vld [vmem:[%s0 + $0x890] sm:$0xff]
  %v320 = vld [vmem:[%s0 + $0x898] sm:$0xff]
  %v321 = vld [vmem:[%s0 + $0x8a0] sm:$0xff]
  %v322 = vld [vmem:[%s0 + $0x8a8] sm:$0xff]
  %v323 = vld [vmem:[%s0 + $0x8b0] sm:$0xff]
  %v324 = vld [vmem:[%s0 + $0x8b8] sm:$0xff]
  %v325 = vld [vmem:[%s0 + $0x8c0] sm:$0xff]
  %v326 = vld [vmem:[%s0 + $0x8c8] sm:$0xff]
  %v327 = vld [vmem:[%s0 + $0x8d0] sm:$0xff]
  %v328 = vld [vmem:[%s0 + $0x8d8] sm:$0xff]
  %v329 = vld [vmem:[%s0 + $0x8e0] sm:$0xff]
  %v330 = vld [vmem:[%s0 + $0x8e8] sm:$0xff]
  %v331 = vld [vmem:[%s0 + $0x8f0] sm:$0xff]
  %v332 = vld [vmem:[%s0 + $0x8f8] sm:$0xff]
  %v333 = vld [vmem:[%s0 + $0x900] sm:$0xff]
  %v334 = vld [vmem:[%s0 + $0x908] sm:$0xff]
  %v335 = vld [vmem:[%s0 + $0x910] sm:$0xff]
  %v336 = vld [vmem:[%s0 + $0x918] sm:$0xff]
  %v337 = vld [vmem:[%s0 + $0x920] sm:$0xff]
  %v338 = vld [vmem:[%s0 + $0x928] sm:$0xff]
  %v339 = vld [vmem:[%s0 + $0x930] sm:$0xff]
  %v340 = vld [vmem:[%s0 + $0x938] sm:$0xff]
  %v341 = vld [vmem:[%s0 + $0x940] sm:$0xff]
  %v342 = vld [vmem:[%s0 + $0x948] sm:$0xff]
  %v343 = vld [vmem:[%s0 + $0x950] sm:$0xff]
  %v344 = vld [vmem:[%s0 + $0x958] sm:$0xff]
  %v345 = vld [vmem:[%s0 + $0x960] sm:$0xff]
  %v346 = vld [vmem:[%s0 + $0x968] sm:$0xff]
  %v347 = vld [vmem:[%s0 + $0x970] sm:$0xff]
  %v348 = vld [vmem:[%s0 + $0x978] sm:$0xff]
  %v349 = vld [vmem:[%s0 + $0x980] sm:$0xff]
  %v350 = vld [vmem:[%s0 + $0x988] sm:$0xff]
  %v351 = vld [vmem:[%s0 + $0x990] sm:$0xff]
  %v352 = vld [vmem:[%s0 + $0x998] sm:$0xff]
  %v353 = vld [vmem:[%s0 + $0x9a0] sm:$0xff]
  %v354 = vld [vmem:[%s0 + $0x9a8] sm:$0xff]
  %v355 = vld [vmem:[%s0 + $0x9b0] sm:$0xff]
  %v356 = vld [vmem:[%s0 + $0x9b8] sm:$0xff]
  %v357 = vld [vmem:[%s0 + $0x9c0] sm:$0xff]
  %v358 = vld [vmem:[%s0 + $0x9c8] sm:$0xff]
  %v359 = vld [vmem:[%s0 + $0x9d0] sm:$0xff]
  %v360 = vld [vmem:[%s0 + $0x9d8] sm:$0xff]
  %v361 = vld [vmem:[%s0 + $0x9e0] sm:$0xff]
  %v362 = vld [vmem:[%s0 + $0x9e8] sm:$0xff]
  %v363 = vld [vmem:[%s0 + $0x9f0] sm:$0xff]
  %v364 = vld [vmem:[%s0 + $0x9f8] sm:$0xff]
  %v365 = vld [vmem:[%s0 + $0xa00] sm:$0xff]
  %v366 = vld [vmem:[%s0 + $0xa08] sm:$0xff]
  %v367 = vld [vmem:[%s0 + $0xa10] sm:$0xff]
  %v368 = vld [vmem:[%s0 + $0xa18] sm:$0xff]
  %v369 = vld [vmem:[%s0 + $0xa20] sm:$0xff]
  %v370 = vld [vmem:[%s0 + $0xa28] sm:$0xff]
  %v371 = vld [vmem:[%s0 + $0xa30] sm:$0xff]
  %v372 = vld [vmem:[%s0 + $0xa38] sm:$0xff]
  %v373 = vld [vmem:[%s0 + $0xa40] sm:$0xff]
  %v374 = vld [vmem:[%s0 + $0xa48] sm:$0xff]
  %v375 = vld [vmem:[%s0 + $0xa50] sm:$0xff]
  %v376 = vld [vmem:[%s0 + $0xa58] sm:$0xff]
  %v377 = vld [vmem:[%s0 + $0xa60] sm:$0xff]
  %v378 = vld [vmem:[%s0 + $0xa68] sm:$0xff]
  %v379 = vld [vmem:[%s0 + $0xa70] sm:$0xff]
  %v380 = vld [vmem:[%s0 + $0xa78] sm:$0xff]
  %v381 = vpack.c.bf16 %v52, %v45
  %v382 = vpack.c.bf16 %v53, %v46
  %v383 = vpack.c.bf16 %v54, %v47
  %v384 = vpack.c.bf16 %v55, %v48
  %v385 = vpack.c.bf16 %v56, %v49
  %v386 = vpack.c.bf16 %v57, %v50
  %v387 = vpack.c.bf16 %v58, %v51
  %v388 = vpack.c.bf16 %v66, %v59
  %v389 = vpack.c.bf16 %v67, %v60
  %v390 = vpack.c.bf16 %v68, %v61
  %v391 = vpack.c.bf16 %v69, %v62
  %v392 = vpack.c.bf16 %v70, %v63
  %v393 = vpack.c.bf16 %v71, %v64
  %v394 = vpack.c.bf16 %v72, %v65
  %v395 = vpack.c.bf16 %v80, %v73
  %v396 = vpack.c.bf16 %v81, %v74
  %v397 = vpack.c.bf16 %v82, %v75
  %v398 = vpack.c.bf16 %v83, %v76
  %v399 = vpack.c.bf16 %v84, %v77
  %v400 = vpack.c.bf16 %v85, %v78
  %v401 = vpack.c.bf16 %v86, %v79
  %v402 = vpack.c.bf16 %v94, %v87
  %v403 = vpack.c.bf16 %v95, %v88
  %v404 = vpack.c.bf16 %v96, %v89
  %v405 = vpack.c.bf16 %v97, %v90
  %v406 = vpack.c.bf16 %v98, %v91
  %v407 = vpack.c.bf16 %v99, %v92
  %v408 = vpack.c.bf16 %v100, %v93
  %v409 = vpack.c.bf16 %v108, %v101
  %v410 = vpack.c.bf16 %v109, %v102
  %v411 = vpack.c.bf16 %v110, %v103
  %v412 = vpack.c.bf16 %v111, %v104
  %v413 = vpack.c.bf16 %v112, %v105
  %v414 = vpack.c.bf16 %v113, %v106
  %v415 = vpack.c.bf16 %v114, %v107
  %v416 = vpack.c.bf16 %v122, %v115
  %v417 = vpack.c.bf16 %v123, %v116
  %v418 = vpack.c.bf16 %v124, %v117
  %v419 = vpack.c.bf16 %v125, %v118
  %v420 = vpack.c.bf16 %v126, %v119
  %v421 = vpack.c.bf16 %v127, %v120
  %v422 = vpack.c.bf16 %v128, %v121
  %v423 = vpack.c.bf16 %v136, %v129
  %v424 = vpack.c.bf16 %v137, %v130
  %v425 = vpack.c.bf16 %v138, %v131
  %v426 = vpack.c.bf16 %v139, %v132
  %v427 = vpack.c.bf16 %v140, %v133
  %v428 = vpack.c.bf16 %v141, %v134
  %v429 = vpack.c.bf16 %v142, %v135
  %v430 = vpack.c.bf16 %v150, %v143
  %v431 = vpack.c.bf16 %v151, %v144
  %v432 = vpack.c.bf16 %v152, %v145
  %v433 = vpack.c.bf16 %v153, %v146
  %v434 = vpack.c.bf16 %v154, %v147
  %v435 = vpack.c.bf16 %v155, %v148
  %v436 = vpack.c.bf16 %v156, %v149
  %v437 = vpack.c.bf16 %v164, %v157
  %v438 = vpack.c.bf16 %v165, %v158
  %v439 = vpack.c.bf16 %v166, %v159
  %v440 = vpack.c.bf16 %v167, %v160
  %v441 = vpack.c.bf16 %v168, %v161
  %v442 = vpack.c.bf16 %v169, %v162
  %v443 = vpack.c.bf16 %v170, %v163
  %v444 = vpack.c.bf16 %v178, %v171
  %v445 = vpack.c.bf16 %v179, %v172
  %v446 = vpack.c.bf16 %v180, %v173
  %v447 = vpack.c.bf16 %v181, %v174
  %v448 = vpack.c.bf16 %v182, %v175
  %v449 = vpack.c.bf16 %v183, %v176
  %v450 = vpack.c.bf16 %v184, %v177
  %v451 = vpack.c.bf16 %v192, %v185
  %v452 = vpack.c.bf16 %v193, %v186
  %v453 = vpack.c.bf16 %v194, %v187
  %v454 = vpack.c.bf16 %v195, %v188
  %v455 = vpack.c.bf16 %v196, %v189
  %v456 = vpack.c.bf16 %v197, %v190
  %v457 = vpack.c.bf16 %v198, %v191
  %v458 = vpack.c.bf16 %v206, %v199
  %v459 = vpack.c.bf16 %v207, %v200
  %v460 = vpack.c.bf16 %v208, %v201
  %v461 = vpack.c.bf16 %v209, %v202
  %v462 = vpack.c.bf16 %v210, %v203
  %v463 = vpack.c.bf16 %v211, %v204
  %v464 = vpack.c.bf16 %v212, %v205
  %v465 = vpack.c.bf16 %v220, %v213
  %v466 = vpack.c.bf16 %v221, %v214
  %v467 = vpack.c.bf16 %v222, %v215
  %v468 = vpack.c.bf16 %v223, %v216
  %v469 = vpack.c.bf16 %v224, %v217
  %v470 = vpack.c.bf16 %v225, %v218
  %v471 = vpack.c.bf16 %v226, %v219
  %v472 = vpack.c.bf16 %v234, %v227
  %v473 = vpack.c.bf16 %v235, %v228
  %v474 = vpack.c.bf16 %v236, %v229
  %v475 = vpack.c.bf16 %v237, %v230
  %v476 = vpack.c.bf16 %v238, %v231
  %v477 = vpack.c.bf16 %v239, %v232
  %v478 = vpack.c.bf16 %v240, %v233
  %v479 = vpack.c.bf16 %v248, %v241
  %v480 = vpack.c.bf16 %v249, %v242
  %v481 = vpack.c.bf16 %v250, %v243
  %v482 = vpack.c.bf16 %v251, %v244
  %v483 = vpack.c.bf16 %v252, %v245
  %v484 = vpack.c.bf16 %v253, %v246
  %v485 = vpack.c.bf16 %v254, %v247
  %v486 = vpack.c.bf16 %v262, %v255
  %v487 = vpack.c.bf16 %v263, %v256
  %v488 = vpack.c.bf16 %v264, %v257
  %v489 = vpack.c.bf16 %v265, %v258
  %v490 = vpack.c.bf16 %v266, %v259
  %v491 = vpack.c.bf16 %v267, %v260
  %v492 = vpack.c.bf16 %v268, %v261
  %v493 = vpack.c.bf16 %v276, %v269
  %v494 = vpack.c.bf16 %v277, %v270
  %v495 = vpack.c.bf16 %v278, %v271
  %v496 = vpack.c.bf16 %v279, %v272
  %v497 = vpack.c.bf16 %v280, %v273
  %v498 = vpack.c.bf16 %v281, %v274
  %v499 = vpack.c.bf16 %v282, %v275
  %v500 = vpack.c.bf16 %v290, %v283
  %v501 = vpack.c.bf16 %v291, %v284
  %v502 = vpack.c.bf16 %v292, %v285
  %v503 = vpack.c.bf16 %v293, %v286
  %v504 = vpack.c.bf16 %v294, %v287
  %v505 = vpack.c.bf16 %v295, %v288
  %v506 = vpack.c.bf16 %v296, %v289
  %v507 = vpack.c.bf16 %v304, %v297
  %v508 = vpack.c.bf16 %v305, %v298
  %v509 = vpack.c.bf16 %v306, %v299
  %v510 = vpack.c.bf16 %v307, %v300
  %v511 = vpack.c.bf16 %v308, %v301
  %v512 = vpack.c.bf16 %v309, %v302
  %v513 = vpack.c.bf16 %v310, %v303
  %v514 = vpack.c.bf16 %v318, %v311
  %v515 = vpack.c.bf16 %v319, %v312
  %v516 = vpack.c.bf16 %v320, %v313
  %v517 = vpack.c.bf16 %v321, %v314
  %v518 = vpack.c.bf16 %v322, %v315
  %v519 = vpack.c.bf16 %v323, %v316
  %v520 = vpack.c.bf16 %v324, %v317
  %v521 = vpack.c.bf16 %v332, %v325
  %v522 = vpack.c.bf16 %v333, %v326
  %v523 = vpack.c.bf16 %v334, %v327
  %v524 = vpack.c.bf16 %v335, %v328
  %v525 = vpack.c.bf16 %v336, %v329
  %v526 = vpack.c.bf16 %v337, %v330
  %v527 = vpack.c.bf16 %v338, %v331
  %v528 = vpack.c.bf16 %v346, %v339
  %v529 = vpack.c.bf16 %v347, %v340
  %v530 = vpack.c.bf16 %v348, %v341
  %v531 = vpack.c.bf16 %v349, %v342
  %v532 = vpack.c.bf16 %v350, %v343
  %v533 = vpack.c.bf16 %v351, %v344
  %v534 = vpack.c.bf16 %v352, %v345
  %v535 = vpack.c.bf16 %v360, %v353
  %v536 = vpack.c.bf16 %v361, %v354
  %v537 = vpack.c.bf16 %v362, %v355
  %v538 = vpack.c.bf16 %v363, %v356
  %v539 = vpack.c.bf16 %v364, %v357
  %v540 = vpack.c.bf16 %v365, %v358
  %v541 = vpack.c.bf16 %v366, %v359
  %v542 = vpack.c.bf16 %v374, %v367
  %v543 = vpack.c.bf16 %v375, %v368
  %v544 = vpack.c.bf16 %v376, %v369
  %v545 = vpack.c.bf16 %v377, %v370
  %v546 = vpack.c.bf16 %v378, %v371
  %v547 = vpack.c.bf16 %v379, %v372
  %v548 = vpack.c.bf16 %v380, %v373
  %v549 = vld [vmem:[%s1] sm:$0xf]
  %v550 = vld [vmem:[%s1 + $0x4] sm:$0xf]
  %v551 = vld [vmem:[%s1 + $0x8] sm:$0xf]
  %v552 = vld [vmem:[%s1 + $0xc] sm:$0xf]
  %v553 = vld [vmem:[%s1 + $0x10] sm:$0xf]
  %v554 = vld [vmem:[%s1 + $0x14] sm:$0xf]
  %v555 = vld [vmem:[%s1 + $0x18] sm:$0xf]
  %v556 = vld [vmem:[%s1 + $0x1c] sm:$0xf]
  %v557 = vld [vmem:[%s1 + $0x20] sm:$0xf]
  %v558 = vld [vmem:[%s1 + $0x24] sm:$0xf]
  %v559 = vld [vmem:[%s1 + $0x28] sm:$0xf]
  %v560 = vld [vmem:[%s1 + $0x2c] sm:$0xf]
  %v561 = vld [vmem:[%s1 + $0x30] sm:$0xf]
  %v562 = vld [vmem:[%s1 + $0x34] sm:$0xf]
  %v563 = vld [vmem:[%s1 + $0x38] sm:$0xf]
  %v564 = vld [vmem:[%s1 + $0x3c] sm:$0xf]
  %v565 = vld [vmem:[%s1 + $0x40] sm:$0xf]
  %v566 = vld [vmem:[%s1 + $0x44] sm:$0xf]
  %v567 = vld [vmem:[%s1 + $0x48] sm:$0xf]
  %v568 = vld [vmem:[%s1 + $0x4c] sm:$0xf]
  %v569 = vld [vmem:[%s1 + $0x50] sm:$0xf]
  %v570 = vld [vmem:[%s1 + $0x54] sm:$0xf]
  %v571 = vld [vmem:[%s1 + $0x58] sm:$0xf]
  %v572 = vld [vmem:[%s1 + $0x5c] sm:$0xf]
  %v573 = vld [vmem:[%s1 + $0x60] sm:$0xf]
  %v574 = vld [vmem:[%s1 + $0x64] sm:$0xf]
  %v575 = vld [vmem:[%s1 + $0x68] sm:$0xf]
  %v576 = vld [vmem:[%s1 + $0x6c] sm:$0xf]
  %v577 = vld [vmem:[%s1 + $0x70] sm:$0xf]
  %v578 = vld [vmem:[%s1 + $0x74] sm:$0xf]
  %v579 = vld [vmem:[%s1 + $0x78] sm:$0xf]
  %v580 = vld [vmem:[%s1 + $0x7c] sm:$0xf]
  %v581 = vld [vmem:[%s1 + $0x80] sm:$0xf]
  %v582 = vld [vmem:[%s1 + $0x84] sm:$0xf]
  %v583 = vld [vmem:[%s1 + $0x88] sm:$0xf]
  %v584 = vld [vmem:[%s1 + $0x8c] sm:$0xf]
  %v585 = vld [vmem:[%s1 + $0x90] sm:$0xf]
  %v586 = vld [vmem:[%s1 + $0x94] sm:$0xf]
  %v587 = vld [vmem:[%s1 + $0x98] sm:$0xf]
  %v588 = vld [vmem:[%s1 + $0x9c] sm:$0xf]
  %v589 = vld [vmem:[%s1 + $0xa0] sm:$0xf]
  %v590 = vld [vmem:[%s1 + $0xa4] sm:$0xf]
  %v591 = vld [vmem:[%s1 + $0xa8] sm:$0xf]
  %v592 = vld [vmem:[%s1 + $0xac] sm:$0xf]
  %v593 = vld [vmem:[%s1 + $0xb0] sm:$0xf]
  %v594 = vld [vmem:[%s1 + $0xb4] sm:$0xf]
  %v595 = vld [vmem:[%s1 + $0xb8] sm:$0xf]
  %v596 = vld [vmem:[%s1 + $0xbc] sm:$0xf]
  %v597 = vld [vmem:[%s1 + $0xc0] sm:$0xf]
  %v598 = vld [vmem:[%s1 + $0xc4] sm:$0xf]
  %v599 = vld [vmem:[%s1 + $0xc8] sm:$0xf]
  %v600 = vld [vmem:[%s1 + $0xcc] sm:$0xf]
  %v601 = vld [vmem:[%s1 + $0xd0] sm:$0xf]
  %v602 = vld [vmem:[%s1 + $0xd4] sm:$0xf]
  %v603 = vld [vmem:[%s1 + $0xd8] sm:$0xf]
  %v604 = vld [vmem:[%s1 + $0xdc] sm:$0xf]
  %v605 = vld [vmem:[%s1 + $0xe0] sm:$0xf]
  %v606 = vld [vmem:[%s1 + $0xe4] sm:$0xf]
  %v607 = vld [vmem:[%s1 + $0xe8] sm:$0xf]
  %v608 = vld [vmem:[%s1 + $0xec] sm:$0xf]
  %v609 = vld [vmem:[%s1 + $0xf0] sm:$0xf]
  %v610 = vld [vmem:[%s1 + $0xf4] sm:$0xf]
  %v611 = vld [vmem:[%s1 + $0xf8] sm:$0xf]
  %v612 = vld [vmem:[%s1 + $0xfc] sm:$0xf]
  %v613 = vld [vmem:[%s1 + $0x100] sm:$0xf]
  %v614 = vld [vmem:[%s1 + $0x104] sm:$0xf]
  %v615 = vld [vmem:[%s1 + $0x108] sm:$0xf]
  %v616 = vld [vmem:[%s1 + $0x10c] sm:$0xf]
  %v617 = vld [vmem:[%s1 + $0x110] sm:$0xf]
  %v618 = vld [vmem:[%s1 + $0x114] sm:$0xf]
  %v619 = vld [vmem:[%s1 + $0x118] sm:$0xf]
  %v620 = vld [vmem:[%s1 + $0x11c] sm:$0xf]
  %v621 = vld [vmem:[%s1 + $0x120] sm:$0xf]
  %v622 = vld [vmem:[%s1 + $0x124] sm:$0xf]
  %v623 = vld [vmem:[%s1 + $0x128] sm:$0xf]
  %v624 = vld [vmem:[%s1 + $0x12c] sm:$0xf]
  %v625 = vld [vmem:[%s1 + $0x130] sm:$0xf]
  %v626 = vld [vmem:[%s1 + $0x134] sm:$0xf]
  %v627 = vld [vmem:[%s1 + $0x138] sm:$0xf]
  %v628 = vld [vmem:[%s1 + $0x13c] sm:$0xf]
  %v629 = vld [vmem:[%s1 + $0x140] sm:$0xf]
  %v630 = vld [vmem:[%s1 + $0x144] sm:$0xf]
  %v631 = vld [vmem:[%s1 + $0x148] sm:$0xf]
  %v632 = vld [vmem:[%s1 + $0x14c] sm:$0xf]
  %v633 = vld [vmem:[%s1 + $0x150] sm:$0xf]
  %v634 = vld [vmem:[%s1 + $0x154] sm:$0xf]
  %v635 = vld [vmem:[%s1 + $0x158] sm:$0xf]
  %v636 = vld [vmem:[%s1 + $0x15c] sm:$0xf]
  %v637 = vld [vmem:[%s1 + $0x160] sm:$0xf]
  %v638 = vld [vmem:[%s1 + $0x164] sm:$0xf]
  %v639 = vld [vmem:[%s1 + $0x168] sm:$0xf]
  %v640 = vld [vmem:[%s1 + $0x16c] sm:$0xf]
  %v641 = vld [vmem:[%s1 + $0x170] sm:$0xf]
  %v642 = vld [vmem:[%s1 + $0x174] sm:$0xf]
  %v643 = vld [vmem:[%s1 + $0x178] sm:$0xf]
  %v644 = vld [vmem:[%s1 + $0x17c] sm:$0xf]
  %v645 = vld [vmem:[%s1 + $0x180] sm:$0xf]
  %v646 = vld [vmem:[%s1 + $0x184] sm:$0xf]
  %v647 = vld [vmem:[%s2] sm:$0x1]
  %v649 = vlaneseq
  %v650 = vshrl.u32 %v649, 7
  %v651 = vsub.s32 0, %v650
  %v652 = vrot.slane %v647, %v651
  %v752 = vunpack.c.l.b16 %v549
  %v753 = vunpack.c.l.b16 %v550
  %v754 = vunpack.c.l.b16 %v551
  %v755 = vunpack.c.l.b16 %v552
  %v756 = vunpack.c.l.b16 %v553
  %v757 = vunpack.c.l.b16 %v554
  %v758 = vunpack.c.l.b16 %v555
  %v759 = vunpack.c.l.b16 %v556
  %v760 = vunpack.c.l.b16 %v557
  %v761 = vunpack.c.l.b16 %v558
  %v762 = vunpack.c.l.b16 %v559
  %v763 = vunpack.c.l.b16 %v560
  %v764 = vunpack.c.l.b16 %v561
  %v765 = vunpack.c.l.b16 %v562
  %v766 = vunpack.c.l.b16 %v563
  %v767 = vunpack.c.l.b16 %v564
  %v768 = vunpack.c.l.b16 %v565
  %v769 = vunpack.c.l.b16 %v566
  %v770 = vunpack.c.l.b16 %v567
  %v771 = vunpack.c.l.b16 %v568
  %v772 = vunpack.c.l.b16 %v569
  %v773 = vunpack.c.l.b16 %v570
  %v774 = vunpack.c.l.b16 %v571
  %v775 = vunpack.c.l.b16 %v572
  %v776 = vunpack.c.l.b16 %v573
  %v777 = vunpack.c.l.b16 %v574
  %v778 = vunpack.c.l.b16 %v575
  %v779 = vunpack.c.l.b16 %v576
  %v780 = vunpack.c.l.b16 %v577
  %v781 = vunpack.c.l.b16 %v578
  %v782 = vunpack.c.l.b16 %v579
  %v783 = vunpack.c.l.b16 %v580
  %v784 = vunpack.c.l.b16 %v581
  %v785 = vunpack.c.l.b16 %v582
  %v786 = vunpack.c.l.b16 %v583
  %v787 = vunpack.c.l.b16 %v584
  %v788 = vunpack.c.l.b16 %v585
  %v789 = vunpack.c.l.b16 %v586
  %v790 = vunpack.c.l.b16 %v587
  %v791 = vunpack.c.l.b16 %v588
  %v792 = vunpack.c.l.b16 %v589
  %v793 = vunpack.c.l.b16 %v590
  %v794 = vunpack.c.l.b16 %v591
  %v795 = vunpack.c.l.b16 %v592
  %v796 = vunpack.c.l.b16 %v593
  %v797 = vunpack.c.l.b16 %v594
  %v798 = vunpack.c.l.b16 %v595
  %v799 = vunpack.c.l.b16 %v596
  %v800 = vunpack.c.l.b16 %v597
  %v801 = vunpack.c.l.b16 %v598
  %v802 = vunpack.c.l.b16 %v599
  %v803 = vunpack.c.l.b16 %v600
  %v804 = vunpack.c.l.b16 %v601
  %v805 = vunpack.c.l.b16 %v602
  %v806 = vunpack.c.l.b16 %v603
  %v807 = vunpack.c.l.b16 %v604
  %v808 = vunpack.c.l.b16 %v605
  %v809 = vunpack.c.l.b16 %v606
  %v810 = vunpack.c.l.b16 %v607
  %v811 = vunpack.c.l.b16 %v608
  %v812 = vunpack.c.l.b16 %v609
  %v813 = vunpack.c.l.b16 %v610
  %v814 = vunpack.c.l.b16 %v611
  %v815 = vunpack.c.l.b16 %v612
  %v816 = vunpack.c.l.b16 %v613
  %v817 = vunpack.c.l.b16 %v614
  %v818 = vunpack.c.l.b16 %v615
  %v819 = vunpack.c.l.b16 %v616
  %v820 = vunpack.c.l.b16 %v617
  %v821 = vunpack.c.l.b16 %v618
  %v822 = vunpack.c.l.b16 %v619
  %v823 = vunpack.c.l.b16 %v620
  %v824 = vunpack.c.l.b16 %v621
  %v825 = vunpack.c.l.b16 %v622
  %v826 = vunpack.c.l.b16 %v623
  %v827 = vunpack.c.l.b16 %v624
  %v828 = vunpack.c.l.b16 %v625
  %v829 = vunpack.c.l.b16 %v626
  %v830 = vunpack.c.l.b16 %v627
  %v831 = vunpack.c.l.b16 %v628
  %v832 = vunpack.c.l.b16 %v629
  %v833 = vunpack.c.l.b16 %v630
  %v834 = vunpack.c.l.b16 %v631
  %v835 = vunpack.c.l.b16 %v632
  %v836 = vunpack.c.l.b16 %v633
  %v837 = vunpack.c.l.b16 %v634
  %v838 = vunpack.c.l.b16 %v635
  %v839 = vunpack.c.l.b16 %v636
  %v840 = vunpack.c.l.b16 %v637
  %v841 = vunpack.c.l.b16 %v638
  %v842 = vunpack.c.l.b16 %v639
  %v843 = vunpack.c.l.b16 %v640
  %v844 = vunpack.c.l.b16 %v641
  %v845 = vunpack.c.l.b16 %v642
  %v846 = vunpack.c.l.b16 %v643
  %v847 = vunpack.c.l.b16 %v644
  %v848 = vunpack.c.l.b16 %v645
  %v849 = vunpack.c.l.b16 %v646
  %v850 = vpack.c.b16 %v753, %v752
  %v851 = vpack.c.b16 %v755, %v754
  %v852 = vpack.c.b16 %v757, %v756
  %v853 = vpack.c.b16 %v759, %v758
  %v854 = vpack.c.b16 %v761, %v760
  %v855 = vpack.c.b16 %v763, %v762
  %v856 = vpack.c.b16 %v765, %v764
  %v857 = vpack.c.b16 %v767, %v766
  %v858 = vpack.c.b16 %v769, %v768
  %v859 = vpack.c.b16 %v771, %v770
  %v860 = vpack.c.b16 %v773, %v772
  %v861 = vpack.c.b16 %v775, %v774
  %v862 = vpack.c.b16 %v777, %v776
  %v863 = vpack.c.b16 %v779, %v778
  %v864 = vpack.c.b16 %v781, %v780
  %v865 = vpack.c.b16 %v783, %v782
  %v866 = vpack.c.b16 %v785, %v784
  %v867 = vpack.c.b16 %v787, %v786
  %v868 = vpack.c.b16 %v789, %v788
  %v869 = vpack.c.b16 %v791, %v790
  %v870 = vpack.c.b16 %v793, %v792
  %v871 = vpack.c.b16 %v795, %v794
  %v872 = vpack.c.b16 %v797, %v796
  %v873 = vpack.c.b16 %v799, %v798
  %v874 = vpack.c.b16 %v801, %v800
  %v875 = vpack.c.b16 %v803, %v802
  %v876 = vpack.c.b16 %v805, %v804
  %v877 = vpack.c.b16 %v807, %v806
  %v878 = vpack.c.b16 %v809, %v808
  %v879 = vpack.c.b16 %v811, %v810
  %v880 = vpack.c.b16 %v813, %v812
  %v881 = vpack.c.b16 %v815, %v814
  %v882 = vpack.c.b16 %v817, %v816
  %v883 = vpack.c.b16 %v819, %v818
  %v884 = vpack.c.b16 %v821, %v820
  %v885 = vpack.c.b16 %v823, %v822
  %v886 = vpack.c.b16 %v825, %v824
  %v887 = vpack.c.b16 %v827, %v826
  %v888 = vpack.c.b16 %v829, %v828
  %v889 = vpack.c.b16 %v831, %v830
  %v890 = vpack.c.b16 %v833, %v832
  %v891 = vpack.c.b16 %v835, %v834
  %v892 = vpack.c.b16 %v837, %v836
  %v893 = vpack.c.b16 %v839, %v838
  %v894 = vpack.c.b16 %v841, %v840
  %v895 = vpack.c.b16 %v843, %v842
  %v896 = vpack.c.b16 %v845, %v844
  %v897 = vpack.c.b16 %v847, %v846
  %v898 = vpack.c.b16 %v849, %v848
  %vm948 = vcmask 130048
  %v950 = vsel %vm948, %v387, 0
  %v953 = vsel %vm948, %v394, 0
  %v956 = vsel %vm948, %v401, 0
  %v959 = vsel %vm948, %v408, 0
  %v962 = vsel %vm948, %v415, 0
  %v965 = vsel %vm948, %v422, 0
  %v968 = vsel %vm948, %v429, 0
  %v971 = vsel %vm948, %v436, 0
  %v974 = vsel %vm948, %v443, 0
  %v977 = vsel %vm948, %v450, 0
  %v980 = vsel %vm948, %v457, 0
  %v983 = vsel %vm948, %v464, 0
  %v986 = vsel %vm948, %v471, 0
  %v989 = vsel %vm948, %v478, 0
  %v992 = vsel %vm948, %v485, 0
  %v995 = vsel %vm948, %v492, 0
  %v998 = vsel %vm948, %v499, 0
  %v1001 = vsel %vm948, %v506, 0
  %v1004 = vsel %vm948, %v513, 0
  %v1007 = vsel %vm948, %v520, 0
  %v1010 = vsel %vm948, %v527, 0
  %v1013 = vsel %vm948, %v534, 0
  %v1016 = vsel %vm948, %v541, 0
  %v1019 = vsel %vm948, %v548, 0
  %1021 = vmatprep.subr.bf16.mxu0 0
  %1022 = vmatpush1.bf16.msra.mxu0 %v850
  %1023 = vmatprep.subr.bf16.mxu0 0
  %1024 = vmatpush1.bf16.msra.mxu0 %v851
  %1025 = vmatprep.subr.bf16.mxu0 0
  %1026 = vmatpush1.bf16.msra.mxu0 %v852
  %1027 = vmatprep.subr.bf16.mxu0 0
  %1028 = vmatpush1.bf16.msra.mxu0 %v853
  %1029 = vmatprep.subr.bf16.mxu0 0
  %1030 = vmatpush1.bf16.msra.mxu0 %v854
  %1031 = vmatprep.subr.bf16.mxu0 0
  %1032 = vmatpush1.bf16.msra.mxu0 %v855
  %1033 = vmatprep.subr.bf16.mxu0 0
  %1034 = vmatpush1.bf16.msra.mxu0 %v856
  %1035 = vmatprep.subr.bf16.mxu0 0
  %1036 = vmatpush1.bf16.msra.mxu0 %v857
  %1037 = vmatprep.subr.bf16.mxu0 0
  %1038 = vmatpush1.bf16.msra.mxu0 %v858
  %1039 = vmatprep.subr.bf16.mxu0 0
  %1040 = vmatpush1.bf16.msra.mxu0 %v859
  %1041 = vmatprep.subr.bf16.mxu0 0
  %1042 = vmatpush1.bf16.msra.mxu0 %v860
  %1043 = vmatprep.subr.bf16.mxu0 0
  %1044 = vmatpush1.bf16.msra.mxu0 %v861
  %1045 = vmatprep.subr.bf16.mxu0 0
  %1046 = vmatpush1.bf16.msra.mxu0 %v862
  %1047 = vmatprep.subr.bf16.mxu0 0
  %1048 = vmatpush1.bf16.msra.mxu0 %v863
  %1049 = vmatprep.subr.bf16.mxu0 0
  %1050 = vmatpush1.bf16.msra.mxu0 %v864
  %1051 = vmatprep.subr.bf16.mxu0 0
  %1052 = vmatpush1.bf16.msra.mxu0 %v865
  %1053 = vmatprep.mubr.bf16.mxu0 %v382
  %1054 = vmatmul.mubr.bf16.gmra.mrb[0].mxu0 %v381
  %v1055 = vpop.f32.mrb[0].mxu0
  %v1056 = vadd.f32 %v652, %v1055
  %v1057 = vpop.f32.mrb[0].mxu0
  %v1058 = vpop.f32.mrb[0].mxu0
  %v1059 = vadd.f32 %v652, %v1058
  %v1060 = vpop.f32.mrb[0].mxu0
  %1061 = vmatprep.mubr.bf16.mxu0 %v389
  %1062 = vmatmul.mubr.bf16.gmra.mrb[0].mxu0 %v388
  %v1063 = vpop.f32.mrb[0].mxu0
  %v1064 = vadd.f32 %v652, %v1063
  %v1065 = vpop.f32.mrb[0].mxu0
  %v1066 = vpop.f32.mrb[0].mxu0
  %v1067 = vadd.f32 %v652, %v1066
  %v1068 = vpop.f32.mrb[0].mxu0
  %1069 = vmatprep.mubr.bf16.mxu0 %v396
  %1070 = vmatmul.mubr.bf16.gmra.mrb[0].mxu0 %v395
  %v1071 = vpop.f32.mrb[0].mxu0
  %v1072 = vadd.f32 %v652, %v1071
  %v1073 = vpop.f32.mrb[0].mxu0
  %v1074 = vpop.f32.mrb[0].mxu0
  %v1075 = vadd.f32 %v652, %v1074
  %v1076 = vpop.f32.mrb[0].mxu0
  %1077 = vmatprep.mubr.bf16.mxu0 %v403
  %1078 = vmatmul.mubr.bf16.gmra.mrb[0].mxu0 %v402
  %v1079 = vpop.f32.mrb[0].mxu0
  %v1080 = vadd.f32 %v652, %v1079
  %v1081 = vpop.f32.mrb[0].mxu0
  %v1082 = vpop.f32.mrb[0].mxu0
  %v1083 = vadd.f32 %v652, %v1082
  %v1084 = vpop.f32.mrb[0].mxu0
  %1085 = vmatprep.mubr.bf16.mxu0 %v410
  %1086 = vmatmul.mubr.bf16.gmra.mrb[0].mxu0 %v409
  %v1087 = vpop.f32.mrb[0].mxu0
  %v1088 = vadd.f32 %v652, %v1087
  %v1089 = vpop.f32.mrb[0].mxu0
  %v1090 = vpop.f32.mrb[0].mxu0
  %v1091 = vadd.f32 %v652, %v1090
  %v1092 = vpop.f32.mrb[0].mxu0
  %1093 = vmatprep.mubr.bf16.mxu0 %v417
  %1094 = vmatmul.mubr.bf16.gmra.mrb[0].mxu0 %v416
  %v1095 = vpop.f32.mrb[0].mxu0
  %v1096 = vadd.f32 %v652, %v1095
  %v1097 = vpop.f32.mrb[0].mxu0
  %v1098 = vpop.f32.mrb[0].mxu0
  %v1099 = vadd.f32 %v652, %v1098
  %v1100 = vpop.f32.mrb[0].mxu0
  %1101 = vmatprep.mubr.bf16.mxu0 %v424
  %1102 = vmatmul.mubr.bf16.gmra.mrb[0].mxu0 %v423
  %v1103 = vpop.f32.mrb[0].mxu0
  %v1104 = vadd.f32 %v652, %v1103
  %v1105 = vpop.f32.mrb[0].mxu0
  %v1106 = vpop.f32.mrb[0].mxu0
  %v1107 = vadd.f32 %v652, %v1106
  %v1108 = vpop.f32.mrb[0].mxu0
  %1109 = vmatprep.mubr.bf16.mxu0 %v431
  %1110 = vmatmul.mubr.bf16.gmra.mrb[0].mxu0 %v430
  %v1111 = vpop.f32.mrb[0].mxu0
  %v1112 = vadd.f32 %v652, %v1111
  %v1113 = vpop.f32.mrb[0].mxu0
  %v1114 = vpop.f32.mrb[0].mxu0
  %v1115 = vadd.f32 %v652, %v1114
  %v1116 = vpop.f32.mrb[0].mxu0
  %1117 = vmatprep.mubr.bf16.mxu0 %v438
  %1118 = vmatmul.mubr.bf16.gmra.mrb[0].mxu0 %v437
  %v1119 = vpop.f32.mrb[0].mxu0
  %v1120 = vadd.f32 %v652, %v1119
  %v1121 = vpop.f32.mrb[0].mxu0
  %v1122 = vpop.f32.mrb[0].mxu0
  %v1123 = vadd.f32 %v652, %v1122
  %v1124 = vpop.f32.mrb[0].mxu0
  %1125 = vmatprep.mubr.bf16.mxu0 %v445
  %1126 = vmatmul.mubr.bf16.gmra.mrb[0].mxu0 %v444
  %v1127 = vpop.f32.mrb[0].mxu0
  %v1128 = vadd.f32 %v652, %v1127
  %v1129 = vpop.f32.mrb[0].mxu0
  %v1130 = vpop.f32.mrb[0].mxu0
  %v1131 = vadd.f32 %v652, %v1130
  %v1132 = vpop.f32.mrb[0].mxu0
  %1133 = vmatprep.mubr.bf16.mxu0 %v452
  %1134 = vmatmul.mubr.bf16.gmra.mrb[0].mxu0 %v451
  %v1135 = vpop.f32.mrb[0].mxu0
  %v1136 = vadd.f32 %v652, %v1135
  %v1137 = vpop.f32.mrb[0].mxu0
  %v1138 = vpop.f32.mrb[0].mxu0
  %v1139 = vadd.f32 %v652, %v1138
  %v1140 = vpop.f32.mrb[0].mxu0
  %1141 = vmatprep.mubr.bf16.mxu0 %v459
  %1142 = vmatmul.mubr.bf16.gmra.mrb[0].mxu0 %v458
  %v1143 = vpop.f32.mrb[0].mxu0
  %v1144 = vadd.f32 %v652, %v1143
  %v1145 = vpop.f32.mrb[0].mxu0
  %v1146 = vpop.f32.mrb[0].mxu0
  %v1147 = vadd.f32 %v652, %v1146
  %v1148 = vpop.f32.mrb[0].mxu0
  %1149 = vmatprep.mubr.bf16.mxu0 %v466
  %1150 = vmatmul.mubr.bf16.gmra.mrb[0].mxu0 %v465
  %v1151 = vpop.f32.mrb[0].mxu0
  %v1152 = vadd.f32 %v652, %v1151
  %v1153 = vpop.f32.mrb[0].mxu0
  %v1154 = vpop.f32.mrb[0].mxu0
  %v1155 = vadd.f32 %v652, %v1154
  %v1156 = vpop.f32.mrb[0].mxu0
  %1157 = vmatprep.mubr.bf16.mxu0 %v473
  %1158 = vmatmul.mubr.bf16.gmra.mrb[0].mxu0 %v472
  %v1159 = vpop.f32.mrb[0].mxu0
  %v1160 = vadd.f32 %v652, %v1159
  %v1161 = vpop.f32.mrb[0].mxu0
  %v1162 = vpop.f32.mrb[0].mxu0
  %v1163 = vadd.f32 %v652, %v1162
  %v1164 = vpop.f32.mrb[0].mxu0
  %1165 = vmatprep.mubr.bf16.mxu0 %v480
  %1166 = vmatmul.mubr.bf16.gmra.mrb[0].mxu0 %v479
  %v1167 = vpop.f32.mrb[0].mxu0
  %v1168 = vadd.f32 %v652, %v1167
  %v1169 = vpop.f32.mrb[0].mxu0
  %v1170 = vpop.f32.mrb[0].mxu0
  %v1171 = vadd.f32 %v652, %v1170
  %v1172 = vpop.f32.mrb[0].mxu0
  %1173 = vmatprep.mubr.bf16.mxu0 %v487
  %1174 = vmatmul.mubr.bf16.gmra.mrb[0].mxu0 %v486
  %v1175 = vpop.f32.mrb[0].mxu0
  %v1176 = vadd.f32 %v652, %v1175
  %v1177 = vpop.f32.mrb[0].mxu0
  %v1178 = vpop.f32.mrb[0].mxu0
  %v1179 = vadd.f32 %v652, %v1178
  %v1180 = vpop.f32.mrb[0].mxu0
  %1181 = vmatprep.mubr.bf16.mxu0 %v494
  %1182 = vmatmul.mubr.bf16.gmra.mrb[0].mxu0 %v493
  %v1183 = vpop.f32.mrb[0].mxu0
  %v1184 = vadd.f32 %v652, %v1183
  %v1185 = vpop.f32.mrb[0].mxu0
  %v1186 = vpop.f32.mrb[0].mxu0
  %v1187 = vadd.f32 %v652, %v1186
  %v1188 = vpop.f32.mrb[0].mxu0
  %1189 = vmatprep.mubr.bf16.mxu0 %v501
  %1190 = vmatmul.mubr.bf16.gmra.mrb[0].mxu0 %v500
  %v1191 = vpop.f32.mrb[0].mxu0
  %v1192 = vadd.f32 %v652, %v1191
  %v1193 = vpop.f32.mrb[0].mxu0
  %v1194 = vpop.f32.mrb[0].mxu0
  %v1195 = vadd.f32 %v652, %v1194
  %v1196 = vpop.f32.mrb[0].mxu0
  %1197 = vmatprep.mubr.bf16.mxu0 %v508
  %1198 = vmatmul.mubr.bf16.gmra.mrb[0].mxu0 %v507
  %v1199 = vpop.f32.mrb[0].mxu0
  %v1200 = vadd.f32 %v652, %v1199
  %v1201 = vpop.f32.mrb[0].mxu0
  %v1202 = vpop.f32.mrb[0].mxu0
  %v1203 = vadd.f32 %v652, %v1202
  %v1204 = vpop.f32.mrb[0].mxu0
  %1205 = vmatprep.mubr.bf16.mxu0 %v515
  %1206 = vmatmul.mubr.bf16.gmra.mrb[0].mxu0 %v514
  %v1207 = vpop.f32.mrb[0].mxu0
  %v1208 = vadd.f32 %v652, %v1207
  %v1209 = vpop.f32.mrb[0].mxu0
  %v1210 = vpop.f32.mrb[0].mxu0
  %v1211 = vadd.f32 %v652, %v1210
  %v1212 = vpop.f32.mrb[0].mxu0
  %1213 = vmatprep.mubr.bf16.mxu0 %v522
  %1214 = vmatmul.mubr.bf16.gmra.mrb[0].mxu0 %v521
  %v1215 = vpop.f32.mrb[0].mxu0
  %v1216 = vadd.f32 %v652, %v1215
  %v1217 = vpop.f32.mrb[0].mxu0
  %v1218 = vpop.f32.mrb[0].mxu0
  %v1219 = vadd.f32 %v652, %v1218
  %v1220 = vpop.f32.mrb[0].mxu0
  %1221 = vmatprep.mubr.bf16.mxu0 %v529
  %1222 = vmatmul.mubr.bf16.gmra.mrb[0].mxu0 %v528
  %v1223 = vpop.f32.mrb[0].mxu0
  %v1224 = vadd.f32 %v652, %v1223
  %v1225 = vpop.f32.mrb[0].mxu0
  %v1226 = vpop.f32.mrb[0].mxu0
  %v1227 = vadd.f32 %v652, %v1226
  %v1228 = vpop.f32.mrb[0].mxu0
  %1229 = vmatprep.mubr.bf16.mxu0 %v536
  %1230 = vmatmul.mubr.bf16.gmra.mrb[0].mxu0 %v535
  %v1231 = vpop.f32.mrb[0].mxu0
  %v1232 = vadd.f32 %v652, %v1231
  %v1233 = vpop.f32.mrb[0].mxu0
  %v1234 = vpop.f32.mrb[0].mxu0
  %v1235 = vadd.f32 %v652, %v1234
  %v1236 = vpop.f32.mrb[0].mxu0
  %1237 = vmatprep.mubr.bf16.mxu0 %v543
  %1238 = vmatmul.mubr.bf16.gmra.mrb[0].mxu0 %v542
  %v1239 = vpop.f32.mrb[0].mxu0
  %v1240 = vadd.f32 %v652, %v1239
  %v1241 = vpop.f32.mrb[0].mxu0
  %v1242 = vpop.f32.mrb[0].mxu0
  %v1243 = vadd.f32 %v652, %v1242
  %v1244 = vpop.f32.mrb[0].mxu0
  %1245 = vdwg.mxu0
  %1246 = vmatprep.subr.bf16.mxu0 0
  %1247 = vmatpush1.bf16.msra.mxu0 %v866
  %1248 = vmatprep.subr.bf16.mxu0 0
  %1249 = vmatpush1.bf16.msra.mxu0 %v867
  %1250 = vmatprep.subr.bf16.mxu0 0
  %1251 = vmatpush1.bf16.msra.mxu0 %v868
  %1252 = vmatprep.subr.bf16.mxu0 0
  %1253 = vmatpush1.bf16.msra.mxu0 %v869
  %1254 = vmatprep.subr.bf16.mxu0 0
  %1255 = vmatpush1.bf16.msra.mxu0 %v870
  %1256 = vmatprep.subr.bf16.mxu0 0
  %1257 = vmatpush1.bf16.msra.mxu0 %v871
  %1258 = vmatprep.subr.bf16.mxu0 0
  %1259 = vmatpush1.bf16.msra.mxu0 %v872
  %1260 = vmatprep.subr.bf16.mxu0 0
  %1261 = vmatpush1.bf16.msra.mxu0 %v873
  %1262 = vmatprep.subr.bf16.mxu0 0
  %1263 = vmatpush1.bf16.msra.mxu0 %v874
  %1264 = vmatprep.subr.bf16.mxu0 0
  %1265 = vmatpush1.bf16.msra.mxu0 %v875
  %1266 = vmatprep.subr.bf16.mxu0 0
  %1267 = vmatpush1.bf16.msra.mxu0 %v876
  %1268 = vmatprep.subr.bf16.mxu0 0
  %1269 = vmatpush1.bf16.msra.mxu0 %v877
  %1270 = vmatprep.subr.bf16.mxu0 0
  %1271 = vmatpush1.bf16.msra.mxu0 %v878
  %1272 = vmatprep.subr.bf16.mxu0 0
  %1273 = vmatpush1.bf16.msra.mxu0 %v879
  %1274 = vmatprep.subr.bf16.mxu0 0
  %1275 = vmatpush1.bf16.msra.mxu0 %v880
  %1276 = vmatprep.subr.bf16.mxu0 0
  %1277 = vmatpush1.bf16.msra.mxu0 %v881
  %1278 = vmatprep.mubr.bf16.mxu0 %v384
  %1279 = vmatmul.mubr.bf16.gmra.mrb[0].mxu0 %v383
  %v1280 = vpop.f32.mrb[0].mxu0
  %v1281 = vadd.f32 %v1056, %v1280
  %v1282 = vpop.f32.mrb[0].mxu0
  %v1283 = vpop.f32.mrb[0].mxu0
  %v1284 = vadd.f32 %v1059, %v1283
  %v1285 = vpop.f32.mrb[0].mxu0
  %1286 = vmatprep.mubr.bf16.mxu0 %v391
  %1287 = vmatmul.mubr.bf16.gmra.mrb[0].mxu0 %v390
  %v1288 = vpop.f32.mrb[0].mxu0
  %v1289 = vadd.f32 %v1064, %v1288
  %v1290 = vpop.f32.mrb[0].mxu0
  %v1291 = vpop.f32.mrb[0].mxu0
  %v1292 = vadd.f32 %v1067, %v1291
  %v1293 = vpop.f32.mrb[0].mxu0
  %1294 = vmatprep.mubr.bf16.mxu0 %v398
  %1295 = vmatmul.mubr.bf16.gmra.mrb[0].mxu0 %v397
  %v1296 = vpop.f32.mrb[0].mxu0
  %v1297 = vadd.f32 %v1072, %v1296
  %v1298 = vpop.f32.mrb[0].mxu0
  %v1299 = vpop.f32.mrb[0].mxu0
  %v1300 = vadd.f32 %v1075, %v1299
  %v1301 = vpop.f32.mrb[0].mxu0
  %1302 = vmatprep.mubr.bf16.mxu0 %v405
  %1303 = vmatmul.mubr.bf16.gmra.mrb[0].mxu0 %v404
  %v1304 = vpop.f32.mrb[0].mxu0
  %v1305 = vadd.f32 %v1080, %v1304
  %v1306 = vpop.f32.mrb[0].mxu0
  %v1307 = vpop.f32.mrb[0].mxu0
  %v1308 = vadd.f32 %v1083, %v1307
  %v1309 = vpop.f32.mrb[0].mxu0
  %1310 = vmatprep.mubr.bf16.mxu0 %v412
  %1311 = vmatmul.mubr.bf16.gmra.mrb[0].mxu0 %v411
  %v1312 = vpop.f32.mrb[0].mxu0
  %v1313 = vadd.f32 %v1088, %v1312
  %v1314 = vpop.f32.mrb[0].mxu0
  %v1315 = vpop.f32.mrb[0].mxu0
  %v1316 = vadd.f32 %v1091, %v1315
  %v1317 = vpop.f32.mrb[0].mxu0
  %1318 = vmatprep.mubr.bf16.mxu0 %v419
  %1319 = vmatmul.mubr.bf16.gmra.mrb[0].mxu0 %v418
  %v1320 = vpop.f32.mrb[0].mxu0
  %v1321 = vadd.f32 %v1096, %v1320
  %v1322 = vpop.f32.mrb[0].mxu0
  %v1323 = vpop.f32.mrb[0].mxu0
  %v1324 = vadd.f32 %v1099, %v1323
  %v1325 = vpop.f32.mrb[0].mxu0
  %1326 = vmatprep.mubr.bf16.mxu0 %v426
  %1327 = vmatmul.mubr.bf16.gmra.mrb[0].mxu0 %v425
  %v1328 = vpop.f32.mrb[0].mxu0
  %v1329 = vadd.f32 %v1104, %v1328
  %v1330 = vpop.f32.mrb[0].mxu0
  %v1331 = vpop.f32.mrb[0].mxu0
  %v1332 = vadd.f32 %v1107, %v1331
  %v1333 = vpop.f32.mrb[0].mxu0
  %1334 = vmatprep.mubr.bf16.mxu0 %v433
  %1335 = vmatmul.mubr.bf16.gmra.mrb[0].mxu0 %v432
  %v1336 = vpop.f32.mrb[0].mxu0
  %v1337 = vadd.f32 %v1112, %v1336
  %v1338 = vpop.f32.mrb[0].mxu0
  %v1339 = vpop.f32.mrb[0].mxu0
  %v1340 = vadd.f32 %v1115, %v1339
  %v1341 = vpop.f32.mrb[0].mxu0
  %1342 = vmatprep.mubr.bf16.mxu0 %v440
  %1343 = vmatmul.mubr.bf16.gmra.mrb[0].mxu0 %v439
  %v1344 = vpop.f32.mrb[0].mxu0
  %v1345 = vadd.f32 %v1120, %v1344
  %v1346 = vpop.f32.mrb[0].mxu0
  %v1347 = vpop.f32.mrb[0].mxu0
  %v1348 = vadd.f32 %v1123, %v1347
  %v1349 = vpop.f32.mrb[0].mxu0
  %1350 = vmatprep.mubr.bf16.mxu0 %v447
  %1351 = vmatmul.mubr.bf16.gmra.mrb[0].mxu0 %v446
  %v1352 = vpop.f32.mrb[0].mxu0
  %v1353 = vadd.f32 %v1128, %v1352
  %v1354 = vpop.f32.mrb[0].mxu0
  %v1355 = vpop.f32.mrb[0].mxu0
  %v1356 = vadd.f32 %v1131, %v1355
  %v1357 = vpop.f32.mrb[0].mxu0
  %1358 = vmatprep.mubr.bf16.mxu0 %v454
  %1359 = vmatmul.mubr.bf16.gmra.mrb[0].mxu0 %v453
  %v1360 = vpop.f32.mrb[0].mxu0
  %v1361 = vadd.f32 %v1136, %v1360
  %v1362 = vpop.f32.mrb[0].mxu0
  %v1363 = vpop.f32.mrb[0].mxu0
  %v1364 = vadd.f32 %v1139, %v1363
  %v1365 = vpop.f32.mrb[0].mxu0
  %1366 = vmatprep.mubr.bf16.mxu0 %v461
  %1367 = vmatmul.mubr.bf16.gmra.mrb[0].mxu0 %v460
  %v1368 = vpop.f32.mrb[0].mxu0
  %v1369 = vadd.f32 %v1144, %v1368
  %v1370 = vpop.f32.mrb[0].mxu0
  %v1371 = vpop.f32.mrb[0].mxu0
  %v1372 = vadd.f32 %v1147, %v1371
  %v1373 = vpop.f32.mrb[0].mxu0
  %1374 = vmatprep.mubr.bf16.mxu0 %v468
  %1375 = vmatmul.mubr.bf16.gmra.mrb[0].mxu0 %v467
  %v1376 = vpop.f32.mrb[0].mxu0
  %v1377 = vadd.f32 %v1152, %v1376
  %v1378 = vpop.f32.mrb[0].mxu0
  %v1379 = vpop.f32.mrb[0].mxu0
  %v1380 = vadd.f32 %v1155, %v1379
  %v1381 = vpop.f32.mrb[0].mxu0
  %1382 = vmatprep.mubr.bf16.mxu0 %v475
  %1383 = vmatmul.mubr.bf16.gmra.mrb[0].mxu0 %v474
  %v1384 = vpop.f32.mrb[0].mxu0
  %v1385 = vadd.f32 %v1160, %v1384
  %v1386 = vpop.f32.mrb[0].mxu0
  %v1387 = vpop.f32.mrb[0].mxu0
  %v1388 = vadd.f32 %v1163, %v1387
  %v1389 = vpop.f32.mrb[0].mxu0
  %1390 = vmatprep.mubr.bf16.mxu0 %v482
  %1391 = vmatmul.mubr.bf16.gmra.mrb[0].mxu0 %v481
  %v1392 = vpop.f32.mrb[0].mxu0
  %v1393 = vadd.f32 %v1168, %v1392
  %v1394 = vpop.f32.mrb[0].mxu0
  %v1395 = vpop.f32.mrb[0].mxu0
  %v1396 = vadd.f32 %v1171, %v1395
  %v1397 = vpop.f32.mrb[0].mxu0
  %1398 = vmatprep.mubr.bf16.mxu0 %v489
  %1399 = vmatmul.mubr.bf16.gmra.mrb[0].mxu0 %v488
  %v1400 = vpop.f32.mrb[0].mxu0
  %v1401 = vadd.f32 %v1176, %v1400
  %v1402 = vpop.f32.mrb[0].mxu0
  %v1403 = vpop.f32.mrb[0].mxu0
  %v1404 = vadd.f32 %v1179, %v1403
  %v1405 = vpop.f32.mrb[0].mxu0
  %1406 = vmatprep.mubr.bf16.mxu0 %v496
  %1407 = vmatmul.mubr.bf16.gmra.mrb[0].mxu0 %v495
  %v1408 = vpop.f32.mrb[0].mxu0
  %v1409 = vadd.f32 %v1184, %v1408
  %v1410 = vpop.f32.mrb[0].mxu0
  %v1411 = vpop.f32.mrb[0].mxu0
  %v1412 = vadd.f32 %v1187, %v1411
  %v1413 = vpop.f32.mrb[0].mxu0
  %1414 = vmatprep.mubr.bf16.mxu0 %v503
  %1415 = vmatmul.mubr.bf16.gmra.mrb[0].mxu0 %v502
  %v1416 = vpop.f32.mrb[0].mxu0
  %v1417 = vadd.f32 %v1192, %v1416
  %v1418 = vpop.f32.mrb[0].mxu0
  %v1419 = vpop.f32.mrb[0].mxu0
  %v1420 = vadd.f32 %v1195, %v1419
  %v1421 = vpop.f32.mrb[0].mxu0
  %1422 = vmatprep.mubr.bf16.mxu0 %v510
  %1423 = vmatmul.mubr.bf16.gmra.mrb[0].mxu0 %v509
  %v1424 = vpop.f32.mrb[0].mxu0
  %v1425 = vadd.f32 %v1200, %v1424
  %v1426 = vpop.f32.mrb[0].mxu0
  %v1427 = vpop.f32.mrb[0].mxu0
  %v1428 = vadd.f32 %v1203, %v1427
  %v1429 = vpop.f32.mrb[0].mxu0
  %1430 = vmatprep.mubr.bf16.mxu0 %v517
  %1431 = vmatmul.mubr.bf16.gmra.mrb[0].mxu0 %v516
  %v1432 = vpop.f32.mrb[0].mxu0
  %v1433 = vadd.f32 %v1208, %v1432
  %v1434 = vpop.f32.mrb[0].mxu0
  %v1435 = vpop.f32.mrb[0].mxu0
  %v1436 = vadd.f32 %v1211, %v1435
  %v1437 = vpop.f32.mrb[0].mxu0
  %1438 = vmatprep.mubr.bf16.mxu0 %v524
  %1439 = vmatmul.mubr.bf16.gmra.mrb[0].mxu0 %v523
  %v1440 = vpop.f32.mrb[0].mxu0
  %v1441 = vadd.f32 %v1216, %v1440
  %v1442 = vpop.f32.mrb[0].mxu0
  %v1443 = vpop.f32.mrb[0].mxu0
  %v1444 = vadd.f32 %v1219, %v1443
  %v1445 = vpop.f32.mrb[0].mxu0
  %1446 = vmatprep.mubr.bf16.mxu0 %v531
  %1447 = vmatmul.mubr.bf16.gmra.mrb[0].mxu0 %v530
  %v1448 = vpop.f32.mrb[0].mxu0
  %v1449 = vadd.f32 %v1224, %v1448
  %v1450 = vpop.f32.mrb[0].mxu0
  %v1451 = vpop.f32.mrb[0].mxu0
  %v1452 = vadd.f32 %v1227, %v1451
  %v1453 = vpop.f32.mrb[0].mxu0
  %1454 = vmatprep.mubr.bf16.mxu0 %v538
  %1455 = vmatmul.mubr.bf16.gmra.mrb[0].mxu0 %v537
  %v1456 = vpop.f32.mrb[0].mxu0
  %v1457 = vadd.f32 %v1232, %v1456
  %v1458 = vpop.f32.mrb[0].mxu0
  %v1459 = vpop.f32.mrb[0].mxu0
  %v1460 = vadd.f32 %v1235, %v1459
  %v1461 = vpop.f32.mrb[0].mxu0
  %1462 = vmatprep.mubr.bf16.mxu0 %v545
  %1463 = vmatmul.mubr.bf16.gmra.mrb[0].mxu0 %v544
  %v1464 = vpop.f32.mrb[0].mxu0
  %v1465 = vadd.f32 %v1240, %v1464
  %v1466 = vpop.f32.mrb[0].mxu0
  %v1467 = vpop.f32.mrb[0].mxu0
  %v1468 = vadd.f32 %v1243, %v1467
  %v1469 = vpop.f32.mrb[0].mxu0
  %1470 = vdwg.mxu0
  %1471 = vmatprep.subr.bf16.mxu0 0
  %1472 = vmatpush1.bf16.msra.mxu0 %v882
  %1473 = vmatprep.subr.bf16.mxu0 0
  %1474 = vmatpush1.bf16.msra.mxu0 %v883
  %1475 = vmatprep.subr.bf16.mxu0 0
  %1476 = vmatpush1.bf16.msra.mxu0 %v884
  %1477 = vmatprep.subr.bf16.mxu0 0
  %1478 = vmatpush1.bf16.msra.mxu0 %v885
  %1479 = vmatprep.subr.bf16.mxu0 0
  %1480 = vmatpush1.bf16.msra.mxu0 %v886
  %1481 = vmatprep.subr.bf16.mxu0 0
  %1482 = vmatpush1.bf16.msra.mxu0 %v887
  %1483 = vmatprep.subr.bf16.mxu0 0
  %1484 = vmatpush1.bf16.msra.mxu0 %v888
  %1485 = vmatprep.subr.bf16.mxu0 0
  %1486 = vmatpush1.bf16.msra.mxu0 %v889
  %1487 = vmatprep.subr.bf16.mxu0 0
  %1488 = vmatpush1.bf16.msra.mxu0 %v890
  %1489 = vmatprep.subr.bf16.mxu0 0
  %1490 = vmatpush1.bf16.msra.mxu0 %v891
  %1491 = vmatprep.subr.bf16.mxu0 0
  %1492 = vmatpush1.bf16.msra.mxu0 %v892
  %1493 = vmatprep.subr.bf16.mxu0 0
  %1494 = vmatpush1.bf16.msra.mxu0 %v893
  %1495 = vmatprep.subr.bf16.mxu0 0
  %1496 = vmatpush1.bf16.msra.mxu0 %v894
  %1497 = vmatprep.subr.bf16.mxu0 0
  %1498 = vmatpush1.bf16.msra.mxu0 %v895
  %1499 = vmatprep.subr.bf16.mxu0 0
  %1500 = vmatpush1.bf16.msra.mxu0 %v896
  %1501 = vmatprep.subr.bf16.mxu0 0
  %1502 = vmatpush1.bf16.msra.mxu0 %v897
  %1503 = vmatprep.mubr.bf16.mxu0 %v386
  %1504 = vmatmul.mubr.bf16.gmra.mrb[0].mxu0 %v385
  %v1505 = vpop.f32.mrb[0].mxu0
  %v1506 = vadd.f32 %v1281, %v1505
  %v1507 = vpop.f32.mrb[0].mxu0
  %v1508 = vpop.f32.mrb[0].mxu0
  %v1509 = vadd.f32 %v1284, %v1508
  %v1510 = vpop.f32.mrb[0].mxu0
  %1511 = vmatprep.mubr.bf16.mxu0 %v393
  %1512 = vmatmul.mubr.bf16.gmra.mrb[0].mxu0 %v392
  %v1513 = vpop.f32.mrb[0].mxu0
  %v1514 = vadd.f32 %v1289, %v1513
  %v1515 = vpop.f32.mrb[0].mxu0
  %v1516 = vpop.f32.mrb[0].mxu0
  %v1517 = vadd.f32 %v1292, %v1516
  %v1518 = vpop.f32.mrb[0].mxu0
  %1519 = vmatprep.mubr.bf16.mxu0 %v400
  %1520 = vmatmul.mubr.bf16.gmra.mrb[0].mxu0 %v399
  %v1521 = vpop.f32.mrb[0].mxu0
  %v1522 = vadd.f32 %v1297, %v1521
  %v1523 = vpop.f32.mrb[0].mxu0
  %v1524 = vpop.f32.mrb[0].mxu0
  %v1525 = vadd.f32 %v1300, %v1524
  %v1526 = vpop.f32.mrb[0].mxu0
  %1527 = vmatprep.mubr.bf16.mxu0 %v407
  %1528 = vmatmul.mubr.bf16.gmra.mrb[0].mxu0 %v406
  %v1529 = vpop.f32.mrb[0].mxu0
  %v1530 = vadd.f32 %v1305, %v1529
  %v1531 = vpop.f32.mrb[0].mxu0
  %v1532 = vpop.f32.mrb[0].mxu0
  %v1533 = vadd.f32 %v1308, %v1532
  %v1534 = vpop.f32.mrb[0].mxu0
  %1535 = vmatprep.mubr.bf16.mxu0 %v414
  %1536 = vmatmul.mubr.bf16.gmra.mrb[0].mxu0 %v413
  %v1537 = vpop.f32.mrb[0].mxu0
  %v1538 = vadd.f32 %v1313, %v1537
  %v1539 = vpop.f32.mrb[0].mxu0
  %v1540 = vpop.f32.mrb[0].mxu0
  %v1541 = vadd.f32 %v1316, %v1540
  %v1542 = vpop.f32.mrb[0].mxu0
  %1543 = vmatprep.mubr.bf16.mxu0 %v421
  %1544 = vmatmul.mubr.bf16.gmra.mrb[0].mxu0 %v420
  %v1545 = vpop.f32.mrb[0].mxu0
  %v1546 = vadd.f32 %v1321, %v1545
  %v1547 = vpop.f32.mrb[0].mxu0
  %v1548 = vpop.f32.mrb[0].mxu0
  %v1549 = vadd.f32 %v1324, %v1548
  %v1550 = vpop.f32.mrb[0].mxu0
  %1551 = vmatprep.mubr.bf16.mxu0 %v428
  %1552 = vmatmul.mubr.bf16.gmra.mrb[0].mxu0 %v427
  %v1553 = vpop.f32.mrb[0].mxu0
  %v1554 = vadd.f32 %v1329, %v1553
  %v1555 = vpop.f32.mrb[0].mxu0
  %v1556 = vpop.f32.mrb[0].mxu0
  %v1557 = vadd.f32 %v1332, %v1556
  %v1558 = vpop.f32.mrb[0].mxu0
  %1559 = vmatprep.mubr.bf16.mxu0 %v435
  %1560 = vmatmul.mubr.bf16.gmra.mrb[0].mxu0 %v434
  %v1561 = vpop.f32.mrb[0].mxu0
  %v1562 = vadd.f32 %v1337, %v1561
  %v1563 = vpop.f32.mrb[0].mxu0
  %v1564 = vpop.f32.mrb[0].mxu0
  %v1565 = vadd.f32 %v1340, %v1564
  %v1566 = vpop.f32.mrb[0].mxu0
  %1567 = vmatprep.mubr.bf16.mxu0 %v442
  %1568 = vmatmul.mubr.bf16.gmra.mrb[0].mxu0 %v441
  %v1569 = vpop.f32.mrb[0].mxu0
  %v1570 = vadd.f32 %v1345, %v1569
  %v1571 = vpop.f32.mrb[0].mxu0
  %v1572 = vpop.f32.mrb[0].mxu0
  %v1573 = vadd.f32 %v1348, %v1572
  %v1574 = vpop.f32.mrb[0].mxu0
  %1575 = vmatprep.mubr.bf16.mxu0 %v449
  %1576 = vmatmul.mubr.bf16.gmra.mrb[0].mxu0 %v448
  %v1577 = vpop.f32.mrb[0].mxu0
  %v1578 = vadd.f32 %v1353, %v1577
  %v1579 = vpop.f32.mrb[0].mxu0
  %v1580 = vpop.f32.mrb[0].mxu0
  %v1581 = vadd.f32 %v1356, %v1580
  %v1582 = vpop.f32.mrb[0].mxu0
  %1583 = vmatprep.mubr.bf16.mxu0 %v456
  %1584 = vmatmul.mubr.bf16.gmra.mrb[0].mxu0 %v455
  %v1585 = vpop.f32.mrb[0].mxu0
  %v1586 = vadd.f32 %v1361, %v1585
  %v1587 = vpop.f32.mrb[0].mxu0
  %v1588 = vpop.f32.mrb[0].mxu0
  %v1589 = vadd.f32 %v1364, %v1588
  %v1590 = vpop.f32.mrb[0].mxu0
  %1591 = vmatprep.mubr.bf16.mxu0 %v463
  %1592 = vmatmul.mubr.bf16.gmra.mrb[0].mxu0 %v462
  %v1593 = vpop.f32.mrb[0].mxu0
  %v1594 = vadd.f32 %v1369, %v1593
  %v1595 = vpop.f32.mrb[0].mxu0
  %v1596 = vpop.f32.mrb[0].mxu0
  %v1597 = vadd.f32 %v1372, %v1596
  %v1598 = vpop.f32.mrb[0].mxu0
  %1599 = vmatprep.mubr.bf16.mxu0 %v470
  %1600 = vmatmul.mubr.bf16.gmra.mrb[0].mxu0 %v469
  %v1601 = vpop.f32.mrb[0].mxu0
  %v1602 = vadd.f32 %v1377, %v1601
  %v1603 = vpop.f32.mrb[0].mxu0
  %v1604 = vpop.f32.mrb[0].mxu0
  %v1605 = vadd.f32 %v1380, %v1604
  %v1606 = vpop.f32.mrb[0].mxu0
  %1607 = vmatprep.mubr.bf16.mxu0 %v477
  %1608 = vmatmul.mubr.bf16.gmra.mrb[0].mxu0 %v476
  %v1609 = vpop.f32.mrb[0].mxu0
  %v1610 = vadd.f32 %v1385, %v1609
  %v1611 = vpop.f32.mrb[0].mxu0
  %v1612 = vpop.f32.mrb[0].mxu0
  %v1613 = vadd.f32 %v1388, %v1612
  %v1614 = vpop.f32.mrb[0].mxu0
  %1615 = vmatprep.mubr.bf16.mxu0 %v484
  %1616 = vmatmul.mubr.bf16.gmra.mrb[0].mxu0 %v483
  %v1617 = vpop.f32.mrb[0].mxu0
  %v1618 = vadd.f32 %v1393, %v1617
  %v1619 = vpop.f32.mrb[0].mxu0
  %v1620 = vpop.f32.mrb[0].mxu0
  %v1621 = vadd.f32 %v1396, %v1620
  %v1622 = vpop.f32.mrb[0].mxu0
  %1623 = vmatprep.mubr.bf16.mxu0 %v491
  %1624 = vmatmul.mubr.bf16.gmra.mrb[0].mxu0 %v490
  %v1625 = vpop.f32.mrb[0].mxu0
  %v1626 = vadd.f32 %v1401, %v1625
  %v1627 = vpop.f32.mrb[0].mxu0
  %v1628 = vpop.f32.mrb[0].mxu0
  %v1629 = vadd.f32 %v1404, %v1628
  %v1630 = vpop.f32.mrb[0].mxu0
  %1631 = vmatprep.mubr.bf16.mxu0 %v498
  %1632 = vmatmul.mubr.bf16.gmra.mrb[0].mxu0 %v497
  %v1633 = vpop.f32.mrb[0].mxu0
  %v1634 = vadd.f32 %v1409, %v1633
  %v1635 = vpop.f32.mrb[0].mxu0
  %v1636 = vpop.f32.mrb[0].mxu0
  %v1637 = vadd.f32 %v1412, %v1636
  %v1638 = vpop.f32.mrb[0].mxu0
  %1639 = vmatprep.mubr.bf16.mxu0 %v505
  %1640 = vmatmul.mubr.bf16.gmra.mrb[0].mxu0 %v504
  %v1641 = vpop.f32.mrb[0].mxu0
  %v1642 = vadd.f32 %v1417, %v1641
  %v1643 = vpop.f32.mrb[0].mxu0
  %v1644 = vpop.f32.mrb[0].mxu0
  %v1645 = vadd.f32 %v1420, %v1644
  %v1646 = vpop.f32.mrb[0].mxu0
  %1647 = vmatprep.mubr.bf16.mxu0 %v512
  %1648 = vmatmul.mubr.bf16.gmra.mrb[0].mxu0 %v511
  %v1649 = vpop.f32.mrb[0].mxu0
  %v1650 = vadd.f32 %v1425, %v1649
  %v1651 = vpop.f32.mrb[0].mxu0
  %v1652 = vpop.f32.mrb[0].mxu0
  %v1653 = vadd.f32 %v1428, %v1652
  %v1654 = vpop.f32.mrb[0].mxu0
  %1655 = vmatprep.mubr.bf16.mxu0 %v519
  %1656 = vmatmul.mubr.bf16.gmra.mrb[0].mxu0 %v518
  %v1657 = vpop.f32.mrb[0].mxu0
  %v1658 = vadd.f32 %v1433, %v1657
  %v1659 = vpop.f32.mrb[0].mxu0
  %v1660 = vpop.f32.mrb[0].mxu0
  %v1661 = vadd.f32 %v1436, %v1660
  %v1662 = vpop.f32.mrb[0].mxu0
  %1663 = vmatprep.mubr.bf16.mxu0 %v526
  %1664 = vmatmul.mubr.bf16.gmra.mrb[0].mxu0 %v525
  %v1665 = vpop.f32.mrb[0].mxu0
  %v1666 = vadd.f32 %v1441, %v1665
  %v1667 = vpop.f32.mrb[0].mxu0
  %v1668 = vpop.f32.mrb[0].mxu0
  %v1669 = vadd.f32 %v1444, %v1668
  %v1670 = vpop.f32.mrb[0].mxu0
  %1671 = vmatprep.mubr.bf16.mxu0 %v533
  %1672 = vmatmul.mubr.bf16.gmra.mrb[0].mxu0 %v532
  %v1673 = vpop.f32.mrb[0].mxu0
  %v1674 = vadd.f32 %v1449, %v1673
  %v1675 = vpop.f32.mrb[0].mxu0
  %v1676 = vpop.f32.mrb[0].mxu0
  %v1677 = vadd.f32 %v1452, %v1676
  %v1678 = vpop.f32.mrb[0].mxu0
  %1679 = vmatprep.mubr.bf16.mxu0 %v540
  %1680 = vmatmul.mubr.bf16.gmra.mrb[0].mxu0 %v539
  %v1681 = vpop.f32.mrb[0].mxu0
  %v1682 = vadd.f32 %v1457, %v1681
  %v1683 = vpop.f32.mrb[0].mxu0
  %v1684 = vpop.f32.mrb[0].mxu0
  %v1685 = vadd.f32 %v1460, %v1684
  %v1686 = vpop.f32.mrb[0].mxu0
  %1687 = vmatprep.mubr.bf16.mxu0 %v547
  %1688 = vmatmul.mubr.bf16.gmra.mrb[0].mxu0 %v546
  %v1689 = vpop.f32.mrb[0].mxu0
  %v1690 = vadd.f32 %v1465, %v1689
  %v1691 = vpop.f32.mrb[0].mxu0
  %v1692 = vpop.f32.mrb[0].mxu0
  %v1693 = vadd.f32 %v1468, %v1692
  %v1694 = vpop.f32.mrb[0].mxu0
  %1695 = vdwg.mxu0
  %1696 = vmatprep.subr.bf16.mxu0 0
  %1697 = vmatpush1.bf16.msra.mxu0 %v898
  %1698 = vmatprep.subr.bf16.mxu0 0
  %1699 = vmatpush1.bf16.msra.mxu0 0
  %1700 = vmatprep.subr.bf16.mxu0 0
  %1701 = vmatpush1.bf16.msra.mxu0 0
  %1702 = vmatprep.subr.bf16.mxu0 0
  %1703 = vmatpush1.bf16.msra.mxu0 0
  %1704 = vmatprep.subr.bf16.mxu0 0
  %1705 = vmatpush1.bf16.msra.mxu0 0
  %1706 = vmatprep.subr.bf16.mxu0 0
  %1707 = vmatpush1.bf16.msra.mxu0 0
  %1708 = vmatprep.subr.bf16.mxu0 0
  %1709 = vmatpush1.bf16.msra.mxu0 0
  %1710 = vmatprep.subr.bf16.mxu0 0
  %1711 = vmatpush1.bf16.msra.mxu0 0
  %1712 = vmatprep.subr.bf16.mxu0 0
  %1713 = vmatpush1.bf16.msra.mxu0 0
  %1714 = vmatprep.subr.bf16.mxu0 0
  %1715 = vmatpush1.bf16.msra.mxu0 0
  %1716 = vmatprep.subr.bf16.mxu0 0
  %1717 = vmatpush1.bf16.msra.mxu0 0
  %1718 = vmatprep.subr.bf16.mxu0 0
  %1719 = vmatpush1.bf16.msra.mxu0 0
  %1720 = vmatprep.subr.bf16.mxu0 0
  %1721 = vmatpush1.bf16.msra.mxu0 0
  %1722 = vmatprep.subr.bf16.mxu0 0
  %1723 = vmatpush1.bf16.msra.mxu0 0
  %1724 = vmatprep.subr.bf16.mxu0 0
  %1725 = vmatpush1.bf16.msra.mxu0 0
  %1726 = vmatprep.subr.bf16.mxu0 0
  %1727 = vmatpush1.bf16.msra.mxu0 0
  %1728 = vmatprep.mubr.bf16.mxu0 0
  %1729 = vmatmul.mubr.bf16.gmra.mrb[0].mxu0 %v950
  %v1730 = vpop.f32.mrb[0].mxu0
  %v1731 = vadd.f32 %v1506, %v1730
  %v1732 = vpop.f32.mrb[0].mxu0
  %v1733 = vpop.f32.mrb[0].mxu0
  %v1734 = vadd.f32 %v1509, %v1733
  %v1735 = vpop.f32.mrb[0].mxu0
  %1736 = vmatprep.mubr.bf16.mxu0 0
  %1737 = vmatmul.mubr.bf16.gmra.mrb[0].mxu0 %v953
  %v1738 = vpop.f32.mrb[0].mxu0
  %v1739 = vadd.f32 %v1514, %v1738
  %v1740 = vpop.f32.mrb[0].mxu0
  %v1741 = vpop.f32.mrb[0].mxu0
  %v1742 = vadd.f32 %v1517, %v1741
  %v1743 = vpop.f32.mrb[0].mxu0
  %1744 = vmatprep.mubr.bf16.mxu0 0
  %1745 = vmatmul.mubr.bf16.gmra.mrb[0].mxu0 %v956
  %v1746 = vpop.f32.mrb[0].mxu0
  %v1747 = vadd.f32 %v1522, %v1746
  %v1748 = vpop.f32.mrb[0].mxu0
  %v1749 = vpop.f32.mrb[0].mxu0
  %v1750 = vadd.f32 %v1525, %v1749
  %v1751 = vpop.f32.mrb[0].mxu0
  %1752 = vmatprep.mubr.bf16.mxu0 0
  %1753 = vmatmul.mubr.bf16.gmra.mrb[0].mxu0 %v959
  %v1754 = vpop.f32.mrb[0].mxu0
  %v1755 = vadd.f32 %v1530, %v1754
  %v1756 = vpop.f32.mrb[0].mxu0
  %v1757 = vpop.f32.mrb[0].mxu0
  %v1758 = vadd.f32 %v1533, %v1757
  %v1759 = vpop.f32.mrb[0].mxu0
  %1760 = vmatprep.mubr.bf16.mxu0 0
  %1761 = vmatmul.mubr.bf16.gmra.mrb[0].mxu0 %v962
  %v1762 = vpop.f32.mrb[0].mxu0
  %v1763 = vadd.f32 %v1538, %v1762
  %v1764 = vpop.f32.mrb[0].mxu0
  %v1765 = vpop.f32.mrb[0].mxu0
  %v1766 = vadd.f32 %v1541, %v1765
  %v1767 = vpop.f32.mrb[0].mxu0
  %1768 = vmatprep.mubr.bf16.mxu0 0
  %1769 = vmatmul.mubr.bf16.gmra.mrb[0].mxu0 %v965
  %v1770 = vpop.f32.mrb[0].mxu0
  %v1771 = vadd.f32 %v1546, %v1770
  %v1772 = vpop.f32.mrb[0].mxu0
  %v1773 = vpop.f32.mrb[0].mxu0
  %v1774 = vadd.f32 %v1549, %v1773
  %v1775 = vpop.f32.mrb[0].mxu0
  %1776 = vmatprep.mubr.bf16.mxu0 0
  %1777 = vmatmul.mubr.bf16.gmra.mrb[0].mxu0 %v968
  %v1778 = vpop.f32.mrb[0].mxu0
  %v1779 = vadd.f32 %v1554, %v1778
  %v1780 = vpop.f32.mrb[0].mxu0
  %v1781 = vpop.f32.mrb[0].mxu0
  %v1782 = vadd.f32 %v1557, %v1781
  %v1783 = vpop.f32.mrb[0].mxu0
  %1784 = vmatprep.mubr.bf16.mxu0 0
  %1785 = vmatmul.mubr.bf16.gmra.mrb[0].mxu0 %v971
  %v1786 = vpop.f32.mrb[0].mxu0
  %v1787 = vadd.f32 %v1562, %v1786
  %v1788 = vpop.f32.mrb[0].mxu0
  %v1789 = vpop.f32.mrb[0].mxu0
  %v1790 = vadd.f32 %v1565, %v1789
  %v1791 = vpop.f32.mrb[0].mxu0
  %1792 = vmatprep.mubr.bf16.mxu0 0
  %1793 = vmatmul.mubr.bf16.gmra.mrb[0].mxu0 %v974
  %v1794 = vpop.f32.mrb[0].mxu0
  %v1795 = vadd.f32 %v1570, %v1794
  %v1796 = vpop.f32.mrb[0].mxu0
  %v1797 = vpop.f32.mrb[0].mxu0
  %v1798 = vadd.f32 %v1573, %v1797
  %v1799 = vpop.f32.mrb[0].mxu0
  %1800 = vmatprep.mubr.bf16.mxu0 0
  %1801 = vmatmul.mubr.bf16.gmra.mrb[0].mxu0 %v977
  %v1802 = vpop.f32.mrb[0].mxu0
  %v1803 = vadd.f32 %v1578, %v1802
  %v1804 = vpop.f32.mrb[0].mxu0
  %v1805 = vpop.f32.mrb[0].mxu0
  %v1806 = vadd.f32 %v1581, %v1805
  %v1807 = vpop.f32.mrb[0].mxu0
  %1808 = vmatprep.mubr.bf16.mxu0 0
  %1809 = vmatmul.mubr.bf16.gmra.mrb[0].mxu0 %v980
  %v1810 = vpop.f32.mrb[0].mxu0
  %v1811 = vadd.f32 %v1586, %v1810
  %v1812 = vpop.f32.mrb[0].mxu0
  %v1813 = vpop.f32.mrb[0].mxu0
  %v1814 = vadd.f32 %v1589, %v1813
  %v1815 = vpop.f32.mrb[0].mxu0
  %1816 = vmatprep.mubr.bf16.mxu0 0
  %1817 = vmatmul.mubr.bf16.gmra.mrb[0].mxu0 %v983
  %v1818 = vpop.f32.mrb[0].mxu0
  %v1819 = vadd.f32 %v1594, %v1818
  %v1820 = vpop.f32.mrb[0].mxu0
  %v1821 = vpop.f32.mrb[0].mxu0
  %v1822 = vadd.f32 %v1597, %v1821
  %v1823 = vpop.f32.mrb[0].mxu0
  %1824 = vmatprep.mubr.bf16.mxu0 0
  %1825 = vmatmul.mubr.bf16.gmra.mrb[0].mxu0 %v986
  %v1826 = vpop.f32.mrb[0].mxu0
  %v1827 = vadd.f32 %v1602, %v1826
  %v1828 = vpop.f32.mrb[0].mxu0
  %v1829 = vpop.f32.mrb[0].mxu0
  %v1830 = vadd.f32 %v1605, %v1829
  %v1831 = vpop.f32.mrb[0].mxu0
  %1832 = vmatprep.mubr.bf16.mxu0 0
  %1833 = vmatmul.mubr.bf16.gmra.mrb[0].mxu0 %v989
  %v1834 = vpop.f32.mrb[0].mxu0
  %v1835 = vadd.f32 %v1610, %v1834
  %v1836 = vpop.f32.mrb[0].mxu0
  %v1837 = vpop.f32.mrb[0].mxu0
  %v1838 = vadd.f32 %v1613, %v1837
  %v1839 = vpop.f32.mrb[0].mxu0
  %1840 = vmatprep.mubr.bf16.mxu0 0
  %1841 = vmatmul.mubr.bf16.gmra.mrb[0].mxu0 %v992
  %v1842 = vpop.f32.mrb[0].mxu0
  %v1843 = vadd.f32 %v1618, %v1842
  %v1844 = vpop.f32.mrb[0].mxu0
  %v1845 = vpop.f32.mrb[0].mxu0
  %v1846 = vadd.f32 %v1621, %v1845
  %v1847 = vpop.f32.mrb[0].mxu0
  %1848 = vmatprep.mubr.bf16.mxu0 0
  %1849 = vmatmul.mubr.bf16.gmra.mrb[0].mxu0 %v995
  %v1850 = vpop.f32.mrb[0].mxu0
  %v1851 = vadd.f32 %v1626, %v1850
  %v1852 = vpop.f32.mrb[0].mxu0
  %v1853 = vpop.f32.mrb[0].mxu0
  %v1854 = vadd.f32 %v1629, %v1853
  %v1855 = vpop.f32.mrb[0].mxu0
  %1856 = vmatprep.mubr.bf16.mxu0 0
  %1857 = vmatmul.mubr.bf16.gmra.mrb[0].mxu0 %v998
  %v1858 = vpop.f32.mrb[0].mxu0
  %v1859 = vadd.f32 %v1634, %v1858
  %v1860 = vpop.f32.mrb[0].mxu0
  %v1861 = vpop.f32.mrb[0].mxu0
  %v1862 = vadd.f32 %v1637, %v1861
  %v1863 = vpop.f32.mrb[0].mxu0
  %1864 = vmatprep.mubr.bf16.mxu0 0
  %1865 = vmatmul.mubr.bf16.gmra.mrb[0].mxu0 %v1001
  %v1866 = vpop.f32.mrb[0].mxu0
  %v1867 = vadd.f32 %v1642, %v1866
  %v1868 = vpop.f32.mrb[0].mxu0
  %v1869 = vpop.f32.mrb[0].mxu0
  %v1870 = vadd.f32 %v1645, %v1869
  %v1871 = vpop.f32.mrb[0].mxu0
  %1872 = vmatprep.mubr.bf16.mxu0 0
  %1873 = vmatmul.mubr.bf16.gmra.mrb[0].mxu0 %v1004
  %v1874 = vpop.f32.mrb[0].mxu0
  %v1875 = vadd.f32 %v1650, %v1874
  %v1876 = vpop.f32.mrb[0].mxu0
  %v1877 = vpop.f32.mrb[0].mxu0
  %v1878 = vadd.f32 %v1653, %v1877
  %v1879 = vpop.f32.mrb[0].mxu0
  %1880 = vmatprep.mubr.bf16.mxu0 0
  %1881 = vmatmul.mubr.bf16.gmra.mrb[0].mxu0 %v1007
  %v1882 = vpop.f32.mrb[0].mxu0
  %v1883 = vadd.f32 %v1658, %v1882
  %v1884 = vpop.f32.mrb[0].mxu0
  %v1885 = vpop.f32.mrb[0].mxu0
  %v1886 = vadd.f32 %v1661, %v1885
  %v1887 = vpop.f32.mrb[0].mxu0
  %1888 = vmatprep.mubr.bf16.mxu0 0
  %1889 = vmatmul.mubr.bf16.gmra.mrb[0].mxu0 %v1010
  %v1890 = vpop.f32.mrb[0].mxu0
  %v1891 = vadd.f32 %v1666, %v1890
  %v1892 = vpop.f32.mrb[0].mxu0
  %v1893 = vpop.f32.mrb[0].mxu0
  %v1894 = vadd.f32 %v1669, %v1893
  %v1895 = vpop.f32.mrb[0].mxu0
  %1896 = vmatprep.mubr.bf16.mxu0 0
  %1897 = vmatmul.mubr.bf16.gmra.mrb[0].mxu0 %v1013
  %v1898 = vpop.f32.mrb[0].mxu0
  %v1899 = vadd.f32 %v1674, %v1898
  %v1900 = vpop.f32.mrb[0].mxu0
  %v1901 = vpop.f32.mrb[0].mxu0
  %v1902 = vadd.f32 %v1677, %v1901
  %v1903 = vpop.f32.mrb[0].mxu0
  %1904 = vmatprep.mubr.bf16.mxu0 0
  %1905 = vmatmul.mubr.bf16.gmra.mrb[0].mxu0 %v1016
  %v1906 = vpop.f32.mrb[0].mxu0
  %v1907 = vadd.f32 %v1682, %v1906
  %v1908 = vpop.f32.mrb[0].mxu0
  %v1909 = vpop.f32.mrb[0].mxu0
  %v1910 = vadd.f32 %v1685, %v1909
  %v1911 = vpop.f32.mrb[0].mxu0
  %1912 = vmatprep.mubr.bf16.mxu0 0
  %1913 = vmatmul.mubr.bf16.gmra.mrb[0].mxu0 %v1019
  %v1914 = vpop.f32.mrb[0].mxu0
  %v1915 = vadd.f32 %v1690, %v1914
  %v1916 = vpop.f32.mrb[0].mxu0
  %v1917 = vpop.f32.mrb[0].mxu0
  %v1918 = vadd.f32 %v1693, %v1917
  %v1919 = vpop.f32.mrb[0].mxu0
  %1920 = vdwg.mxu0
  %v1921 = vmax.f32 %v1731, 0.0
  %v1922 = vmax.f32 %v1734, 0.0
  %v1923 = vmax.f32 %v1739, 0.0
  %v1924 = vmax.f32 %v1742, 0.0
  %v1925 = vmax.f32 %v1747, 0.0
  %v1926 = vmax.f32 %v1750, 0.0
  %v1927 = vmax.f32 %v1755, 0.0
  %v1928 = vmax.f32 %v1758, 0.0
  %v1929 = vmax.f32 %v1763, 0.0
  %v1930 = vmax.f32 %v1766, 0.0
  %v1931 = vmax.f32 %v1771, 0.0
  %v1932 = vmax.f32 %v1774, 0.0
  %v1933 = vmax.f32 %v1779, 0.0
  %v1934 = vmax.f32 %v1782, 0.0
  %v1935 = vmax.f32 %v1787, 0.0
  %v1936 = vmax.f32 %v1790, 0.0
  %v1937 = vmax.f32 %v1795, 0.0
  %v1938 = vmax.f32 %v1798, 0.0
  %v1939 = vmax.f32 %v1803, 0.0
  %v1940 = vmax.f32 %v1806, 0.0
  %v1941 = vmax.f32 %v1811, 0.0
  %v1942 = vmax.f32 %v1814, 0.0
  %v1943 = vmax.f32 %v1819, 0.0
  %v1944 = vmax.f32 %v1822, 0.0
  %v1945 = vmax.f32 %v1827, 0.0
  %v1946 = vmax.f32 %v1830, 0.0
  %v1947 = vmax.f32 %v1835, 0.0
  %v1948 = vmax.f32 %v1838, 0.0
  %v1949 = vmax.f32 %v1843, 0.0
  %v1950 = vmax.f32 %v1846, 0.0
  %v1951 = vmax.f32 %v1851, 0.0
  %v1952 = vmax.f32 %v1854, 0.0
  %v1953 = vmax.f32 %v1859, 0.0
  %v1954 = vmax.f32 %v1862, 0.0
  %v1955 = vmax.f32 %v1867, 0.0
  %v1956 = vmax.f32 %v1870, 0.0
  %v1957 = vmax.f32 %v1875, 0.0
  %v1958 = vmax.f32 %v1878, 0.0
  %v1959 = vmax.f32 %v1883, 0.0
  %v1960 = vmax.f32 %v1886, 0.0
  %v1961 = vmax.f32 %v1891, 0.0
  %v1962 = vmax.f32 %v1894, 0.0
  %v1963 = vmax.f32 %v1899, 0.0
  %v1964 = vmax.f32 %v1902, 0.0
  %v1965 = vmax.f32 %v1907, 0.0
  %v1966 = vmax.f32 %v1910, 0.0
  %v1967 = vmax.f32 %v1915, 0.0
  %v1968 = vmax.f32 %v1918, 0.0
  %v1969 = vpack.c.bf16 %v1922, %v1921
  %v1970 = vpack.c.bf16 %v1924, %v1923
  %v1971 = vpack.c.bf16 %v1926, %v1925
  %v1972 = vpack.c.bf16 %v1928, %v1927
  %v1973 = vpack.c.bf16 %v1930, %v1929
  %v1974 = vpack.c.bf16 %v1932, %v1931
  %v1975 = vpack.c.bf16 %v1934, %v1933
  %v1976 = vpack.c.bf16 %v1936, %v1935
  %v1977 = vpack.c.bf16 %v1938, %v1937
  %v1978 = vpack.c.bf16 %v1940, %v1939
  %v1979 = vpack.c.bf16 %v1942, %v1941
  %v1980 = vpack.c.bf16 %v1944, %v1943
  %v1981 = vpack.c.bf16 %v1946, %v1945
  %v1982 = vpack.c.bf16 %v1948, %v1947
  %v1983 = vpack.c.bf16 %v1950, %v1949
  %v1984 = vpack.c.bf16 %v1952, %v1951
  %v1985 = vpack.c.bf16 %v1954, %v1953
  %v1986 = vpack.c.bf16 %v1956, %v1955
  %v1987 = vpack.c.bf16 %v1958, %v1957
  %v1988 = vpack.c.bf16 %v1960, %v1959
  %v1989 = vpack.c.bf16 %v1962, %v1961
  %v1990 = vpack.c.bf16 %v1964, %v1963
  %v1991 = vpack.c.bf16 %v1966, %v1965
  %v1992 = vpack.c.bf16 %v1968, %v1967
  %v1993 = vld [vmem:[%s3] sm:$0xff]
  %v1994 = vld [vmem:[%s3 + $0x8] sm:$0xff]
  %v1995 = vld [vmem:[%s3 + $0x10] sm:$0xff]
  %v1996 = vld [vmem:[%s3 + $0x18] sm:$0xff]
  %v1997 = vld [vmem:[%s3 + $0x20] sm:$0xff]
  %v1998 = vld [vmem:[%s3 + $0x28] sm:$0xff]
  %v1999 = vld [vmem:[%s3 + $0x30] sm:$0xff]
  %v2000 = vld [vmem:[%s3 + $0x38] sm:$0xff]
  %v2001 = vld [vmem:[%s3 + $0x40] sm:$0xff]
  %v2002 = vld [vmem:[%s3 + $0x48] sm:$0xff]
  %v2003 = vld [vmem:[%s3 + $0x50] sm:$0xff]
  %v2004 = vld [vmem:[%s3 + $0x58] sm:$0xff]
  %v2005 = vld [vmem:[%s3 + $0x60] sm:$0xff]
  %v2006 = vld [vmem:[%s3 + $0x68] sm:$0xff]
  %v2007 = vld [vmem:[%s3 + $0x70] sm:$0xff]
  %v2008 = vld [vmem:[%s3 + $0x78] sm:$0xff]
  %v2009 = vld [vmem:[%s4] sm:$0x3]
  %v2011 = vlaneseq
  %v2012 = vshrl.u32 %v2011, 7
  %v2013 = vsub.s32 0, %v2012
  %v2014 = vrot.slane %v2009, %v2013
  %v2015 = vlaneseq
  %v2016 = vshrl.u32 %v2015, 7
  %v2017 = vsub.s32 1, %v2016
  %v2018 = vrot.slane %v2009, %v2017
  %v2037 = vunpack.c.l.b16 %v1993
  %v2038 = vunpack.c.h.b16 %v1993
  %v2039 = vunpack.c.l.b16 %v1994
  %v2040 = vunpack.c.h.b16 %v1994
  %v2041 = vunpack.c.l.b16 %v1995
  %v2042 = vunpack.c.h.b16 %v1995
  %v2043 = vunpack.c.l.b16 %v1996
  %v2044 = vunpack.c.h.b16 %v1996
  %v2045 = vunpack.c.l.b16 %v1997
  %v2046 = vunpack.c.h.b16 %v1997
  %v2047 = vunpack.c.l.b16 %v1998
  %v2048 = vunpack.c.h.b16 %v1998
  %v2049 = vunpack.c.l.b16 %v1999
  %v2050 = vunpack.c.h.b16 %v1999
  %v2051 = vunpack.c.l.b16 %v2000
  %v2052 = vunpack.c.h.b16 %v2000
  %v2053 = vunpack.c.l.b16 %v2001
  %v2054 = vunpack.c.h.b16 %v2001
  %v2055 = vunpack.c.l.b16 %v2002
  %v2056 = vunpack.c.h.b16 %v2002
  %v2057 = vunpack.c.l.b16 %v2003
  %v2058 = vunpack.c.h.b16 %v2003
  %v2059 = vunpack.c.l.b16 %v2004
  %v2060 = vunpack.c.h.b16 %v2004
  %v2061 = vunpack.c.l.b16 %v2005
  %v2062 = vunpack.c.h.b16 %v2005
  %v2063 = vunpack.c.l.b16 %v2006
  %v2064 = vunpack.c.h.b16 %v2006
  %v2065 = vunpack.c.l.b16 %v2007
  %v2066 = vunpack.c.h.b16 %v2007
  %v2067 = vunpack.c.l.b16 %v2008
  %v2068 = vunpack.c.h.b16 %v2008
  %v2069 = vpack.c.b16 %v2039, %v2037
  %v2070 = vpack.c.b16 %v2040, %v2038
  %v2071 = vpack.c.b16 %v2043, %v2041
  %v2072 = vpack.c.b16 %v2044, %v2042
  %v2073 = vpack.c.b16 %v2047, %v2045
  %v2074 = vpack.c.b16 %v2048, %v2046
  %v2075 = vpack.c.b16 %v2051, %v2049
  %v2076 = vpack.c.b16 %v2052, %v2050
  %v2077 = vpack.c.b16 %v2055, %v2053
  %v2078 = vpack.c.b16 %v2056, %v2054
  %v2079 = vpack.c.b16 %v2059, %v2057
  %v2080 = vpack.c.b16 %v2060, %v2058
  %v2081 = vpack.c.b16 %v2063, %v2061
  %v2082 = vpack.c.b16 %v2064, %v2062
  %v2083 = vpack.c.b16 %v2067, %v2065
  %v2084 = vpack.c.b16 %v2068, %v2066
  %2101 = vmatprep.subr.bf16.mxu0 %v2070
  %2102 = vmatpush1.bf16.msra.mxu0 %v2069
  %2103 = vmatprep.subr.bf16.mxu0 %v2072
  %2104 = vmatpush1.bf16.msra.mxu0 %v2071
  %2105 = vmatprep.subr.bf16.mxu0 %v2074
  %2106 = vmatpush1.bf16.msra.mxu0 %v2073
  %2107 = vmatprep.subr.bf16.mxu0 %v2076
  %2108 = vmatpush1.bf16.msra.mxu0 %v2075
  %2109 = vmatprep.subr.bf16.mxu0 %v2078
  %2110 = vmatpush1.bf16.msra.mxu0 %v2077
  %2111 = vmatprep.subr.bf16.mxu0 %v2080
  %2112 = vmatpush1.bf16.msra.mxu0 %v2079
  %2113 = vmatprep.subr.bf16.mxu0 %v2082
  %2114 = vmatpush1.bf16.msra.mxu0 %v2081
  %2115 = vmatprep.subr.bf16.mxu0 %v2084
  %2116 = vmatpush1.bf16.msra.mxu0 %v2083
  %2117 = vmatprep.subr.bf16.mxu0 0
  %2118 = vmatpush1.bf16.msra.mxu0 0
  %2119 = vmatprep.subr.bf16.mxu0 0
  %2120 = vmatpush1.bf16.msra.mxu0 0
  %2121 = vmatprep.subr.bf16.mxu0 0
  %2122 = vmatpush1.bf16.msra.mxu0 0
  %2123 = vmatprep.subr.bf16.mxu0 0
  %2124 = vmatpush1.bf16.msra.mxu0 0
  %2125 = vmatprep.subr.bf16.mxu0 0
  %2126 = vmatpush1.bf16.msra.mxu0 0
  %2127 = vmatprep.subr.bf16.mxu0 0
  %2128 = vmatpush1.bf16.msra.mxu0 0
  %2129 = vmatprep.subr.bf16.mxu0 0
  %2130 = vmatpush1.bf16.msra.mxu0 0
  %2131 = vmatprep.subr.bf16.mxu0 0
  %2132 = vmatpush1.bf16.msra.mxu0 0
  %2133 = vmatprep.mubr.bf16.mxu0 0
  %2134 = vmatmul.mubr.bf16.gmra.mrb[0].mxu0 %v1969
  %v2135 = vpop.f32.mrb[0].mxu0
  %v2136 = vadd.f32 %v2014, %v2135
  %v2137 = vpop.f32.mrb[0].mxu0
  %v2138 = vadd.f32 %v2018, %v2137
  %v2139 = vpop.f32.mrb[0].mxu0
  %v2140 = vadd.f32 %v2014, %v2139
  %v2141 = vpop.f32.mrb[0].mxu0
  %v2142 = vadd.f32 %v2018, %v2141
  %2143 = vmatprep.mubr.bf16.mxu0 0
  %2144 = vmatmul.mubr.bf16.gmra.mrb[0].mxu0 %v1970
  %v2145 = vpop.f32.mrb[0].mxu0
  %v2146 = vadd.f32 %v2014, %v2145
  %v2147 = vpop.f32.mrb[0].mxu0
  %v2148 = vadd.f32 %v2018, %v2147
  %v2149 = vpop.f32.mrb[0].mxu0
  %v2150 = vadd.f32 %v2014, %v2149
  %v2151 = vpop.f32.mrb[0].mxu0
  %v2152 = vadd.f32 %v2018, %v2151
  %2153 = vmatprep.mubr.bf16.mxu0 0
  %2154 = vmatmul.mubr.bf16.gmra.mrb[0].mxu0 %v1971
  %v2155 = vpop.f32.mrb[0].mxu0
  %v2156 = vadd.f32 %v2014, %v2155
  %v2157 = vpop.f32.mrb[0].mxu0
  %v2158 = vadd.f32 %v2018, %v2157
  %v2159 = vpop.f32.mrb[0].mxu0
  %v2160 = vadd.f32 %v2014, %v2159
  %v2161 = vpop.f32.mrb[0].mxu0
  %v2162 = vadd.f32 %v2018, %v2161
  %2163 = vmatprep.mubr.bf16.mxu0 0
  %2164 = vmatmul.mubr.bf16.gmra.mrb[0].mxu0 %v1972
  %v2165 = vpop.f32.mrb[0].mxu0
  %v2166 = vadd.f32 %v2014, %v2165
  %v2167 = vpop.f32.mrb[0].mxu0
  %v2168 = vadd.f32 %v2018, %v2167
  %v2169 = vpop.f32.mrb[0].mxu0
  %v2170 = vadd.f32 %v2014, %v2169
  %v2171 = vpop.f32.mrb[0].mxu0
  %v2172 = vadd.f32 %v2018, %v2171
  %2173 = vmatprep.mubr.bf16.mxu0 0
  %2174 = vmatmul.mubr.bf16.gmra.mrb[0].mxu0 %v1973
  %v2175 = vpop.f32.mrb[0].mxu0
  %v2176 = vadd.f32 %v2014, %v2175
  %v2177 = vpop.f32.mrb[0].mxu0
  %v2178 = vadd.f32 %v2018, %v2177
  %v2179 = vpop.f32.mrb[0].mxu0
  %v2180 = vadd.f32 %v2014, %v2179
  %v2181 = vpop.f32.mrb[0].mxu0
  %v2182 = vadd.f32 %v2018, %v2181
  %2183 = vmatprep.mubr.bf16.mxu0 0
  %2184 = vmatmul.mubr.bf16.gmra.mrb[0].mxu0 %v1974
  %v2185 = vpop.f32.mrb[0].mxu0
  %v2186 = vadd.f32 %v2014, %v2185
  %v2187 = vpop.f32.mrb[0].mxu0
  %v2188 = vadd.f32 %v2018, %v2187
  %v2189 = vpop.f32.mrb[0].mxu0
  %v2190 = vadd.f32 %v2014, %v2189
  %v2191 = vpop.f32.mrb[0].mxu0
  %v2192 = vadd.f32 %v2018, %v2191
  %2193 = vmatprep.mubr.bf16.mxu0 0
  %2194 = vmatmul.mubr.bf16.gmra.mrb[0].mxu0 %v1975
  %v2195 = vpop.f32.mrb[0].mxu0
  %v2196 = vadd.f32 %v2014, %v2195
  %v2197 = vpop.f32.mrb[0].mxu0
  %v2198 = vadd.f32 %v2018, %v2197
  %v2199 = vpop.f32.mrb[0].mxu0
  %v2200 = vadd.f32 %v2014, %v2199
  %v2201 = vpop.f32.mrb[0].mxu0
  %v2202 = vadd.f32 %v2018, %v2201
  %2203 = vmatprep.mubr.bf16.mxu0 0
  %2204 = vmatmul.mubr.bf16.gmra.mrb[0].mxu0 %v1976
  %v2205 = vpop.f32.mrb[0].mxu0
  %v2206 = vadd.f32 %v2014, %v2205
  %v2207 = vpop.f32.mrb[0].mxu0
  %v2208 = vadd.f32 %v2018, %v2207
  %v2209 = vpop.f32.mrb[0].mxu0
  %v2210 = vadd.f32 %v2014, %v2209
  %v2211 = vpop.f32.mrb[0].mxu0
  %v2212 = vadd.f32 %v2018, %v2211
  %2213 = vmatprep.mubr.bf16.mxu0 0
  %2214 = vmatmul.mubr.bf16.gmra.mrb[0].mxu0 %v1977
  %v2215 = vpop.f32.mrb[0].mxu0
  %v2216 = vadd.f32 %v2014, %v2215
  %v2217 = vpop.f32.mrb[0].mxu0
  %v2218 = vadd.f32 %v2018, %v2217
  %v2219 = vpop.f32.mrb[0].mxu0
  %v2220 = vadd.f32 %v2014, %v2219
  %v2221 = vpop.f32.mrb[0].mxu0
  %v2222 = vadd.f32 %v2018, %v2221
  %2223 = vmatprep.mubr.bf16.mxu0 0
  %2224 = vmatmul.mubr.bf16.gmra.mrb[0].mxu0 %v1978
  %v2225 = vpop.f32.mrb[0].mxu0
  %v2226 = vadd.f32 %v2014, %v2225
  %v2227 = vpop.f32.mrb[0].mxu0
  %v2228 = vadd.f32 %v2018, %v2227
  %v2229 = vpop.f32.mrb[0].mxu0
  %v2230 = vadd.f32 %v2014, %v2229
  %v2231 = vpop.f32.mrb[0].mxu0
  %v2232 = vadd.f32 %v2018, %v2231
  %2233 = vmatprep.mubr.bf16.mxu0 0
  %2234 = vmatmul.mubr.bf16.gmra.mrb[0].mxu0 %v1979
  %v2235 = vpop.f32.mrb[0].mxu0
  %v2236 = vadd.f32 %v2014, %v2235
  %v2237 = vpop.f32.mrb[0].mxu0
  %v2238 = vadd.f32 %v2018, %v2237
  %v2239 = vpop.f32.mrb[0].mxu0
  %v2240 = vadd.f32 %v2014, %v2239
  %v2241 = vpop.f32.mrb[0].mxu0
  %v2242 = vadd.f32 %v2018, %v2241
  %2243 = vmatprep.mubr.bf16.mxu0 0
  %2244 = vmatmul.mubr.bf16.gmra.mrb[0].mxu0 %v1980
  %v2245 = vpop.f32.mrb[0].mxu0
  %v2246 = vadd.f32 %v2014, %v2245
  %v2247 = vpop.f32.mrb[0].mxu0
  %v2248 = vadd.f32 %v2018, %v2247
  %v2249 = vpop.f32.mrb[0].mxu0
  %v2250 = vadd.f32 %v2014, %v2249
  %v2251 = vpop.f32.mrb[0].mxu0
  %v2252 = vadd.f32 %v2018, %v2251
  %2253 = vmatprep.mubr.bf16.mxu0 0
  %2254 = vmatmul.mubr.bf16.gmra.mrb[0].mxu0 %v1981
  %v2255 = vpop.f32.mrb[0].mxu0
  %v2256 = vadd.f32 %v2014, %v2255
  %v2257 = vpop.f32.mrb[0].mxu0
  %v2258 = vadd.f32 %v2018, %v2257
  %v2259 = vpop.f32.mrb[0].mxu0
  %v2260 = vadd.f32 %v2014, %v2259
  %v2261 = vpop.f32.mrb[0].mxu0
  %v2262 = vadd.f32 %v2018, %v2261
  %2263 = vmatprep.mubr.bf16.mxu0 0
  %2264 = vmatmul.mubr.bf16.gmra.mrb[0].mxu0 %v1982
  %v2265 = vpop.f32.mrb[0].mxu0
  %v2266 = vadd.f32 %v2014, %v2265
  %v2267 = vpop.f32.mrb[0].mxu0
  %v2268 = vadd.f32 %v2018, %v2267
  %v2269 = vpop.f32.mrb[0].mxu0
  %v2270 = vadd.f32 %v2014, %v2269
  %v2271 = vpop.f32.mrb[0].mxu0
  %v2272 = vadd.f32 %v2018, %v2271
  %2273 = vmatprep.mubr.bf16.mxu0 0
  %2274 = vmatmul.mubr.bf16.gmra.mrb[0].mxu0 %v1983
  %v2275 = vpop.f32.mrb[0].mxu0
  %v2276 = vadd.f32 %v2014, %v2275
  %v2277 = vpop.f32.mrb[0].mxu0
  %v2278 = vadd.f32 %v2018, %v2277
  %v2279 = vpop.f32.mrb[0].mxu0
  %v2280 = vadd.f32 %v2014, %v2279
  %v2281 = vpop.f32.mrb[0].mxu0
  %v2282 = vadd.f32 %v2018, %v2281
  %2283 = vmatprep.mubr.bf16.mxu0 0
  %2284 = vmatmul.mubr.bf16.gmra.mrb[0].mxu0 %v1984
  %v2285 = vpop.f32.mrb[0].mxu0
  %v2286 = vadd.f32 %v2014, %v2285
  %v2287 = vpop.f32.mrb[0].mxu0
  %v2288 = vadd.f32 %v2018, %v2287
  %v2289 = vpop.f32.mrb[0].mxu0
  %v2290 = vadd.f32 %v2014, %v2289
  %v2291 = vpop.f32.mrb[0].mxu0
  %v2292 = vadd.f32 %v2018, %v2291
  %2293 = vmatprep.mubr.bf16.mxu0 0
  %2294 = vmatmul.mubr.bf16.gmra.mrb[0].mxu0 %v1985
  %v2295 = vpop.f32.mrb[0].mxu0
  %v2296 = vadd.f32 %v2014, %v2295
  %v2297 = vpop.f32.mrb[0].mxu0
  %v2298 = vadd.f32 %v2018, %v2297
  %v2299 = vpop.f32.mrb[0].mxu0
  %v2300 = vadd.f32 %v2014, %v2299
  %v2301 = vpop.f32.mrb[0].mxu0
  %v2302 = vadd.f32 %v2018, %v2301
  %2303 = vmatprep.mubr.bf16.mxu0 0
  %2304 = vmatmul.mubr.bf16.gmra.mrb[0].mxu0 %v1986
  %v2305 = vpop.f32.mrb[0].mxu0
  %v2306 = vadd.f32 %v2014, %v2305
  %v2307 = vpop.f32.mrb[0].mxu0
  %v2308 = vadd.f32 %v2018, %v2307
  %v2309 = vpop.f32.mrb[0].mxu0
  %v2310 = vadd.f32 %v2014, %v2309
  %v2311 = vpop.f32.mrb[0].mxu0
  %v2312 = vadd.f32 %v2018, %v2311
  %2313 = vmatprep.mubr.bf16.mxu0 0
  %2314 = vmatmul.mubr.bf16.gmra.mrb[0].mxu0 %v1987
  %v2315 = vpop.f32.mrb[0].mxu0
  %v2316 = vadd.f32 %v2014, %v2315
  %v2317 = vpop.f32.mrb[0].mxu0
  %v2318 = vadd.f32 %v2018, %v2317
  %v2319 = vpop.f32.mrb[0].mxu0
  %v2320 = vadd.f32 %v2014, %v2319
  %v2321 = vpop.f32.mrb[0].mxu0
  %v2322 = vadd.f32 %v2018, %v2321
  %2323 = vmatprep.mubr.bf16.mxu0 0
  %2324 = vmatmul.mubr.bf16.gmra.mrb[0].mxu0 %v1988
  %v2325 = vpop.f32.mrb[0].mxu0
  %v2326 = vadd.f32 %v2014, %v2325
  %v2327 = vpop.f32.mrb[0].mxu0
  %v2328 = vadd.f32 %v2018, %v2327
  %v2329 = vpop.f32.mrb[0].mxu0
  %v2330 = vadd.f32 %v2014, %v2329
  %v2331 = vpop.f32.mrb[0].mxu0
  %v2332 = vadd.f32 %v2018, %v2331
  %2333 = vmatprep.mubr.bf16.mxu0 0
  %2334 = vmatmul.mubr.bf16.gmra.mrb[0].mxu0 %v1989
  %v2335 = vpop.f32.mrb[0].mxu0
  %v2336 = vadd.f32 %v2014, %v2335
  %v2337 = vpop.f32.mrb[0].mxu0
  %v2338 = vadd.f32 %v2018, %v2337
  %v2339 = vpop.f32.mrb[0].mxu0
  %v2340 = vadd.f32 %v2014, %v2339
  %v2341 = vpop.f32.mrb[0].mxu0
  %v2342 = vadd.f32 %v2018, %v2341
  %2343 = vmatprep.mubr.bf16.mxu0 0
  %2344 = vmatmul.mubr.bf16.gmra.mrb[0].mxu0 %v1990
  %v2345 = vpop.f32.mrb[0].mxu0
  %v2346 = vadd.f32 %v2014, %v2345
  %v2347 = vpop.f32.mrb[0].mxu0
  %v2348 = vadd.f32 %v2018, %v2347
  %v2349 = vpop.f32.mrb[0].mxu0
  %v2350 = vadd.f32 %v2014, %v2349
  %v2351 = vpop.f32.mrb[0].mxu0
  %v2352 = vadd.f32 %v2018, %v2351
  %2353 = vmatprep.mubr.bf16.mxu0 0
  %2354 = vmatmul.mubr.bf16.gmra.mrb[0].mxu0 %v1991
  %v2355 = vpop.f32.mrb[0].mxu0
  %v2356 = vadd.f32 %v2014, %v2355
  %v2357 = vpop.f32.mrb[0].mxu0
  %v2358 = vadd.f32 %v2018, %v2357
  %v2359 = vpop.f32.mrb[0].mxu0
  %v2360 = vadd.f32 %v2014, %v2359
  %v2361 = vpop.f32.mrb[0].mxu0
  %v2362 = vadd.f32 %v2018, %v2361
  %2363 = vmatprep.mubr.bf16.mxu0 0
  %2364 = vmatmul.mubr.bf16.gmra.mrb[0].mxu0 %v1992
  %v2365 = vpop.f32.mrb[0].mxu0
  %v2366 = vadd.f32 %v2014, %v2365
  %v2367 = vpop.f32.mrb[0].mxu0
  %v2368 = vadd.f32 %v2018, %v2367
  %v2369 = vpop.f32.mrb[0].mxu0
  %v2370 = vadd.f32 %v2014, %v2369
  %v2371 = vpop.f32.mrb[0].mxu0
  %v2372 = vadd.f32 %v2018, %v2371
  %2373 = vdwg.mxu0
  %v2374 = vmax.f32 %v2136, 0.0
  %v2375 = vmax.f32 %v2138, 0.0
  %v2376 = vmax.f32 %v2140, 0.0
  %v2377 = vmax.f32 %v2142, 0.0
  %v2378 = vmax.f32 %v2146, 0.0
  %v2379 = vmax.f32 %v2148, 0.0
  %v2380 = vmax.f32 %v2150, 0.0
  %v2381 = vmax.f32 %v2152, 0.0
  %v2382 = vmax.f32 %v2156, 0.0
  %v2383 = vmax.f32 %v2158, 0.0
  %v2384 = vmax.f32 %v2160, 0.0
  %v2385 = vmax.f32 %v2162, 0.0
  %v2386 = vmax.f32 %v2166, 0.0
  %v2387 = vmax.f32 %v2168, 0.0
  %v2388 = vmax.f32 %v2170, 0.0
  %v2389 = vmax.f32 %v2172, 0.0
  %v2390 = vmax.f32 %v2176, 0.0
  %v2391 = vmax.f32 %v2178, 0.0
  %v2392 = vmax.f32 %v2180, 0.0
  %v2393 = vmax.f32 %v2182, 0.0
  %v2394 = vmax.f32 %v2186, 0.0
  %v2395 = vmax.f32 %v2188, 0.0
  %v2396 = vmax.f32 %v2190, 0.0
  %v2397 = vmax.f32 %v2192, 0.0
  %v2398 = vmax.f32 %v2196, 0.0
  %v2399 = vmax.f32 %v2198, 0.0
  %v2400 = vmax.f32 %v2200, 0.0
  %v2401 = vmax.f32 %v2202, 0.0
  %v2402 = vmax.f32 %v2206, 0.0
  %v2403 = vmax.f32 %v2208, 0.0
  %v2404 = vmax.f32 %v2210, 0.0
  %v2405 = vmax.f32 %v2212, 0.0
  %v2406 = vmax.f32 %v2216, 0.0
  %v2407 = vmax.f32 %v2218, 0.0
  %v2408 = vmax.f32 %v2220, 0.0
  %v2409 = vmax.f32 %v2222, 0.0
  %v2410 = vmax.f32 %v2226, 0.0
  %v2411 = vmax.f32 %v2228, 0.0
  %v2412 = vmax.f32 %v2230, 0.0
  %v2413 = vmax.f32 %v2232, 0.0
  %v2414 = vmax.f32 %v2236, 0.0
  %v2415 = vmax.f32 %v2238, 0.0
  %v2416 = vmax.f32 %v2240, 0.0
  %v2417 = vmax.f32 %v2242, 0.0
  %v2418 = vmax.f32 %v2246, 0.0
  %v2419 = vmax.f32 %v2248, 0.0
  %v2420 = vmax.f32 %v2250, 0.0
  %v2421 = vmax.f32 %v2252, 0.0
  %v2422 = vmax.f32 %v2256, 0.0
  %v2423 = vmax.f32 %v2258, 0.0
  %v2424 = vmax.f32 %v2260, 0.0
  %v2425 = vmax.f32 %v2262, 0.0
  %v2426 = vmax.f32 %v2266, 0.0
  %v2427 = vmax.f32 %v2268, 0.0
  %v2428 = vmax.f32 %v2270, 0.0
  %v2429 = vmax.f32 %v2272, 0.0
  %v2430 = vmax.f32 %v2276, 0.0
  %v2431 = vmax.f32 %v2278, 0.0
  %v2432 = vmax.f32 %v2280, 0.0
  %v2433 = vmax.f32 %v2282, 0.0
  %v2434 = vmax.f32 %v2286, 0.0
  %v2435 = vmax.f32 %v2288, 0.0
  %v2436 = vmax.f32 %v2290, 0.0
  %v2437 = vmax.f32 %v2292, 0.0
  %v2438 = vmax.f32 %v2296, 0.0
  %v2439 = vmax.f32 %v2298, 0.0
  %v2440 = vmax.f32 %v2300, 0.0
  %v2441 = vmax.f32 %v2302, 0.0
  %v2442 = vmax.f32 %v2306, 0.0
  %v2443 = vmax.f32 %v2308, 0.0
  %v2444 = vmax.f32 %v2310, 0.0
  %v2445 = vmax.f32 %v2312, 0.0
  %v2446 = vmax.f32 %v2316, 0.0
  %v2447 = vmax.f32 %v2318, 0.0
  %v2448 = vmax.f32 %v2320, 0.0
  %v2449 = vmax.f32 %v2322, 0.0
  %v2450 = vmax.f32 %v2326, 0.0
  %v2451 = vmax.f32 %v2328, 0.0
  %v2452 = vmax.f32 %v2330, 0.0
  %v2453 = vmax.f32 %v2332, 0.0
  %v2454 = vmax.f32 %v2336, 0.0
  %v2455 = vmax.f32 %v2338, 0.0
  %v2456 = vmax.f32 %v2340, 0.0
  %v2457 = vmax.f32 %v2342, 0.0
  %v2458 = vmax.f32 %v2346, 0.0
  %v2459 = vmax.f32 %v2348, 0.0
  %v2460 = vmax.f32 %v2350, 0.0
  %v2461 = vmax.f32 %v2352, 0.0
  %v2462 = vmax.f32 %v2356, 0.0
  %v2463 = vmax.f32 %v2358, 0.0
  %v2464 = vmax.f32 %v2360, 0.0
  %v2465 = vmax.f32 %v2362, 0.0
  %v2466 = vmax.f32 %v2366, 0.0
  %v2467 = vmax.f32 %v2368, 0.0
  %v2468 = vmax.f32 %v2370, 0.0
  %v2469 = vmax.f32 %v2372, 0.0
  %v2470 = vpack.c.bf16 %v2376, %v2374
  %v2471 = vpack.c.bf16 %v2377, %v2375
  %v2472 = vpack.c.bf16 %v2380, %v2378
  %v2473 = vpack.c.bf16 %v2381, %v2379
  %v2474 = vpack.c.bf16 %v2384, %v2382
  %v2475 = vpack.c.bf16 %v2385, %v2383
  %v2476 = vpack.c.bf16 %v2388, %v2386
  %v2477 = vpack.c.bf16 %v2389, %v2387
  %v2478 = vpack.c.bf16 %v2392, %v2390
  %v2479 = vpack.c.bf16 %v2393, %v2391
  %v2480 = vpack.c.bf16 %v2396, %v2394
  %v2481 = vpack.c.bf16 %v2397, %v2395
  %v2482 = vpack.c.bf16 %v2400, %v2398
  %v2483 = vpack.c.bf16 %v2401, %v2399
  %v2484 = vpack.c.bf16 %v2404, %v2402
  %v2485 = vpack.c.bf16 %v2405, %v2403
  %v2486 = vpack.c.bf16 %v2408, %v2406
  %v2487 = vpack.c.bf16 %v2409, %v2407
  %v2488 = vpack.c.bf16 %v2412, %v2410
  %v2489 = vpack.c.bf16 %v2413, %v2411
  %v2490 = vpack.c.bf16 %v2416, %v2414
  %v2491 = vpack.c.bf16 %v2417, %v2415
  %v2492 = vpack.c.bf16 %v2420, %v2418
  %v2493 = vpack.c.bf16 %v2421, %v2419
  %v2494 = vpack.c.bf16 %v2424, %v2422
  %v2495 = vpack.c.bf16 %v2425, %v2423
  %v2496 = vpack.c.bf16 %v2428, %v2426
  %v2497 = vpack.c.bf16 %v2429, %v2427
  %v2498 = vpack.c.bf16 %v2432, %v2430
  %v2499 = vpack.c.bf16 %v2433, %v2431
  %v2500 = vpack.c.bf16 %v2436, %v2434
  %v2501 = vpack.c.bf16 %v2437, %v2435
  %v2502 = vpack.c.bf16 %v2440, %v2438
  %v2503 = vpack.c.bf16 %v2441, %v2439
  %v2504 = vpack.c.bf16 %v2444, %v2442
  %v2505 = vpack.c.bf16 %v2445, %v2443
  %v2506 = vpack.c.bf16 %v2448, %v2446
  %v2507 = vpack.c.bf16 %v2449, %v2447
  %v2508 = vpack.c.bf16 %v2452, %v2450
  %v2509 = vpack.c.bf16 %v2453, %v2451
  %v2510 = vpack.c.bf16 %v2456, %v2454
  %v2511 = vpack.c.bf16 %v2457, %v2455
  %v2512 = vpack.c.bf16 %v2460, %v2458
  %v2513 = vpack.c.bf16 %v2461, %v2459
  %v2514 = vpack.c.bf16 %v2464, %v2462
  %v2515 = vpack.c.bf16 %v2465, %v2463
  %v2516 = vpack.c.bf16 %v2468, %v2466
  %v2517 = vpack.c.bf16 %v2469, %v2467
  %v2518 = vld [vmem:[%s5] sm:$0xff]
  %v2519 = vld [vmem:[%s5 + $0x8] sm:$0xff]
  %v2520 = vld [vmem:[%s5 + $0x10] sm:$0xff]
  %v2521 = vld [vmem:[%s5 + $0x18] sm:$0xff]
  %v2522 = vld [vmem:[%s5 + $0x20] sm:$0xff]
  %v2523 = vld [vmem:[%s5 + $0x28] sm:$0xff]
  %v2524 = vld [vmem:[%s5 + $0x30] sm:$0xff]
  %v2525 = vld [vmem:[%s5 + $0x38] sm:$0xff]
  %v2526 = vld [vmem:[%s5 + $0x40] sm:$0xff]
  %v2527 = vld [vmem:[%s5 + $0x48] sm:$0xff]
  %v2528 = vld [vmem:[%s5 + $0x50] sm:$0xff]
  %v2529 = vld [vmem:[%s5 + $0x58] sm:$0xff]
  %v2530 = vld [vmem:[%s5 + $0x60] sm:$0xff]
  %v2531 = vld [vmem:[%s5 + $0x68] sm:$0xff]
  %v2532 = vld [vmem:[%s5 + $0x70] sm:$0xff]
  %v2533 = vld [vmem:[%s5 + $0x78] sm:$0xff]
  %v2534 = vld [vmem:[%s5 + $0x80] sm:$0xff]
  %v2535 = vld [vmem:[%s5 + $0x88] sm:$0xff]
  %v2536 = vld [vmem:[%s5 + $0x90] sm:$0xff]
  %v2537 = vld [vmem:[%s5 + $0x98] sm:$0xff]
  %v2538 = vld [vmem:[%s5 + $0xa0] sm:$0xff]
  %v2539 = vld [vmem:[%s5 + $0xa8] sm:$0xff]
  %v2540 = vld [vmem:[%s5 + $0xb0] sm:$0xff]
  %v2541 = vld [vmem:[%s5 + $0xb8] sm:$0xff]
  %v2542 = vld [vmem:[%s5 + $0xc0] sm:$0xff]
  %v2543 = vld [vmem:[%s5 + $0xc8] sm:$0xff]
  %v2544 = vld [vmem:[%s5 + $0xd0] sm:$0xff]
  %v2545 = vld [vmem:[%s5 + $0xd8] sm:$0xff]
  %v2546 = vld [vmem:[%s5 + $0xe0] sm:$0xff]
  %v2547 = vld [vmem:[%s5 + $0xe8] sm:$0xff]
  %v2548 = vld [vmem:[%s5 + $0xf0] sm:$0xff]
  %v2549 = vld [vmem:[%s5 + $0xf8] sm:$0xff]
  %v2550 = vld [vmem:[%s5 + $0x100] sm:$0xff]
  %v2551 = vld [vmem:[%s5 + $0x108] sm:$0xff]
  %v2552 = vld [vmem:[%s5 + $0x110] sm:$0xff]
  %v2553 = vld [vmem:[%s5 + $0x118] sm:$0xff]
  %v2554 = vld [vmem:[%s5 + $0x120] sm:$0xff]
  %v2555 = vld [vmem:[%s5 + $0x128] sm:$0xff]
  %v2556 = vld [vmem:[%s5 + $0x130] sm:$0xff]
  %v2557 = vld [vmem:[%s5 + $0x138] sm:$0xff]
  %v2558 = vld [vmem:[%s5 + $0x140] sm:$0xff]
  %v2559 = vld [vmem:[%s5 + $0x148] sm:$0xff]
  %v2560 = vld [vmem:[%s5 + $0x150] sm:$0xff]
  %v2561 = vld [vmem:[%s5 + $0x158] sm:$0xff]
  %v2562 = vld [vmem:[%s5 + $0x160] sm:$0xff]
  %v2563 = vld [vmem:[%s5 + $0x168] sm:$0xff]
  %v2564 = vld [vmem:[%s5 + $0x170] sm:$0xff]
  %v2565 = vld [vmem:[%s5 + $0x178] sm:$0xff]
  %v2566 = vld [vmem:[%s5 + $0x180] sm:$0xff]
  %v2567 = vld [vmem:[%s5 + $0x188] sm:$0xff]
  %v2568 = vld [vmem:[%s5 + $0x190] sm:$0xff]
  %v2569 = vld [vmem:[%s5 + $0x198] sm:$0xff]
  %v2570 = vld [vmem:[%s5 + $0x1a0] sm:$0xff]
  %v2571 = vld [vmem:[%s5 + $0x1a8] sm:$0xff]
  %v2572 = vld [vmem:[%s5 + $0x1b0] sm:$0xff]
  %v2573 = vld [vmem:[%s5 + $0x1b8] sm:$0xff]
  %v2574 = vld [vmem:[%s5 + $0x1c0] sm:$0xff]
  %v2575 = vld [vmem:[%s5 + $0x1c8] sm:$0xff]
  %v2576 = vld [vmem:[%s5 + $0x1d0] sm:$0xff]
  %v2577 = vld [vmem:[%s5 + $0x1d8] sm:$0xff]
  %v2578 = vld [vmem:[%s5 + $0x1e0] sm:$0xff]
  %v2579 = vld [vmem:[%s5 + $0x1e8] sm:$0xff]
  %v2580 = vld [vmem:[%s5 + $0x1f0] sm:$0xff]
  %v2581 = vld [vmem:[%s5 + $0x1f8] sm:$0xff]
  %v2582 = vld [vmem:[%s6] sm:$0xf]
  %v2584 = vlaneseq
  %v2585 = vshrl.u32 %v2584, 7
  %v2586 = vsub.s32 0, %v2585
  %v2587 = vrot.slane %v2582, %v2586
  %v2588 = vlaneseq
  %v2589 = vshrl.u32 %v2588, 7
  %v2590 = vsub.s32 1, %v2589
  %v2591 = vrot.slane %v2582, %v2590
  %v2592 = vlaneseq
  %v2593 = vshrl.u32 %v2592, 7
  %v2594 = vsub.s32 2, %v2593
  %v2595 = vrot.slane %v2582, %v2594
  %v2596 = vlaneseq
  %v2597 = vshrl.u32 %v2596, 7
  %v2598 = vsub.s32 3, %v2597
  %v2599 = vrot.slane %v2582, %v2598
  %v2668 = vunpack.c.l.b16 %v2518
  %v2669 = vunpack.c.h.b16 %v2518
  %v2670 = vunpack.c.l.b16 %v2519
  %v2671 = vunpack.c.h.b16 %v2519
  %v2672 = vunpack.c.l.b16 %v2520
  %v2673 = vunpack.c.h.b16 %v2520
  %v2674 = vunpack.c.l.b16 %v2521
  %v2675 = vunpack.c.h.b16 %v2521
  %v2676 = vunpack.c.l.b16 %v2522
  %v2677 = vunpack.c.h.b16 %v2522
  %v2678 = vunpack.c.l.b16 %v2523
  %v2679 = vunpack.c.h.b16 %v2523
  %v2680 = vunpack.c.l.b16 %v2524
  %v2681 = vunpack.c.h.b16 %v2524
  %v2682 = vunpack.c.l.b16 %v2525
  %v2683 = vunpack.c.h.b16 %v2525
  %v2684 = vunpack.c.l.b16 %v2526
  %v2685 = vunpack.c.h.b16 %v2526
  %v2686 = vunpack.c.l.b16 %v2527
  %v2687 = vunpack.c.h.b16 %v2527
  %v2688 = vunpack.c.l.b16 %v2528
  %v2689 = vunpack.c.h.b16 %v2528
  %v2690 = vunpack.c.l.b16 %v2529
  %v2691 = vunpack.c.h.b16 %v2529
  %v2692 = vunpack.c.l.b16 %v2530
  %v2693 = vunpack.c.h.b16 %v2530
  %v2694 = vunpack.c.l.b16 %v2531
  %v2695 = vunpack.c.h.b16 %v2531
  %v2696 = vunpack.c.l.b16 %v2532
  %v2697 = vunpack.c.h.b16 %v2532
  %v2698 = vunpack.c.l.b16 %v2533
  %v2699 = vunpack.c.h.b16 %v2533
  %v2700 = vunpack.c.l.b16 %v2534
  %v2701 = vunpack.c.h.b16 %v2534
  %v2702 = vunpack.c.l.b16 %v2535
  %v2703 = vunpack.c.h.b16 %v2535
  %v2704 = vunpack.c.l.b16 %v2536
  %v2705 = vunpack.c.h.b16 %v2536
  %v2706 = vunpack.c.l.b16 %v2537
  %v2707 = vunpack.c.h.b16 %v2537
  %v2708 = vunpack.c.l.b16 %v2538
  %v2709 = vunpack.c.h.b16 %v2538
  %v2710 = vunpack.c.l.b16 %v2539
  %v2711 = vunpack.c.h.b16 %v2539
  %v2712 = vunpack.c.l.b16 %v2540
  %v2713 = vunpack.c.h.b16 %v2540
  %v2714 = vunpack.c.l.b16 %v2541
  %v2715 = vunpack.c.h.b16 %v2541
  %v2716 = vunpack.c.l.b16 %v2542
  %v2717 = vunpack.c.h.b16 %v2542
  %v2718 = vunpack.c.l.b16 %v2543
  %v2719 = vunpack.c.h.b16 %v2543
  %v2720 = vunpack.c.l.b16 %v2544
  %v2721 = vunpack.c.h.b16 %v2544
  %v2722 = vunpack.c.l.b16 %v2545
  %v2723 = vunpack.c.h.b16 %v2545
  %v2724 = vunpack.c.l.b16 %v2546
  %v2725 = vunpack.c.h.b16 %v2546
  %v2726 = vunpack.c.l.b16 %v2547
  %v2727 = vunpack.c.h.b16 %v2547
  %v2728 = vunpack.c.l.b16 %v2548
  %v2729 = vunpack.c.h.b16 %v2548
  %v2730 = vunpack.c.l.b16 %v2549
  %v2731 = vunpack.c.h.b16 %v2549
  %v2732 = vunpack.c.l.b16 %v2550
  %v2733 = vunpack.c.h.b16 %v2550
  %v2734 = vunpack.c.l.b16 %v2551
  %v2735 = vunpack.c.h.b16 %v2551
  %v2736 = vunpack.c.l.b16 %v2552
  %v2737 = vunpack.c.h.b16 %v2552
  %v2738 = vunpack.c.l.b16 %v2553
  %v2739 = vunpack.c.h.b16 %v2553
  %v2740 = vunpack.c.l.b16 %v2554
  %v2741 = vunpack.c.h.b16 %v2554
  %v2742 = vunpack.c.l.b16 %v2555
  %v2743 = vunpack.c.h.b16 %v2555
  %v2744 = vunpack.c.l.b16 %v2556
  %v2745 = vunpack.c.h.b16 %v2556
  %v2746 = vunpack.c.l.b16 %v2557
  %v2747 = vunpack.c.h.b16 %v2557
  %v2748 = vunpack.c.l.b16 %v2558
  %v2749 = vunpack.c.h.b16 %v2558
  %v2750 = vunpack.c.l.b16 %v2559
  %v2751 = vunpack.c.h.b16 %v2559
  %v2752 = vunpack.c.l.b16 %v2560
  %v2753 = vunpack.c.h.b16 %v2560
  %v2754 = vunpack.c.l.b16 %v2561
  %v2755 = vunpack.c.h.b16 %v2561
  %v2756 = vunpack.c.l.b16 %v2562
  %v2757 = vunpack.c.h.b16 %v2562
  %v2758 = vunpack.c.l.b16 %v2563
  %v2759 = vunpack.c.h.b16 %v2563
  %v2760 = vunpack.c.l.b16 %v2564
  %v2761 = vunpack.c.h.b16 %v2564
  %v2762 = vunpack.c.l.b16 %v2565
  %v2763 = vunpack.c.h.b16 %v2565
  %v2764 = vunpack.c.l.b16 %v2566
  %v2765 = vunpack.c.h.b16 %v2566
  %v2766 = vunpack.c.l.b16 %v2567
  %v2767 = vunpack.c.h.b16 %v2567
  %v2768 = vunpack.c.l.b16 %v2568
  %v2769 = vunpack.c.h.b16 %v2568
  %v2770 = vunpack.c.l.b16 %v2569
  %v2771 = vunpack.c.h.b16 %v2569
  %v2772 = vunpack.c.l.b16 %v2570
  %v2773 = vunpack.c.h.b16 %v2570
  %v2774 = vunpack.c.l.b16 %v2571
  %v2775 = vunpack.c.h.b16 %v2571
  %v2776 = vunpack.c.l.b16 %v2572
  %v2777 = vunpack.c.h.b16 %v2572
  %v2778 = vunpack.c.l.b16 %v2573
  %v2779 = vunpack.c.h.b16 %v2573
  %v2780 = vunpack.c.l.b16 %v2574
  %v2781 = vunpack.c.h.b16 %v2574
  %v2782 = vunpack.c.l.b16 %v2575
  %v2783 = vunpack.c.h.b16 %v2575
  %v2784 = vunpack.c.l.b16 %v2576
  %v2785 = vunpack.c.h.b16 %v2576
  %v2786 = vunpack.c.l.b16 %v2577
  %v2787 = vunpack.c.h.b16 %v2577
  %v2788 = vunpack.c.l.b16 %v2578
  %v2789 = vunpack.c.h.b16 %v2578
  %v2790 = vunpack.c.l.b16 %v2579
  %v2791 = vunpack.c.h.b16 %v2579
  %v2792 = vunpack.c.l.b16 %v2580
  %v2793 = vunpack.c.h.b16 %v2580
  %v2794 = vunpack.c.l.b16 %v2581
  %v2795 = vunpack.c.h.b16 %v2581
  %v2796 = vpack.c.b16 %v2672, %v2668
  %v2797 = vpack.c.b16 %v2673, %v2669
  %v2798 = vpack.c.b16 %v2674, %v2670
  %v2799 = vpack.c.b16 %v2675, %v2671
  %v2800 = vpack.c.b16 %v2680, %v2676
  %v2801 = vpack.c.b16 %v2681, %v2677
  %v2802 = vpack.c.b16 %v2682, %v2678
  %v2803 = vpack.c.b16 %v2683, %v2679
  %v2804 = vpack.c.b16 %v2688, %v2684
  %v2805 = vpack.c.b16 %v2689, %v2685
  %v2806 = vpack.c.b16 %v2690, %v2686
  %v2807 = vpack.c.b16 %v2691, %v2687
  %v2808 = vpack.c.b16 %v2696, %v2692
  %v2809 = vpack.c.b16 %v2697, %v2693
  %v2810 = vpack.c.b16 %v2698, %v2694
  %v2811 = vpack.c.b16 %v2699, %v2695
  %v2812 = vpack.c.b16 %v2704, %v2700
  %v2813 = vpack.c.b16 %v2705, %v2701
  %v2814 = vpack.c.b16 %v2706, %v2702
  %v2815 = vpack.c.b16 %v2707, %v2703
  %v2816 = vpack.c.b16 %v2712, %v2708
  %v2817 = vpack.c.b16 %v2713, %v2709
  %v2818 = vpack.c.b16 %v2714, %v2710
  %v2819 = vpack.c.b16 %v2715, %v2711
  %v2820 = vpack.c.b16 %v2720, %v2716
  %v2821 = vpack.c.b16 %v2721, %v2717
  %v2822 = vpack.c.b16 %v2722, %v2718
  %v2823 = vpack.c.b16 %v2723, %v2719
  %v2824 = vpack.c.b16 %v2728, %v2724
  %v2825 = vpack.c.b16 %v2729, %v2725
  %v2826 = vpack.c.b16 %v2730, %v2726
  %v2827 = vpack.c.b16 %v2731, %v2727
  %v2828 = vpack.c.b16 %v2736, %v2732
  %v2829 = vpack.c.b16 %v2737, %v2733
  %v2830 = vpack.c.b16 %v2738, %v2734
  %v2831 = vpack.c.b16 %v2739, %v2735
  %v2832 = vpack.c.b16 %v2744, %v2740
  %v2833 = vpack.c.b16 %v2745, %v2741
  %v2834 = vpack.c.b16 %v2746, %v2742
  %v2835 = vpack.c.b16 %v2747, %v2743
  %v2836 = vpack.c.b16 %v2752, %v2748
  %v2837 = vpack.c.b16 %v2753, %v2749
  %v2838 = vpack.c.b16 %v2754, %v2750
  %v2839 = vpack.c.b16 %v2755, %v2751
  %v2840 = vpack.c.b16 %v2760, %v2756
  %v2841 = vpack.c.b16 %v2761, %v2757
  %v2842 = vpack.c.b16 %v2762, %v2758
  %v2843 = vpack.c.b16 %v2763, %v2759
  %v2844 = vpack.c.b16 %v2768, %v2764
  %v2845 = vpack.c.b16 %v2769, %v2765
  %v2846 = vpack.c.b16 %v2770, %v2766
  %v2847 = vpack.c.b16 %v2771, %v2767
  %v2848 = vpack.c.b16 %v2776, %v2772
  %v2849 = vpack.c.b16 %v2777, %v2773
  %v2850 = vpack.c.b16 %v2778, %v2774
  %v2851 = vpack.c.b16 %v2779, %v2775
  %v2852 = vpack.c.b16 %v2784, %v2780
  %v2853 = vpack.c.b16 %v2785, %v2781
  %v2854 = vpack.c.b16 %v2786, %v2782
  %v2855 = vpack.c.b16 %v2787, %v2783
  %v2856 = vpack.c.b16 %v2792, %v2788
  %v2857 = vpack.c.b16 %v2793, %v2789
  %v2858 = vpack.c.b16 %v2794, %v2790
  %v2859 = vpack.c.b16 %v2795, %v2791
  %2924 = vmatprep.subr.bf16.mxu0 %v2797
  %2925 = vmatpush1.bf16.msra.mxu0 %v2796
  %2926 = vmatprep.subr.bf16.mxu0 %v2801
  %2927 = vmatpush1.bf16.msra.mxu0 %v2800
  %2928 = vmatprep.subr.bf16.mxu0 %v2805
  %2929 = vmatpush1.bf16.msra.mxu0 %v2804
  %2930 = vmatprep.subr.bf16.mxu0 %v2809
  %2931 = vmatpush1.bf16.msra.mxu0 %v2808
  %2932 = vmatprep.subr.bf16.mxu0 %v2813
  %2933 = vmatpush1.bf16.msra.mxu0 %v2812
  %2934 = vmatprep.subr.bf16.mxu0 %v2817
  %2935 = vmatpush1.bf16.msra.mxu0 %v2816
  %2936 = vmatprep.subr.bf16.mxu0 %v2821
  %2937 = vmatpush1.bf16.msra.mxu0 %v2820
  %2938 = vmatprep.subr.bf16.mxu0 %v2825
  %2939 = vmatpush1.bf16.msra.mxu0 %v2824
  %2940 = vmatprep.subr.bf16.mxu0 %v2829
  %2941 = vmatpush1.bf16.msra.mxu0 %v2828
  %2942 = vmatprep.subr.bf16.mxu0 %v2833
  %2943 = vmatpush1.bf16.msra.mxu0 %v2832
  %2944 = vmatprep.subr.bf16.mxu0 %v2837
  %2945 = vmatpush1.bf16.msra.mxu0 %v2836
  %2946 = vmatprep.subr.bf16.mxu0 %v2841
  %2947 = vmatpush1.bf16.msra.mxu0 %v2840
  %2948 = vmatprep.subr.bf16.mxu0 %v2845
  %2949 = vmatpush1.bf16.msra.mxu0 %v2844
  %2950 = vmatprep.subr.bf16.mxu0 %v2849
  %2951 = vmatpush1.bf16.msra.mxu0 %v2848
  %2952 = vmatprep.subr.bf16.mxu0 %v2853
  %2953 = vmatpush1.bf16.msra.mxu0 %v2852
  %2954 = vmatprep.subr.bf16.mxu0 %v2857
  %2955 = vmatpush1.bf16.msra.mxu0 %v2856
  %2956 = vmatprep.mubr.bf16.mxu0 %v2471
  %2957 = vmatmul.mubr.bf16.gmra.mrb[0].mxu0 %v2470
  %v2958 = vpop.f32.mrb[0].mxu0
  %v2959 = vadd.f32 %v2587, %v2958
  %v2960 = vpop.f32.mrb[0].mxu0
  %v2961 = vadd.f32 %v2591, %v2960
  %v2962 = vpop.f32.mrb[0].mxu0
  %v2963 = vadd.f32 %v2587, %v2962
  %v2964 = vpop.f32.mrb[0].mxu0
  %v2965 = vadd.f32 %v2591, %v2964
  %2966 = vmatprep.mubr.bf16.mxu0 %v2473
  %2967 = vmatmul.mubr.bf16.gmra.mrb[0].mxu0 %v2472
  %v2968 = vpop.f32.mrb[0].mxu0
  %v2969 = vadd.f32 %v2587, %v2968
  %v2970 = vpop.f32.mrb[0].mxu0
  %v2971 = vadd.f32 %v2591, %v2970
  %v2972 = vpop.f32.mrb[0].mxu0
  %v2973 = vadd.f32 %v2587, %v2972
  %v2974 = vpop.f32.mrb[0].mxu0
  %v2975 = vadd.f32 %v2591, %v2974
  %2976 = vmatprep.mubr.bf16.mxu0 %v2475
  %2977 = vmatmul.mubr.bf16.gmra.mrb[0].mxu0 %v2474
  %v2978 = vpop.f32.mrb[0].mxu0
  %v2979 = vadd.f32 %v2587, %v2978
  %v2980 = vpop.f32.mrb[0].mxu0
  %v2981 = vadd.f32 %v2591, %v2980
  %v2982 = vpop.f32.mrb[0].mxu0
  %v2983 = vadd.f32 %v2587, %v2982
  %v2984 = vpop.f32.mrb[0].mxu0
  %v2985 = vadd.f32 %v2591, %v2984
  %2986 = vmatprep.mubr.bf16.mxu0 %v2477
  %2987 = vmatmul.mubr.bf16.gmra.mrb[0].mxu0 %v2476
  %v2988 = vpop.f32.mrb[0].mxu0
  %v2989 = vadd.f32 %v2587, %v2988
  %v2990 = vpop.f32.mrb[0].mxu0
  %v2991 = vadd.f32 %v2591, %v2990
  %v2992 = vpop.f32.mrb[0].mxu0
  %v2993 = vadd.f32 %v2587, %v2992
  %v2994 = vpop.f32.mrb[0].mxu0
  %v2995 = vadd.f32 %v2591, %v2994
  %2996 = vmatprep.mubr.bf16.mxu0 %v2479
  %2997 = vmatmul.mubr.bf16.gmra.mrb[0].mxu0 %v2478
  %v2998 = vpop.f32.mrb[0].mxu0
  %v2999 = vadd.f32 %v2587, %v2998
  %v3000 = vpop.f32.mrb[0].mxu0
  %v3001 = vadd.f32 %v2591, %v3000
  %v3002 = vpop.f32.mrb[0].mxu0
  %v3003 = vadd.f32 %v2587, %v3002
  %v3004 = vpop.f32.mrb[0].mxu0
  %v3005 = vadd.f32 %v2591, %v3004
  %3006 = vmatprep.mubr.bf16.mxu0 %v2481
  %3007 = vmatmul.mubr.bf16.gmra.mrb[0].mxu0 %v2480
  %v3008 = vpop.f32.mrb[0].mxu0
  %v3009 = vadd.f32 %v2587, %v3008
  %v3010 = vpop.f32.mrb[0].mxu0
  %v3011 = vadd.f32 %v2591, %v3010
  %v3012 = vpop.f32.mrb[0].mxu0
  %v3013 = vadd.f32 %v2587, %v3012
  %v3014 = vpop.f32.mrb[0].mxu0
  %v3015 = vadd.f32 %v2591, %v3014
  %3016 = vmatprep.mubr.bf16.mxu0 %v2483
  %3017 = vmatmul.mubr.bf16.gmra.mrb[0].mxu0 %v2482
  %v3018 = vpop.f32.mrb[0].mxu0
  %v3019 = vadd.f32 %v2587, %v3018
  %v3020 = vpop.f32.mrb[0].mxu0
  %v3021 = vadd.f32 %v2591, %v3020
  %v3022 = vpop.f32.mrb[0].mxu0
  %v3023 = vadd.f32 %v2587, %v3022
  %v3024 = vpop.f32.mrb[0].mxu0
  %v3025 = vadd.f32 %v2591, %v3024
  %3026 = vmatprep.mubr.bf16.mxu0 %v2485
  %3027 = vmatmul.mubr.bf16.gmra.mrb[0].mxu0 %v2484
  %v3028 = vpop.f32.mrb[0].mxu0
  %v3029 = vadd.f32 %v2587, %v3028
  %v3030 = vpop.f32.mrb[0].mxu0
  %v3031 = vadd.f32 %v2591, %v3030
  %v3032 = vpop.f32.mrb[0].mxu0
  %v3033 = vadd.f32 %v2587, %v3032
  %v3034 = vpop.f32.mrb[0].mxu0
  %v3035 = vadd.f32 %v2591, %v3034
  %3036 = vmatprep.mubr.bf16.mxu0 %v2487
  %3037 = vmatmul.mubr.bf16.gmra.mrb[0].mxu0 %v2486
  %v3038 = vpop.f32.mrb[0].mxu0
  %v3039 = vadd.f32 %v2587, %v3038
  %v3040 = vpop.f32.mrb[0].mxu0
  %v3041 = vadd.f32 %v2591, %v3040
  %v3042 = vpop.f32.mrb[0].mxu0
  %v3043 = vadd.f32 %v2587, %v3042
  %v3044 = vpop.f32.mrb[0].mxu0
  %v3045 = vadd.f32 %v2591, %v3044
  %3046 = vmatprep.mubr.bf16.mxu0 %v2489
  %3047 = vmatmul.mubr.bf16.gmra.mrb[0].mxu0 %v2488
  %v3048 = vpop.f32.mrb[0].mxu0
  %v3049 = vadd.f32 %v2587, %v3048
  %v3050 = vpop.f32.mrb[0].mxu0
  %v3051 = vadd.f32 %v2591, %v3050
  %v3052 = vpop.f32.mrb[0].mxu0
  %v3053 = vadd.f32 %v2587, %v3052
  %v3054 = vpop.f32.mrb[0].mxu0
  %v3055 = vadd.f32 %v2591, %v3054
  %3056 = vmatprep.mubr.bf16.mxu0 %v2491
  %3057 = vmatmul.mubr.bf16.gmra.mrb[0].mxu0 %v2490
  %v3058 = vpop.f32.mrb[0].mxu0
  %v3059 = vadd.f32 %v2587, %v3058
  %v3060 = vpop.f32.mrb[0].mxu0
  %v3061 = vadd.f32 %v2591, %v3060
  %v3062 = vpop.f32.mrb[0].mxu0
  %v3063 = vadd.f32 %v2587, %v3062
  %v3064 = vpop.f32.mrb[0].mxu0
  %v3065 = vadd.f32 %v2591, %v3064
  %3066 = vmatprep.mubr.bf16.mxu0 %v2493
  %3067 = vmatmul.mubr.bf16.gmra.mrb[0].mxu0 %v2492
  %v3068 = vpop.f32.mrb[0].mxu0
  %v3069 = vadd.f32 %v2587, %v3068
  %v3070 = vpop.f32.mrb[0].mxu0
  %v3071 = vadd.f32 %v2591, %v3070
  %v3072 = vpop.f32.mrb[0].mxu0
  %v3073 = vadd.f32 %v2587, %v3072
  %v3074 = vpop.f32.mrb[0].mxu0
  %v3075 = vadd.f32 %v2591, %v3074
  %3076 = vmatprep.mubr.bf16.mxu0 %v2495
  %3077 = vmatmul.mubr.bf16.gmra.mrb[0].mxu0 %v2494
  %v3078 = vpop.f32.mrb[0].mxu0
  %v3079 = vadd.f32 %v2587, %v3078
  %v3080 = vpop.f32.mrb[0].mxu0
  %v3081 = vadd.f32 %v2591, %v3080
  %v3082 = vpop.f32.mrb[0].mxu0
  %v3083 = vadd.f32 %v2587, %v3082
  %v3084 = vpop.f32.mrb[0].mxu0
  %v3085 = vadd.f32 %v2591, %v3084
  %3086 = vmatprep.mubr.bf16.mxu0 %v2497
  %3087 = vmatmul.mubr.bf16.gmra.mrb[0].mxu0 %v2496
  %v3088 = vpop.f32.mrb[0].mxu0
  %v3089 = vadd.f32 %v2587, %v3088
  %v3090 = vpop.f32.mrb[0].mxu0
  %v3091 = vadd.f32 %v2591, %v3090
  %v3092 = vpop.f32.mrb[0].mxu0
  %v3093 = vadd.f32 %v2587, %v3092
  %v3094 = vpop.f32.mrb[0].mxu0
  %v3095 = vadd.f32 %v2591, %v3094
  %3096 = vmatprep.mubr.bf16.mxu0 %v2499
  %3097 = vmatmul.mubr.bf16.gmra.mrb[0].mxu0 %v2498
  %v3098 = vpop.f32.mrb[0].mxu0
  %v3099 = vadd.f32 %v2587, %v3098
  %v3100 = vpop.f32.mrb[0].mxu0
  %v3101 = vadd.f32 %v2591, %v3100
  %v3102 = vpop.f32.mrb[0].mxu0
  %v3103 = vadd.f32 %v2587, %v3102
  %v3104 = vpop.f32.mrb[0].mxu0
  %v3105 = vadd.f32 %v2591, %v3104
  %3106 = vmatprep.mubr.bf16.mxu0 %v2501
  %3107 = vmatmul.mubr.bf16.gmra.mrb[0].mxu0 %v2500
  %v3108 = vpop.f32.mrb[0].mxu0
  %v3109 = vadd.f32 %v2587, %v3108
  %v3110 = vpop.f32.mrb[0].mxu0
  %v3111 = vadd.f32 %v2591, %v3110
  %v3112 = vpop.f32.mrb[0].mxu0
  %v3113 = vadd.f32 %v2587, %v3112
  %v3114 = vpop.f32.mrb[0].mxu0
  %v3115 = vadd.f32 %v2591, %v3114
  %3116 = vmatprep.mubr.bf16.mxu0 %v2503
  %3117 = vmatmul.mubr.bf16.gmra.mrb[0].mxu0 %v2502
  %v3118 = vpop.f32.mrb[0].mxu0
  %v3119 = vadd.f32 %v2587, %v3118
  %v3120 = vpop.f32.mrb[0].mxu0
  %v3121 = vadd.f32 %v2591, %v3120
  %v3122 = vpop.f32.mrb[0].mxu0
  %v3123 = vadd.f32 %v2587, %v3122
  %v3124 = vpop.f32.mrb[0].mxu0
  %v3125 = vadd.f32 %v2591, %v3124
  %3126 = vmatprep.mubr.bf16.mxu0 %v2505
  %3127 = vmatmul.mubr.bf16.gmra.mrb[0].mxu0 %v2504
  %v3128 = vpop.f32.mrb[0].mxu0
  %v3129 = vadd.f32 %v2587, %v3128
  %v3130 = vpop.f32.mrb[0].mxu0
  %v3131 = vadd.f32 %v2591, %v3130
  %v3132 = vpop.f32.mrb[0].mxu0
  %v3133 = vadd.f32 %v2587, %v3132
  %v3134 = vpop.f32.mrb[0].mxu0
  %v3135 = vadd.f32 %v2591, %v3134
  %3136 = vmatprep.mubr.bf16.mxu0 %v2507
  %3137 = vmatmul.mubr.bf16.gmra.mrb[0].mxu0 %v2506
  %v3138 = vpop.f32.mrb[0].mxu0
  %v3139 = vadd.f32 %v2587, %v3138
  %v3140 = vpop.f32.mrb[0].mxu0
  %v3141 = vadd.f32 %v2591, %v3140
  %v3142 = vpop.f32.mrb[0].mxu0
  %v3143 = vadd.f32 %v2587, %v3142
  %v3144 = vpop.f32.mrb[0].mxu0
  %v3145 = vadd.f32 %v2591, %v3144
  %3146 = vmatprep.mubr.bf16.mxu0 %v2509
  %3147 = vmatmul.mubr.bf16.gmra.mrb[0].mxu0 %v2508
  %v3148 = vpop.f32.mrb[0].mxu0
  %v3149 = vadd.f32 %v2587, %v3148
  %v3150 = vpop.f32.mrb[0].mxu0
  %v3151 = vadd.f32 %v2591, %v3150
  %v3152 = vpop.f32.mrb[0].mxu0
  %v3153 = vadd.f32 %v2587, %v3152
  %v3154 = vpop.f32.mrb[0].mxu0
  %v3155 = vadd.f32 %v2591, %v3154
  %3156 = vmatprep.mubr.bf16.mxu0 %v2511
  %3157 = vmatmul.mubr.bf16.gmra.mrb[0].mxu0 %v2510
  %v3158 = vpop.f32.mrb[0].mxu0
  %v3159 = vadd.f32 %v2587, %v3158
  %v3160 = vpop.f32.mrb[0].mxu0
  %v3161 = vadd.f32 %v2591, %v3160
  %v3162 = vpop.f32.mrb[0].mxu0
  %v3163 = vadd.f32 %v2587, %v3162
  %v3164 = vpop.f32.mrb[0].mxu0
  %v3165 = vadd.f32 %v2591, %v3164
  %3166 = vmatprep.mubr.bf16.mxu0 %v2513
  %3167 = vmatmul.mubr.bf16.gmra.mrb[0].mxu0 %v2512
  %v3168 = vpop.f32.mrb[0].mxu0
  %v3169 = vadd.f32 %v2587, %v3168
  %v3170 = vpop.f32.mrb[0].mxu0
  %v3171 = vadd.f32 %v2591, %v3170
  %v3172 = vpop.f32.mrb[0].mxu0
  %v3173 = vadd.f32 %v2587, %v3172
  %v3174 = vpop.f32.mrb[0].mxu0
  %v3175 = vadd.f32 %v2591, %v3174
  %3176 = vmatprep.mubr.bf16.mxu0 %v2515
  %3177 = vmatmul.mubr.bf16.gmra.mrb[0].mxu0 %v2514
  %v3178 = vpop.f32.mrb[0].mxu0
  %v3179 = vadd.f32 %v2587, %v3178
  %v3180 = vpop.f32.mrb[0].mxu0
  %v3181 = vadd.f32 %v2591, %v3180
  %v3182 = vpop.f32.mrb[0].mxu0
  %v3183 = vadd.f32 %v2587, %v3182
  %v3184 = vpop.f32.mrb[0].mxu0
  %v3185 = vadd.f32 %v2591, %v3184
  %3186 = vmatprep.mubr.bf16.mxu0 %v2517
  %3187 = vmatmul.mubr.bf16.gmra.mrb[0].mxu0 %v2516
  %v3188 = vpop.f32.mrb[0].mxu0
  %v3189 = vadd.f32 %v2587, %v3188
  %v3190 = vpop.f32.mrb[0].mxu0
  %v3191 = vadd.f32 %v2591, %v3190
  %v3192 = vpop.f32.mrb[0].mxu0
  %v3193 = vadd.f32 %v2587, %v3192
  %v3194 = vpop.f32.mrb[0].mxu0
  %v3195 = vadd.f32 %v2591, %v3194
  %3196 = vdwg.mxu0
  %3197 = vmatprep.subr.bf16.mxu0 %v2799
  %3198 = vmatpush1.bf16.msra.mxu0 %v2798
  %3199 = vmatprep.subr.bf16.mxu0 %v2803
  %3200 = vmatpush1.bf16.msra.mxu0 %v2802
  %3201 = vmatprep.subr.bf16.mxu0 %v2807
  %3202 = vmatpush1.bf16.msra.mxu0 %v2806
  %3203 = vmatprep.subr.bf16.mxu0 %v2811
  %3204 = vmatpush1.bf16.msra.mxu0 %v2810
  %3205 = vmatprep.subr.bf16.mxu0 %v2815
  %3206 = vmatpush1.bf16.msra.mxu0 %v2814
  %3207 = vmatprep.subr.bf16.mxu0 %v2819
  %3208 = vmatpush1.bf16.msra.mxu0 %v2818
  %3209 = vmatprep.subr.bf16.mxu0 %v2823
  %3210 = vmatpush1.bf16.msra.mxu0 %v2822
  %3211 = vmatprep.subr.bf16.mxu0 %v2827
  %3212 = vmatpush1.bf16.msra.mxu0 %v2826
  %3213 = vmatprep.subr.bf16.mxu0 %v2831
  %3214 = vmatpush1.bf16.msra.mxu0 %v2830
  %3215 = vmatprep.subr.bf16.mxu0 %v2835
  %3216 = vmatpush1.bf16.msra.mxu0 %v2834
  %3217 = vmatprep.subr.bf16.mxu0 %v2839
  %3218 = vmatpush1.bf16.msra.mxu0 %v2838
  %3219 = vmatprep.subr.bf16.mxu0 %v2843
  %3220 = vmatpush1.bf16.msra.mxu0 %v2842
  %3221 = vmatprep.subr.bf16.mxu0 %v2847
  %3222 = vmatpush1.bf16.msra.mxu0 %v2846
  %3223 = vmatprep.subr.bf16.mxu0 %v2851
  %3224 = vmatpush1.bf16.msra.mxu0 %v2850
  %3225 = vmatprep.subr.bf16.mxu0 %v2855
  %3226 = vmatpush1.bf16.msra.mxu0 %v2854
  %3227 = vmatprep.subr.bf16.mxu0 %v2859
  %3228 = vmatpush1.bf16.msra.mxu0 %v2858
  %3229 = vmatprep.mubr.bf16.mxu0 %v2471
  %3230 = vmatmul.mubr.bf16.gmra.mrb[0].mxu0 %v2470
  %v3231 = vpop.f32.mrb[0].mxu0
  %v3232 = vadd.f32 %v2595, %v3231
  %v3233 = vpop.f32.mrb[0].mxu0
  %v3234 = vadd.f32 %v2599, %v3233
  %v3235 = vpop.f32.mrb[0].mxu0
  %v3236 = vadd.f32 %v2595, %v3235
  %v3237 = vpop.f32.mrb[0].mxu0
  %v3238 = vadd.f32 %v2599, %v3237
  %3239 = vmatprep.mubr.bf16.mxu0 %v2473
  %3240 = vmatmul.mubr.bf16.gmra.mrb[0].mxu0 %v2472
  %v3241 = vpop.f32.mrb[0].mxu0
  %v3242 = vadd.f32 %v2595, %v3241
  %v3243 = vpop.f32.mrb[0].mxu0
  %v3244 = vadd.f32 %v2599, %v3243
  %v3245 = vpop.f32.mrb[0].mxu0
  %v3246 = vadd.f32 %v2595, %v3245
  %v3247 = vpop.f32.mrb[0].mxu0
  %v3248 = vadd.f32 %v2599, %v3247
  %3249 = vmatprep.mubr.bf16.mxu0 %v2475
  %3250 = vmatmul.mubr.bf16.gmra.mrb[0].mxu0 %v2474
  %v3251 = vpop.f32.mrb[0].mxu0
  %v3252 = vadd.f32 %v2595, %v3251
  %v3253 = vpop.f32.mrb[0].mxu0
  %v3254 = vadd.f32 %v2599, %v3253
  %v3255 = vpop.f32.mrb[0].mxu0
  %v3256 = vadd.f32 %v2595, %v3255
  %v3257 = vpop.f32.mrb[0].mxu0
  %v3258 = vadd.f32 %v2599, %v3257
  %3259 = vmatprep.mubr.bf16.mxu0 %v2477
  %3260 = vmatmul.mubr.bf16.gmra.mrb[0].mxu0 %v2476
  %v3261 = vpop.f32.mrb[0].mxu0
  %v3262 = vadd.f32 %v2595, %v3261
  %v3263 = vpop.f32.mrb[0].mxu0
  %v3264 = vadd.f32 %v2599, %v3263
  %v3265 = vpop.f32.mrb[0].mxu0
  %v3266 = vadd.f32 %v2595, %v3265
  %v3267 = vpop.f32.mrb[0].mxu0
  %v3268 = vadd.f32 %v2599, %v3267
  %3269 = vmatprep.mubr.bf16.mxu0 %v2479
  %3270 = vmatmul.mubr.bf16.gmra.mrb[0].mxu0 %v2478
  %v3271 = vpop.f32.mrb[0].mxu0
  %v3272 = vadd.f32 %v2595, %v3271
  %v3273 = vpop.f32.mrb[0].mxu0
  %v3274 = vadd.f32 %v2599, %v3273
  %v3275 = vpop.f32.mrb[0].mxu0
  %v3276 = vadd.f32 %v2595, %v3275
  %v3277 = vpop.f32.mrb[0].mxu0
  %v3278 = vadd.f32 %v2599, %v3277
  %3279 = vmatprep.mubr.bf16.mxu0 %v2481
  %3280 = vmatmul.mubr.bf16.gmra.mrb[0].mxu0 %v2480
  %v3281 = vpop.f32.mrb[0].mxu0
  %v3282 = vadd.f32 %v2595, %v3281
  %v3283 = vpop.f32.mrb[0].mxu0
  %v3284 = vadd.f32 %v2599, %v3283
  %v3285 = vpop.f32.mrb[0].mxu0
  %v3286 = vadd.f32 %v2595, %v3285
  %v3287 = vpop.f32.mrb[0].mxu0
  %v3288 = vadd.f32 %v2599, %v3287
  %3289 = vmatprep.mubr.bf16.mxu0 %v2483
  %3290 = vmatmul.mubr.bf16.gmra.mrb[0].mxu0 %v2482
  %v3291 = vpop.f32.mrb[0].mxu0
  %v3292 = vadd.f32 %v2595, %v3291
  %v3293 = vpop.f32.mrb[0].mxu0
  %v3294 = vadd.f32 %v2599, %v3293
  %v3295 = vpop.f32.mrb[0].mxu0
  %v3296 = vadd.f32 %v2595, %v3295
  %v3297 = vpop.f32.mrb[0].mxu0
  %v3298 = vadd.f32 %v2599, %v3297
  %3299 = vmatprep.mubr.bf16.mxu0 %v2485
  %3300 = vmatmul.mubr.bf16.gmra.mrb[0].mxu0 %v2484
  %v3301 = vpop.f32.mrb[0].mxu0
  %v3302 = vadd.f32 %v2595, %v3301
  %v3303 = vpop.f32.mrb[0].mxu0
  %v3304 = vadd.f32 %v2599, %v3303
  %v3305 = vpop.f32.mrb[0].mxu0
  %v3306 = vadd.f32 %v2595, %v3305
  %v3307 = vpop.f32.mrb[0].mxu0
  %v3308 = vadd.f32 %v2599, %v3307
  %3309 = vmatprep.mubr.bf16.mxu0 %v2487
  %3310 = vmatmul.mubr.bf16.gmra.mrb[0].mxu0 %v2486
  %v3311 = vpop.f32.mrb[0].mxu0
  %v3312 = vadd.f32 %v2595, %v3311
  %v3313 = vpop.f32.mrb[0].mxu0
  %v3314 = vadd.f32 %v2599, %v3313
  %v3315 = vpop.f32.mrb[0].mxu0
  %v3316 = vadd.f32 %v2595, %v3315
  %v3317 = vpop.f32.mrb[0].mxu0
  %v3318 = vadd.f32 %v2599, %v3317
  %3319 = vmatprep.mubr.bf16.mxu0 %v2489
  %3320 = vmatmul.mubr.bf16.gmra.mrb[0].mxu0 %v2488
  %v3321 = vpop.f32.mrb[0].mxu0
  %v3322 = vadd.f32 %v2595, %v3321
  %v3323 = vpop.f32.mrb[0].mxu0
  %v3324 = vadd.f32 %v2599, %v3323
  %v3325 = vpop.f32.mrb[0].mxu0
  %v3326 = vadd.f32 %v2595, %v3325
  %v3327 = vpop.f32.mrb[0].mxu0
  %v3328 = vadd.f32 %v2599, %v3327
  %3329 = vmatprep.mubr.bf16.mxu0 %v2491
  %3330 = vmatmul.mubr.bf16.gmra.mrb[0].mxu0 %v2490
  %v3331 = vpop.f32.mrb[0].mxu0
  %v3332 = vadd.f32 %v2595, %v3331
  %v3333 = vpop.f32.mrb[0].mxu0
  %v3334 = vadd.f32 %v2599, %v3333
  %v3335 = vpop.f32.mrb[0].mxu0
  %v3336 = vadd.f32 %v2595, %v3335
  %v3337 = vpop.f32.mrb[0].mxu0
  %v3338 = vadd.f32 %v2599, %v3337
  %3339 = vmatprep.mubr.bf16.mxu0 %v2493
  %3340 = vmatmul.mubr.bf16.gmra.mrb[0].mxu0 %v2492
  %v3341 = vpop.f32.mrb[0].mxu0
  %v3342 = vadd.f32 %v2595, %v3341
  %v3343 = vpop.f32.mrb[0].mxu0
  %v3344 = vadd.f32 %v2599, %v3343
  %v3345 = vpop.f32.mrb[0].mxu0
  %v3346 = vadd.f32 %v2595, %v3345
  %v3347 = vpop.f32.mrb[0].mxu0
  %v3348 = vadd.f32 %v2599, %v3347
  %3349 = vmatprep.mubr.bf16.mxu0 %v2495
  %3350 = vmatmul.mubr.bf16.gmra.mrb[0].mxu0 %v2494
  %v3351 = vpop.f32.mrb[0].mxu0
  %v3352 = vadd.f32 %v2595, %v3351
  %v3353 = vpop.f32.mrb[0].mxu0
  %v3354 = vadd.f32 %v2599, %v3353
  %v3355 = vpop.f32.mrb[0].mxu0
  %v3356 = vadd.f32 %v2595, %v3355
  %v3357 = vpop.f32.mrb[0].mxu0
  %v3358 = vadd.f32 %v2599, %v3357
  %3359 = vmatprep.mubr.bf16.mxu0 %v2497
  %3360 = vmatmul.mubr.bf16.gmra.mrb[0].mxu0 %v2496
  %v3361 = vpop.f32.mrb[0].mxu0
  %v3362 = vadd.f32 %v2595, %v3361
  %v3363 = vpop.f32.mrb[0].mxu0
  %v3364 = vadd.f32 %v2599, %v3363
  %v3365 = vpop.f32.mrb[0].mxu0
  %v3366 = vadd.f32 %v2595, %v3365
  %v3367 = vpop.f32.mrb[0].mxu0
  %v3368 = vadd.f32 %v2599, %v3367
  %3369 = vmatprep.mubr.bf16.mxu0 %v2499
  %3370 = vmatmul.mubr.bf16.gmra.mrb[0].mxu0 %v2498
  %v3371 = vpop.f32.mrb[0].mxu0
  %v3372 = vadd.f32 %v2595, %v3371
  %v3373 = vpop.f32.mrb[0].mxu0
  %v3374 = vadd.f32 %v2599, %v3373
  %v3375 = vpop.f32.mrb[0].mxu0
  %v3376 = vadd.f32 %v2595, %v3375
  %v3377 = vpop.f32.mrb[0].mxu0
  %v3378 = vadd.f32 %v2599, %v3377
  %3379 = vmatprep.mubr.bf16.mxu0 %v2501
  %3380 = vmatmul.mubr.bf16.gmra.mrb[0].mxu0 %v2500
  %v3381 = vpop.f32.mrb[0].mxu0
  %v3382 = vadd.f32 %v2595, %v3381
  %v3383 = vpop.f32.mrb[0].mxu0
  %v3384 = vadd.f32 %v2599, %v3383
  %v3385 = vpop.f32.mrb[0].mxu0
  %v3386 = vadd.f32 %v2595, %v3385
  %v3387 = vpop.f32.mrb[0].mxu0
  %v3388 = vadd.f32 %v2599, %v3387
  %3389 = vmatprep.mubr.bf16.mxu0 %v2503
  %3390 = vmatmul.mubr.bf16.gmra.mrb[0].mxu0 %v2502
  %v3391 = vpop.f32.mrb[0].mxu0
  %v3392 = vadd.f32 %v2595, %v3391
  %v3393 = vpop.f32.mrb[0].mxu0
  %v3394 = vadd.f32 %v2599, %v3393
  %v3395 = vpop.f32.mrb[0].mxu0
  %v3396 = vadd.f32 %v2595, %v3395
  %v3397 = vpop.f32.mrb[0].mxu0
  %v3398 = vadd.f32 %v2599, %v3397
  %3399 = vmatprep.mubr.bf16.mxu0 %v2505
  %3400 = vmatmul.mubr.bf16.gmra.mrb[0].mxu0 %v2504
  %v3401 = vpop.f32.mrb[0].mxu0
  %v3402 = vadd.f32 %v2595, %v3401
  %v3403 = vpop.f32.mrb[0].mxu0
  %v3404 = vadd.f32 %v2599, %v3403
  %v3405 = vpop.f32.mrb[0].mxu0
  %v3406 = vadd.f32 %v2595, %v3405
  %v3407 = vpop.f32.mrb[0].mxu0
  %v3408 = vadd.f32 %v2599, %v3407
  %3409 = vmatprep.mubr.bf16.mxu0 %v2507
  %3410 = vmatmul.mubr.bf16.gmra.mrb[0].mxu0 %v2506
  %v3411 = vpop.f32.mrb[0].mxu0
  %v3412 = vadd.f32 %v2595, %v3411
  %v3413 = vpop.f32.mrb[0].mxu0
  %v3414 = vadd.f32 %v2599, %v3413
  %v3415 = vpop.f32.mrb[0].mxu0
  %v3416 = vadd.f32 %v2595, %v3415
  %v3417 = vpop.f32.mrb[0].mxu0
  %v3418 = vadd.f32 %v2599, %v3417
  %3419 = vmatprep.mubr.bf16.mxu0 %v2509
  %3420 = vmatmul.mubr.bf16.gmra.mrb[0].mxu0 %v2508
  %v3421 = vpop.f32.mrb[0].mxu0
  %v3422 = vadd.f32 %v2595, %v3421
  %v3423 = vpop.f32.mrb[0].mxu0
  %v3424 = vadd.f32 %v2599, %v3423
  %v3425 = vpop.f32.mrb[0].mxu0
  %v3426 = vadd.f32 %v2595, %v3425
  %v3427 = vpop.f32.mrb[0].mxu0
  %v3428 = vadd.f32 %v2599, %v3427
  %3429 = vmatprep.mubr.bf16.mxu0 %v2511
  %3430 = vmatmul.mubr.bf16.gmra.mrb[0].mxu0 %v2510
  %v3431 = vpop.f32.mrb[0].mxu0
  %v3432 = vadd.f32 %v2595, %v3431
  %v3433 = vpop.f32.mrb[0].mxu0
  %v3434 = vadd.f32 %v2599, %v3433
  %v3435 = vpop.f32.mrb[0].mxu0
  %v3436 = vadd.f32 %v2595, %v3435
  %v3437 = vpop.f32.mrb[0].mxu0
  %v3438 = vadd.f32 %v2599, %v3437
  %3439 = vmatprep.mubr.bf16.mxu0 %v2513
  %3440 = vmatmul.mubr.bf16.gmra.mrb[0].mxu0 %v2512
  %v3441 = vpop.f32.mrb[0].mxu0
  %v3442 = vadd.f32 %v2595, %v3441
  %v3443 = vpop.f32.mrb[0].mxu0
  %v3444 = vadd.f32 %v2599, %v3443
  %v3445 = vpop.f32.mrb[0].mxu0
  %v3446 = vadd.f32 %v2595, %v3445
  %v3447 = vpop.f32.mrb[0].mxu0
  %v3448 = vadd.f32 %v2599, %v3447
  %3449 = vmatprep.mubr.bf16.mxu0 %v2515
  %3450 = vmatmul.mubr.bf16.gmra.mrb[0].mxu0 %v2514
  %v3451 = vpop.f32.mrb[0].mxu0
  %v3452 = vadd.f32 %v2595, %v3451
  %v3453 = vpop.f32.mrb[0].mxu0
  %v3454 = vadd.f32 %v2599, %v3453
  %v3455 = vpop.f32.mrb[0].mxu0
  %v3456 = vadd.f32 %v2595, %v3455
  %v3457 = vpop.f32.mrb[0].mxu0
  %v3458 = vadd.f32 %v2599, %v3457
  %3459 = vmatprep.mubr.bf16.mxu0 %v2517
  %3460 = vmatmul.mubr.bf16.gmra.mrb[0].mxu0 %v2516
  %v3461 = vpop.f32.mrb[0].mxu0
  %v3462 = vadd.f32 %v2595, %v3461
  %v3463 = vpop.f32.mrb[0].mxu0
  %v3464 = vadd.f32 %v2599, %v3463
  %v3465 = vpop.f32.mrb[0].mxu0
  %v3466 = vadd.f32 %v2595, %v3465
  %v3467 = vpop.f32.mrb[0].mxu0
  %v3468 = vadd.f32 %v2599, %v3467
  %3469 = vdwg.mxu0
  %v3470 = vmax.f32 %v2959, 0.0
  %v3471 = vmax.f32 %v2961, 0.0
  %v3472 = vmax.f32 %v3232, 0.0
  %v3473 = vmax.f32 %v3234, 0.0
  %v3474 = vmax.f32 %v2963, 0.0
  %v3475 = vmax.f32 %v2965, 0.0
  %v3476 = vmax.f32 %v3236, 0.0
  %v3477 = vmax.f32 %v3238, 0.0
  %v3478 = vmax.f32 %v2969, 0.0
  %v3479 = vmax.f32 %v2971, 0.0
  %v3480 = vmax.f32 %v3242, 0.0
  %v3481 = vmax.f32 %v3244, 0.0
  %v3482 = vmax.f32 %v2973, 0.0
  %v3483 = vmax.f32 %v2975, 0.0
  %v3484 = vmax.f32 %v3246, 0.0
  %v3485 = vmax.f32 %v3248, 0.0
  %v3486 = vmax.f32 %v2979, 0.0
  %v3487 = vmax.f32 %v2981, 0.0
  %v3488 = vmax.f32 %v3252, 0.0
  %v3489 = vmax.f32 %v3254, 0.0
  %v3490 = vmax.f32 %v2983, 0.0
  %v3491 = vmax.f32 %v2985, 0.0
  %v3492 = vmax.f32 %v3256, 0.0
  %v3493 = vmax.f32 %v3258, 0.0
  %v3494 = vmax.f32 %v2989, 0.0
  %v3495 = vmax.f32 %v2991, 0.0
  %v3496 = vmax.f32 %v3262, 0.0
  %v3497 = vmax.f32 %v3264, 0.0
  %v3498 = vmax.f32 %v2993, 0.0
  %v3499 = vmax.f32 %v2995, 0.0
  %v3500 = vmax.f32 %v3266, 0.0
  %v3501 = vmax.f32 %v3268, 0.0
  %v3502 = vmax.f32 %v2999, 0.0
  %v3503 = vmax.f32 %v3001, 0.0
  %v3504 = vmax.f32 %v3272, 0.0
  %v3505 = vmax.f32 %v3274, 0.0
  %v3506 = vmax.f32 %v3003, 0.0
  %v3507 = vmax.f32 %v3005, 0.0
  %v3508 = vmax.f32 %v3276, 0.0
  %v3509 = vmax.f32 %v3278, 0.0
  %v3510 = vmax.f32 %v3009, 0.0
  %v3511 = vmax.f32 %v3011, 0.0
  %v3512 = vmax.f32 %v3282, 0.0
  %v3513 = vmax.f32 %v3284, 0.0
  %v3514 = vmax.f32 %v3013, 0.0
  %v3515 = vmax.f32 %v3015, 0.0
  %v3516 = vmax.f32 %v3286, 0.0
  %v3517 = vmax.f32 %v3288, 0.0
  %v3518 = vmax.f32 %v3019, 0.0
  %v3519 = vmax.f32 %v3021, 0.0
  %v3520 = vmax.f32 %v3292, 0.0
  %v3521 = vmax.f32 %v3294, 0.0
  %v3522 = vmax.f32 %v3023, 0.0
  %v3523 = vmax.f32 %v3025, 0.0
  %v3524 = vmax.f32 %v3296, 0.0
  %v3525 = vmax.f32 %v3298, 0.0
  %v3526 = vmax.f32 %v3029, 0.0
  %v3527 = vmax.f32 %v3031, 0.0
  %v3528 = vmax.f32 %v3302, 0.0
  %v3529 = vmax.f32 %v3304, 0.0
  %v3530 = vmax.f32 %v3033, 0.0
  %v3531 = vmax.f32 %v3035, 0.0
  %v3532 = vmax.f32 %v3306, 0.0
  %v3533 = vmax.f32 %v3308, 0.0
  %v3534 = vmax.f32 %v3039, 0.0
  %v3535 = vmax.f32 %v3041, 0.0
  %v3536 = vmax.f32 %v3312, 0.0
  %v3537 = vmax.f32 %v3314, 0.0
  %v3538 = vmax.f32 %v3043, 0.0
  %v3539 = vmax.f32 %v3045, 0.0
  %v3540 = vmax.f32 %v3316, 0.0
  %v3541 = vmax.f32 %v3318, 0.0
  %v3542 = vmax.f32 %v3049, 0.0
  %v3543 = vmax.f32 %v3051, 0.0
  %v3544 = vmax.f32 %v3322, 0.0
  %v3545 = vmax.f32 %v3324, 0.0
  %v3546 = vmax.f32 %v3053, 0.0
  %v3547 = vmax.f32 %v3055, 0.0
  %v3548 = vmax.f32 %v3326, 0.0
  %v3549 = vmax.f32 %v3328, 0.0
  %v3550 = vmax.f32 %v3059, 0.0
  %v3551 = vmax.f32 %v3061, 0.0
  %v3552 = vmax.f32 %v3332, 0.0
  %v3553 = vmax.f32 %v3334, 0.0
  %v3554 = vmax.f32 %v3063, 0.0
  %v3555 = vmax.f32 %v3065, 0.0
  %v3556 = vmax.f32 %v3336, 0.0
  %v3557 = vmax.f32 %v3338, 0.0
  %v3558 = vmax.f32 %v3069, 0.0
  %v3559 = vmax.f32 %v3071, 0.0
  %v3560 = vmax.f32 %v3342, 0.0
  %v3561 = vmax.f32 %v3344, 0.0
  %v3562 = vmax.f32 %v3073, 0.0
  %v3563 = vmax.f32 %v3075, 0.0
  %v3564 = vmax.f32 %v3346, 0.0
  %v3565 = vmax.f32 %v3348, 0.0
  %v3566 = vmax.f32 %v3079, 0.0
  %v3567 = vmax.f32 %v3081, 0.0
  %v3568 = vmax.f32 %v3352, 0.0
  %v3569 = vmax.f32 %v3354, 0.0
  %v3570 = vmax.f32 %v3083, 0.0
  %v3571 = vmax.f32 %v3085, 0.0
  %v3572 = vmax.f32 %v3356, 0.0
  %v3573 = vmax.f32 %v3358, 0.0
  %v3574 = vmax.f32 %v3089, 0.0
  %v3575 = vmax.f32 %v3091, 0.0
  %v3576 = vmax.f32 %v3362, 0.0
  %v3577 = vmax.f32 %v3364, 0.0
  %v3578 = vmax.f32 %v3093, 0.0
  %v3579 = vmax.f32 %v3095, 0.0
  %v3580 = vmax.f32 %v3366, 0.0
  %v3581 = vmax.f32 %v3368, 0.0
  %v3582 = vmax.f32 %v3099, 0.0
  %v3583 = vmax.f32 %v3101, 0.0
  %v3584 = vmax.f32 %v3372, 0.0
  %v3585 = vmax.f32 %v3374, 0.0
  %v3586 = vmax.f32 %v3103, 0.0
  %v3587 = vmax.f32 %v3105, 0.0
  %v3588 = vmax.f32 %v3376, 0.0
  %v3589 = vmax.f32 %v3378, 0.0
  %v3590 = vmax.f32 %v3109, 0.0
  %v3591 = vmax.f32 %v3111, 0.0
  %v3592 = vmax.f32 %v3382, 0.0
  %v3593 = vmax.f32 %v3384, 0.0
  %v3594 = vmax.f32 %v3113, 0.0
  %v3595 = vmax.f32 %v3115, 0.0
  %v3596 = vmax.f32 %v3386, 0.0
  %v3597 = vmax.f32 %v3388, 0.0
  %v3598 = vmax.f32 %v3119, 0.0
  %v3599 = vmax.f32 %v3121, 0.0
  %v3600 = vmax.f32 %v3392, 0.0
  %v3601 = vmax.f32 %v3394, 0.0
  %v3602 = vmax.f32 %v3123, 0.0
  %v3603 = vmax.f32 %v3125, 0.0
  %v3604 = vmax.f32 %v3396, 0.0
  %v3605 = vmax.f32 %v3398, 0.0
  %v3606 = vmax.f32 %v3129, 0.0
  %v3607 = vmax.f32 %v3131, 0.0
  %v3608 = vmax.f32 %v3402, 0.0
  %v3609 = vmax.f32 %v3404, 0.0
  %v3610 = vmax.f32 %v3133, 0.0
  %v3611 = vmax.f32 %v3135, 0.0
  %v3612 = vmax.f32 %v3406, 0.0
  %v3613 = vmax.f32 %v3408, 0.0
  %v3614 = vmax.f32 %v3139, 0.0
  %v3615 = vmax.f32 %v3141, 0.0
  %v3616 = vmax.f32 %v3412, 0.0
  %v3617 = vmax.f32 %v3414, 0.0
  %v3618 = vmax.f32 %v3143, 0.0
  %v3619 = vmax.f32 %v3145, 0.0
  %v3620 = vmax.f32 %v3416, 0.0
  %v3621 = vmax.f32 %v3418, 0.0
  %v3622 = vmax.f32 %v3149, 0.0
  %v3623 = vmax.f32 %v3151, 0.0
  %v3624 = vmax.f32 %v3422, 0.0
  %v3625 = vmax.f32 %v3424, 0.0
  %v3626 = vmax.f32 %v3153, 0.0
  %v3627 = vmax.f32 %v3155, 0.0
  %v3628 = vmax.f32 %v3426, 0.0
  %v3629 = vmax.f32 %v3428, 0.0
  %v3630 = vmax.f32 %v3159, 0.0
  %v3631 = vmax.f32 %v3161, 0.0
  %v3632 = vmax.f32 %v3432, 0.0
  %v3633 = vmax.f32 %v3434, 0.0
  %v3634 = vmax.f32 %v3163, 0.0
  %v3635 = vmax.f32 %v3165, 0.0
  %v3636 = vmax.f32 %v3436, 0.0
  %v3637 = vmax.f32 %v3438, 0.0
  %v3638 = vmax.f32 %v3169, 0.0
  %v3639 = vmax.f32 %v3171, 0.0
  %v3640 = vmax.f32 %v3442, 0.0
  %v3641 = vmax.f32 %v3444, 0.0
  %v3642 = vmax.f32 %v3173, 0.0
  %v3643 = vmax.f32 %v3175, 0.0
  %v3644 = vmax.f32 %v3446, 0.0
  %v3645 = vmax.f32 %v3448, 0.0
  %v3646 = vmax.f32 %v3179, 0.0
  %v3647 = vmax.f32 %v3181, 0.0
  %v3648 = vmax.f32 %v3452, 0.0
  %v3649 = vmax.f32 %v3454, 0.0
  %v3650 = vmax.f32 %v3183, 0.0
  %v3651 = vmax.f32 %v3185, 0.0
  %v3652 = vmax.f32 %v3456, 0.0
  %v3653 = vmax.f32 %v3458, 0.0
  %v3654 = vmax.f32 %v3189, 0.0
  %v3655 = vmax.f32 %v3191, 0.0
  %v3656 = vmax.f32 %v3462, 0.0
  %v3657 = vmax.f32 %v3464, 0.0
  %v3658 = vmax.f32 %v3193, 0.0
  %v3659 = vmax.f32 %v3195, 0.0
  %v3660 = vmax.f32 %v3466, 0.0
  %v3661 = vmax.f32 %v3468, 0.0
  %v3662 = vpack.c.bf16 %v3474, %v3470
  %v3663 = vpack.c.bf16 %v3475, %v3471
  %v3664 = vpack.c.bf16 %v3476, %v3472
  %v3665 = vpack.c.bf16 %v3477, %v3473
  %v3666 = vpack.c.bf16 %v3482, %v3478
  %v3667 = vpack.c.bf16 %v3483, %v3479
  %v3668 = vpack.c.bf16 %v3484, %v3480
  %v3669 = vpack.c.bf16 %v3485, %v3481
  %v3670 = vpack.c.bf16 %v3490, %v3486
  %v3671 = vpack.c.bf16 %v3491, %v3487
  %v3672 = vpack.c.bf16 %v3492, %v3488
  %v3673 = vpack.c.bf16 %v3493, %v3489
  %v3674 = vpack.c.bf16 %v3498, %v3494
  %v3675 = vpack.c.bf16 %v3499, %v3495
  %v3676 = vpack.c.bf16 %v3500, %v3496
  %v3677 = vpack.c.bf16 %v3501, %v3497
  %v3678 = vpack.c.bf16 %v3506, %v3502
  %v3679 = vpack.c.bf16 %v3507, %v3503
  %v3680 = vpack.c.bf16 %v3508, %v3504
  %v3681 = vpack.c.bf16 %v3509, %v3505
  %v3682 = vpack.c.bf16 %v3514, %v3510
  %v3683 = vpack.c.bf16 %v3515, %v3511
  %v3684 = vpack.c.bf16 %v3516, %v3512
  %v3685 = vpack.c.bf16 %v3517, %v3513
  %v3686 = vpack.c.bf16 %v3522, %v3518
  %v3687 = vpack.c.bf16 %v3523, %v3519
  %v3688 = vpack.c.bf16 %v3524, %v3520
  %v3689 = vpack.c.bf16 %v3525, %v3521
  %v3690 = vpack.c.bf16 %v3530, %v3526
  %v3691 = vpack.c.bf16 %v3531, %v3527
  %v3692 = vpack.c.bf16 %v3532, %v3528
  %v3693 = vpack.c.bf16 %v3533, %v3529
  %v3694 = vpack.c.bf16 %v3538, %v3534
  %v3695 = vpack.c.bf16 %v3539, %v3535
  %v3696 = vpack.c.bf16 %v3540, %v3536
  %v3697 = vpack.c.bf16 %v3541, %v3537
  %v3698 = vpack.c.bf16 %v3546, %v3542
  %v3699 = vpack.c.bf16 %v3547, %v3543
  %v3700 = vpack.c.bf16 %v3548, %v3544
  %v3701 = vpack.c.bf16 %v3549, %v3545
  %v3702 = vpack.c.bf16 %v3554, %v3550
  %v3703 = vpack.c.bf16 %v3555, %v3551
  %v3704 = vpack.c.bf16 %v3556, %v3552
  %v3705 = vpack.c.bf16 %v3557, %v3553
  %v3706 = vpack.c.bf16 %v3562, %v3558
  %v3707 = vpack.c.bf16 %v3563, %v3559
  %v3708 = vpack.c.bf16 %v3564, %v3560
  %v3709 = vpack.c.bf16 %v3565, %v3561
  %v3710 = vpack.c.bf16 %v3570, %v3566
  %v3711 = vpack.c.bf16 %v3571, %v3567
  %v3712 = vpack.c.bf16 %v3572, %v3568
  %v3713 = vpack.c.bf16 %v3573, %v3569
  %v3714 = vpack.c.bf16 %v3578, %v3574
  %v3715 = vpack.c.bf16 %v3579, %v3575
  %v3716 = vpack.c.bf16 %v3580, %v3576
  %v3717 = vpack.c.bf16 %v3581, %v3577
  %v3718 = vpack.c.bf16 %v3586, %v3582
  %v3719 = vpack.c.bf16 %v3587, %v3583
  %v3720 = vpack.c.bf16 %v3588, %v3584
  %v3721 = vpack.c.bf16 %v3589, %v3585
  %v3722 = vpack.c.bf16 %v3594, %v3590
  %v3723 = vpack.c.bf16 %v3595, %v3591
  %v3724 = vpack.c.bf16 %v3596, %v3592
  %v3725 = vpack.c.bf16 %v3597, %v3593
  %v3726 = vpack.c.bf16 %v3602, %v3598
  %v3727 = vpack.c.bf16 %v3603, %v3599
  %v3728 = vpack.c.bf16 %v3604, %v3600
  %v3729 = vpack.c.bf16 %v3605, %v3601
  %v3730 = vpack.c.bf16 %v3610, %v3606
  %v3731 = vpack.c.bf16 %v3611, %v3607
  %v3732 = vpack.c.bf16 %v3612, %v3608
  %v3733 = vpack.c.bf16 %v3613, %v3609
  %v3734 = vpack.c.bf16 %v3618, %v3614
  %v3735 = vpack.c.bf16 %v3619, %v3615
  %v3736 = vpack.c.bf16 %v3620, %v3616
  %v3737 = vpack.c.bf16 %v3621, %v3617
  %v3738 = vpack.c.bf16 %v3626, %v3622
  %v3739 = vpack.c.bf16 %v3627, %v3623
  %v3740 = vpack.c.bf16 %v3628, %v3624
  %v3741 = vpack.c.bf16 %v3629, %v3625
  %v3742 = vpack.c.bf16 %v3634, %v3630
  %v3743 = vpack.c.bf16 %v3635, %v3631
  %v3744 = vpack.c.bf16 %v3636, %v3632
  %v3745 = vpack.c.bf16 %v3637, %v3633
  %v3746 = vpack.c.bf16 %v3642, %v3638
  %v3747 = vpack.c.bf16 %v3643, %v3639
  %v3748 = vpack.c.bf16 %v3644, %v3640
  %v3749 = vpack.c.bf16 %v3645, %v3641
  %v3750 = vpack.c.bf16 %v3650, %v3646
  %v3751 = vpack.c.bf16 %v3651, %v3647
  %v3752 = vpack.c.bf16 %v3652, %v3648
  %v3753 = vpack.c.bf16 %v3653, %v3649
  %v3754 = vpack.c.bf16 %v3658, %v3654
  %v3755 = vpack.c.bf16 %v3659, %v3655
  %v3756 = vpack.c.bf16 %v3660, %v3656
  %v3757 = vpack.c.bf16 %v3661, %v3657
  %v3758 = vld [vmem:[%s7] sm:$0xff]
  %v3759 = vld [vmem:[%s7 + $0x8] sm:$0xff]
  %v3760 = vld [vmem:[%s7 + $0x10] sm:$0xff]
  %v3761 = vld [vmem:[%s7 + $0x18] sm:$0xff]
  %v3762 = vld [vmem:[%s7 + $0x20] sm:$0xff]
  %v3763 = vld [vmem:[%s7 + $0x28] sm:$0xff]
  %v3764 = vld [vmem:[%s7 + $0x30] sm:$0xff]
  %v3765 = vld [vmem:[%s7 + $0x38] sm:$0xff]
  %v3766 = vld [vmem:[%s7 + $0x40] sm:$0xff]
  %v3767 = vld [vmem:[%s7 + $0x48] sm:$0xff]
  %v3768 = vld [vmem:[%s7 + $0x50] sm:$0xff]
  %v3769 = vld [vmem:[%s7 + $0x58] sm:$0xff]
  %v3770 = vld [vmem:[%s7 + $0x60] sm:$0xff]
  %v3771 = vld [vmem:[%s7 + $0x68] sm:$0xff]
  %v3772 = vld [vmem:[%s7 + $0x70] sm:$0xff]
  %v3773 = vld [vmem:[%s7 + $0x78] sm:$0xff]
  %v3774 = vld [vmem:[%s7 + $0x80] sm:$0xff]
  %v3775 = vld [vmem:[%s7 + $0x88] sm:$0xff]
  %v3776 = vld [vmem:[%s7 + $0x90] sm:$0xff]
  %v3777 = vld [vmem:[%s7 + $0x98] sm:$0xff]
  %v3778 = vld [vmem:[%s7 + $0xa0] sm:$0xff]
  %v3779 = vld [vmem:[%s7 + $0xa8] sm:$0xff]
  %v3780 = vld [vmem:[%s7 + $0xb0] sm:$0xff]
  %v3781 = vld [vmem:[%s7 + $0xb8] sm:$0xff]
  %v3782 = vld [vmem:[%s7 + $0xc0] sm:$0xff]
  %v3783 = vld [vmem:[%s7 + $0xc8] sm:$0xff]
  %v3784 = vld [vmem:[%s7 + $0xd0] sm:$0xff]
  %v3785 = vld [vmem:[%s7 + $0xd8] sm:$0xff]
  %v3786 = vld [vmem:[%s7 + $0xe0] sm:$0xff]
  %v3787 = vld [vmem:[%s7 + $0xe8] sm:$0xff]
  %v3788 = vld [vmem:[%s7 + $0xf0] sm:$0xff]
  %v3789 = vld [vmem:[%s7 + $0xf8] sm:$0xff]
  %v3790 = vld [vmem:[%s7 + $0x100] sm:$0xff]
  %v3791 = vld [vmem:[%s7 + $0x108] sm:$0xff]
  %v3792 = vld [vmem:[%s7 + $0x110] sm:$0xff]
  %v3793 = vld [vmem:[%s7 + $0x118] sm:$0xff]
  %v3794 = vld [vmem:[%s7 + $0x120] sm:$0xff]
  %v3795 = vld [vmem:[%s7 + $0x128] sm:$0xff]
  %v3796 = vld [vmem:[%s7 + $0x130] sm:$0xff]
  %v3797 = vld [vmem:[%s7 + $0x138] sm:$0xff]
  %v3798 = vld [vmem:[%s7 + $0x140] sm:$0xff]
  %v3799 = vld [vmem:[%s7 + $0x148] sm:$0xff]
  %v3800 = vld [vmem:[%s7 + $0x150] sm:$0xff]
  %v3801 = vld [vmem:[%s7 + $0x158] sm:$0xff]
  %v3802 = vld [vmem:[%s7 + $0x160] sm:$0xff]
  %v3803 = vld [vmem:[%s7 + $0x168] sm:$0xff]
  %v3804 = vld [vmem:[%s7 + $0x170] sm:$0xff]
  %v3805 = vld [vmem:[%s7 + $0x178] sm:$0xff]
  %v3806 = vld [vmem:[%s7 + $0x180] sm:$0xff]
  %v3807 = vld [vmem:[%s7 + $0x188] sm:$0xff]
  %v3808 = vld [vmem:[%s7 + $0x190] sm:$0xff]
  %v3809 = vld [vmem:[%s7 + $0x198] sm:$0xff]
  %v3810 = vld [vmem:[%s7 + $0x1a0] sm:$0xff]
  %v3811 = vld [vmem:[%s7 + $0x1a8] sm:$0xff]
  %v3812 = vld [vmem:[%s7 + $0x1b0] sm:$0xff]
  %v3813 = vld [vmem:[%s7 + $0x1b8] sm:$0xff]
  %v3814 = vld [vmem:[%s7 + $0x1c0] sm:$0xff]
  %v3815 = vld [vmem:[%s7 + $0x1c8] sm:$0xff]
  %v3816 = vld [vmem:[%s7 + $0x1d0] sm:$0xff]
  %v3817 = vld [vmem:[%s7 + $0x1d8] sm:$0xff]
  %v3818 = vld [vmem:[%s7 + $0x1e0] sm:$0xff]
  %v3819 = vld [vmem:[%s7 + $0x1e8] sm:$0xff]
  %v3820 = vld [vmem:[%s7 + $0x1f0] sm:$0xff]
  %v3821 = vld [vmem:[%s7 + $0x1f8] sm:$0xff]
  %v3822 = vld [vmem:[%s8] sm:$0x3]
  %v3824 = vlaneseq
  %v3825 = vshrl.u32 %v3824, 7
  %v3826 = vsub.s32 0, %v3825
  %v3827 = vrot.slane %v3822, %v3826
  %v3828 = vlaneseq
  %v3829 = vshrl.u32 %v3828, 7
  %v3830 = vsub.s32 1, %v3829
  %v3831 = vrot.slane %v3822, %v3830
  %v3898 = vunpack.c.l.b16 %v3758
  %v3899 = vunpack.c.h.b16 %v3758
  %v3900 = vunpack.c.l.b16 %v3759
  %v3901 = vunpack.c.h.b16 %v3759
  %v3902 = vunpack.c.l.b16 %v3760
  %v3903 = vunpack.c.h.b16 %v3760
  %v3904 = vunpack.c.l.b16 %v3761
  %v3905 = vunpack.c.h.b16 %v3761
  %v3906 = vunpack.c.l.b16 %v3762
  %v3907 = vunpack.c.h.b16 %v3762
  %v3908 = vunpack.c.l.b16 %v3763
  %v3909 = vunpack.c.h.b16 %v3763
  %v3910 = vunpack.c.l.b16 %v3764
  %v3911 = vunpack.c.h.b16 %v3764
  %v3912 = vunpack.c.l.b16 %v3765
  %v3913 = vunpack.c.h.b16 %v3765
  %v3914 = vunpack.c.l.b16 %v3766
  %v3915 = vunpack.c.h.b16 %v3766
  %v3916 = vunpack.c.l.b16 %v3767
  %v3917 = vunpack.c.h.b16 %v3767
  %v3918 = vunpack.c.l.b16 %v3768
  %v3919 = vunpack.c.h.b16 %v3768
  %v3920 = vunpack.c.l.b16 %v3769
  %v3921 = vunpack.c.h.b16 %v3769
  %v3922 = vunpack.c.l.b16 %v3770
  %v3923 = vunpack.c.h.b16 %v3770
  %v3924 = vunpack.c.l.b16 %v3771
  %v3925 = vunpack.c.h.b16 %v3771
  %v3926 = vunpack.c.l.b16 %v3772
  %v3927 = vunpack.c.h.b16 %v3772
  %v3928 = vunpack.c.l.b16 %v3773
  %v3929 = vunpack.c.h.b16 %v3773
  %v3930 = vunpack.c.l.b16 %v3774
  %v3931 = vunpack.c.h.b16 %v3774
  %v3932 = vunpack.c.l.b16 %v3775
  %v3933 = vunpack.c.h.b16 %v3775
  %v3934 = vunpack.c.l.b16 %v3776
  %v3935 = vunpack.c.h.b16 %v3776
  %v3936 = vunpack.c.l.b16 %v3777
  %v3937 = vunpack.c.h.b16 %v3777
  %v3938 = vunpack.c.l.b16 %v3778
  %v3939 = vunpack.c.h.b16 %v3778
  %v3940 = vunpack.c.l.b16 %v3779
  %v3941 = vunpack.c.h.b16 %v3779
  %v3942 = vunpack.c.l.b16 %v3780
  %v3943 = vunpack.c.h.b16 %v3780
  %v3944 = vunpack.c.l.b16 %v3781
  %v3945 = vunpack.c.h.b16 %v3781
  %v3946 = vunpack.c.l.b16 %v3782
  %v3947 = vunpack.c.h.b16 %v3782
  %v3948 = vunpack.c.l.b16 %v3783
  %v3949 = vunpack.c.h.b16 %v3783
  %v3950 = vunpack.c.l.b16 %v3784
  %v3951 = vunpack.c.h.b16 %v3784
  %v3952 = vunpack.c.l.b16 %v3785
  %v3953 = vunpack.c.h.b16 %v3785
  %v3954 = vunpack.c.l.b16 %v3786
  %v3955 = vunpack.c.h.b16 %v3786
  %v3956 = vunpack.c.l.b16 %v3787
  %v3957 = vunpack.c.h.b16 %v3787
  %v3958 = vunpack.c.l.b16 %v3788
  %v3959 = vunpack.c.h.b16 %v3788
  %v3960 = vunpack.c.l.b16 %v3789
  %v3961 = vunpack.c.h.b16 %v3789
  %v3962 = vunpack.c.l.b16 %v3790
  %v3963 = vunpack.c.h.b16 %v3790
  %v3964 = vunpack.c.l.b16 %v3791
  %v3965 = vunpack.c.h.b16 %v3791
  %v3966 = vunpack.c.l.b16 %v3792
  %v3967 = vunpack.c.h.b16 %v3792
  %v3968 = vunpack.c.l.b16 %v3793
  %v3969 = vunpack.c.h.b16 %v3793
  %v3970 = vunpack.c.l.b16 %v3794
  %v3971 = vunpack.c.h.b16 %v3794
  %v3972 = vunpack.c.l.b16 %v3795
  %v3973 = vunpack.c.h.b16 %v3795
  %v3974 = vunpack.c.l.b16 %v3796
  %v3975 = vunpack.c.h.b16 %v3796
  %v3976 = vunpack.c.l.b16 %v3797
  %v3977 = vunpack.c.h.b16 %v3797
  %v3978 = vunpack.c.l.b16 %v3798
  %v3979 = vunpack.c.h.b16 %v3798
  %v3980 = vunpack.c.l.b16 %v3799
  %v3981 = vunpack.c.h.b16 %v3799
  %v3982 = vunpack.c.l.b16 %v3800
  %v3983 = vunpack.c.h.b16 %v3800
  %v3984 = vunpack.c.l.b16 %v3801
  %v3985 = vunpack.c.h.b16 %v3801
  %v3986 = vunpack.c.l.b16 %v3802
  %v3987 = vunpack.c.h.b16 %v3802
  %v3988 = vunpack.c.l.b16 %v3803
  %v3989 = vunpack.c.h.b16 %v3803
  %v3990 = vunpack.c.l.b16 %v3804
  %v3991 = vunpack.c.h.b16 %v3804
  %v3992 = vunpack.c.l.b16 %v3805
  %v3993 = vunpack.c.h.b16 %v3805
  %v3994 = vunpack.c.l.b16 %v3806
  %v3995 = vunpack.c.h.b16 %v3806
  %v3996 = vunpack.c.l.b16 %v3807
  %v3997 = vunpack.c.h.b16 %v3807
  %v3998 = vunpack.c.l.b16 %v3808
  %v3999 = vunpack.c.h.b16 %v3808
  %v4000 = vunpack.c.l.b16 %v3809
  %v4001 = vunpack.c.h.b16 %v3809
  %v4002 = vunpack.c.l.b16 %v3810
  %v4003 = vunpack.c.h.b16 %v3810
  %v4004 = vunpack.c.l.b16 %v3811
  %v4005 = vunpack.c.h.b16 %v3811
  %v4006 = vunpack.c.l.b16 %v3812
  %v4007 = vunpack.c.h.b16 %v3812
  %v4008 = vunpack.c.l.b16 %v3813
  %v4009 = vunpack.c.h.b16 %v3813
  %v4010 = vunpack.c.l.b16 %v3814
  %v4011 = vunpack.c.h.b16 %v3814
  %v4012 = vunpack.c.l.b16 %v3815
  %v4013 = vunpack.c.h.b16 %v3815
  %v4014 = vunpack.c.l.b16 %v3816
  %v4015 = vunpack.c.h.b16 %v3816
  %v4016 = vunpack.c.l.b16 %v3817
  %v4017 = vunpack.c.h.b16 %v3817
  %v4018 = vunpack.c.l.b16 %v3818
  %v4019 = vunpack.c.h.b16 %v3818
  %v4020 = vunpack.c.l.b16 %v3819
  %v4021 = vunpack.c.h.b16 %v3819
  %v4022 = vunpack.c.l.b16 %v3820
  %v4023 = vunpack.c.h.b16 %v3820
  %v4024 = vunpack.c.l.b16 %v3821
  %v4025 = vunpack.c.h.b16 %v3821
  %v4026 = vpack.c.b16 %v3900, %v3898
  %v4027 = vpack.c.b16 %v3901, %v3899
  %v4028 = vpack.c.b16 %v3904, %v3902
  %v4029 = vpack.c.b16 %v3905, %v3903
  %v4030 = vpack.c.b16 %v3908, %v3906
  %v4031 = vpack.c.b16 %v3909, %v3907
  %v4032 = vpack.c.b16 %v3912, %v3910
  %v4033 = vpack.c.b16 %v3913, %v3911
  %v4034 = vpack.c.b16 %v3916, %v3914
  %v4035 = vpack.c.b16 %v3917, %v3915
  %v4036 = vpack.c.b16 %v3920, %v3918
  %v4037 = vpack.c.b16 %v3921, %v3919
  %v4038 = vpack.c.b16 %v3924, %v3922
  %v4039 = vpack.c.b16 %v3925, %v3923
  %v4040 = vpack.c.b16 %v3928, %v3926
  %v4041 = vpack.c.b16 %v3929, %v3927
  %v4042 = vpack.c.b16 %v3932, %v3930
  %v4043 = vpack.c.b16 %v3933, %v3931
  %v4044 = vpack.c.b16 %v3936, %v3934
  %v4045 = vpack.c.b16 %v3937, %v3935
  %v4046 = vpack.c.b16 %v3940, %v3938
  %v4047 = vpack.c.b16 %v3941, %v3939
  %v4048 = vpack.c.b16 %v3944, %v3942
  %v4049 = vpack.c.b16 %v3945, %v3943
  %v4050 = vpack.c.b16 %v3948, %v3946
  %v4051 = vpack.c.b16 %v3949, %v3947
  %v4052 = vpack.c.b16 %v3952, %v3950
  %v4053 = vpack.c.b16 %v3953, %v3951
  %v4054 = vpack.c.b16 %v3956, %v3954
  %v4055 = vpack.c.b16 %v3957, %v3955
  %v4056 = vpack.c.b16 %v3960, %v3958
  %v4057 = vpack.c.b16 %v3961, %v3959
  %v4058 = vpack.c.b16 %v3964, %v3962
  %v4059 = vpack.c.b16 %v3965, %v3963
  %v4060 = vpack.c.b16 %v3968, %v3966
  %v4061 = vpack.c.b16 %v3969, %v3967
  %v4062 = vpack.c.b16 %v3972, %v3970
  %v4063 = vpack.c.b16 %v3973, %v3971
  %v4064 = vpack.c.b16 %v3976, %v3974
  %v4065 = vpack.c.b16 %v3977, %v3975
  %v4066 = vpack.c.b16 %v3980, %v3978
  %v4067 = vpack.c.b16 %v3981, %v3979
  %v4068 = vpack.c.b16 %v3984, %v3982
  %v4069 = vpack.c.b16 %v3985, %v3983
  %v4070 = vpack.c.b16 %v3988, %v3986
  %v4071 = vpack.c.b16 %v3989, %v3987
  %v4072 = vpack.c.b16 %v3992, %v3990
  %v4073 = vpack.c.b16 %v3993, %v3991
  %v4074 = vpack.c.b16 %v3996, %v3994
  %v4075 = vpack.c.b16 %v3997, %v3995
  %v4076 = vpack.c.b16 %v4000, %v3998
  %v4077 = vpack.c.b16 %v4001, %v3999
  %v4078 = vpack.c.b16 %v4004, %v4002
  %v4079 = vpack.c.b16 %v4005, %v4003
  %v4080 = vpack.c.b16 %v4008, %v4006
  %v4081 = vpack.c.b16 %v4009, %v4007
  %v4082 = vpack.c.b16 %v4012, %v4010
  %v4083 = vpack.c.b16 %v4013, %v4011
  %v4084 = vpack.c.b16 %v4016, %v4014
  %v4085 = vpack.c.b16 %v4017, %v4015
  %v4086 = vpack.c.b16 %v4020, %v4018
  %v4087 = vpack.c.b16 %v4021, %v4019
  %v4088 = vpack.c.b16 %v4024, %v4022
  %v4089 = vpack.c.b16 %v4025, %v4023
  %4154 = vmatprep.subr.bf16.mxu0 %v4027
  %4155 = vmatpush1.bf16.msra.mxu0 %v4026
  %4156 = vmatprep.subr.bf16.mxu0 %v4029
  %4157 = vmatpush1.bf16.msra.mxu0 %v4028
  %4158 = vmatprep.subr.bf16.mxu0 %v4031
  %4159 = vmatpush1.bf16.msra.mxu0 %v4030
  %4160 = vmatprep.subr.bf16.mxu0 %v4033
  %4161 = vmatpush1.bf16.msra.mxu0 %v4032
  %4162 = vmatprep.subr.bf16.mxu0 %v4035
  %4163 = vmatpush1.bf16.msra.mxu0 %v4034
  %4164 = vmatprep.subr.bf16.mxu0 %v4037
  %4165 = vmatpush1.bf16.msra.mxu0 %v4036
  %4166 = vmatprep.subr.bf16.mxu0 %v4039
  %4167 = vmatpush1.bf16.msra.mxu0 %v4038
  %4168 = vmatprep.subr.bf16.mxu0 %v4041
  %4169 = vmatpush1.bf16.msra.mxu0 %v4040
  %4170 = vmatprep.subr.bf16.mxu0 %v4043
  %4171 = vmatpush1.bf16.msra.mxu0 %v4042
  %4172 = vmatprep.subr.bf16.mxu0 %v4045
  %4173 = vmatpush1.bf16.msra.mxu0 %v4044
  %4174 = vmatprep.subr.bf16.mxu0 %v4047
  %4175 = vmatpush1.bf16.msra.mxu0 %v4046
  %4176 = vmatprep.subr.bf16.mxu0 %v4049
  %4177 = vmatpush1.bf16.msra.mxu0 %v4048
  %4178 = vmatprep.subr.bf16.mxu0 %v4051
  %4179 = vmatpush1.bf16.msra.mxu0 %v4050
  %4180 = vmatprep.subr.bf16.mxu0 %v4053
  %4181 = vmatpush1.bf16.msra.mxu0 %v4052
  %4182 = vmatprep.subr.bf16.mxu0 %v4055
  %4183 = vmatpush1.bf16.msra.mxu0 %v4054
  %4184 = vmatprep.subr.bf16.mxu0 %v4057
  %4185 = vmatpush1.bf16.msra.mxu0 %v4056
  %4186 = vmatprep.mubr.bf16.mxu0 %v3663
  %4187 = vmatmul.mubr.bf16.gmra.mrb[0].mxu0 %v3662
  %v4188 = vpop.f32.mrb[0].mxu0
  %v4189 = vadd.f32 %v3827, %v4188
  %v4190 = vpop.f32.mrb[0].mxu0
  %v4191 = vadd.f32 %v3831, %v4190
  %v4192 = vpop.f32.mrb[0].mxu0
  %v4193 = vadd.f32 %v3827, %v4192
  %v4194 = vpop.f32.mrb[0].mxu0
  %v4195 = vadd.f32 %v3831, %v4194
  %4196 = vmatprep.mubr.bf16.mxu0 %v3667
  %4197 = vmatmul.mubr.bf16.gmra.mrb[0].mxu0 %v3666
  %v4198 = vpop.f32.mrb[0].mxu0
  %v4199 = vadd.f32 %v3827, %v4198
  %v4200 = vpop.f32.mrb[0].mxu0
  %v4201 = vadd.f32 %v3831, %v4200
  %v4202 = vpop.f32.mrb[0].mxu0
  %v4203 = vadd.f32 %v3827, %v4202
  %v4204 = vpop.f32.mrb[0].mxu0
  %v4205 = vadd.f32 %v3831, %v4204
  %4206 = vmatprep.mubr.bf16.mxu0 %v3671
  %4207 = vmatmul.mubr.bf16.gmra.mrb[0].mxu0 %v3670
  %v4208 = vpop.f32.mrb[0].mxu0
  %v4209 = vadd.f32 %v3827, %v4208
  %v4210 = vpop.f32.mrb[0].mxu0
  %v4211 = vadd.f32 %v3831, %v4210
  %v4212 = vpop.f32.mrb[0].mxu0
  %v4213 = vadd.f32 %v3827, %v4212
  %v4214 = vpop.f32.mrb[0].mxu0
  %v4215 = vadd.f32 %v3831, %v4214
  %4216 = vmatprep.mubr.bf16.mxu0 %v3675
  %4217 = vmatmul.mubr.bf16.gmra.mrb[0].mxu0 %v3674
  %v4218 = vpop.f32.mrb[0].mxu0
  %v4219 = vadd.f32 %v3827, %v4218
  %v4220 = vpop.f32.mrb[0].mxu0
  %v4221 = vadd.f32 %v3831, %v4220
  %v4222 = vpop.f32.mrb[0].mxu0
  %v4223 = vadd.f32 %v3827, %v4222
  %v4224 = vpop.f32.mrb[0].mxu0
  %v4225 = vadd.f32 %v3831, %v4224
  %4226 = vmatprep.mubr.bf16.mxu0 %v3679
  %4227 = vmatmul.mubr.bf16.gmra.mrb[0].mxu0 %v3678
  %v4228 = vpop.f32.mrb[0].mxu0
  %v4229 = vadd.f32 %v3827, %v4228
  %v4230 = vpop.f32.mrb[0].mxu0
  %v4231 = vadd.f32 %v3831, %v4230
  %v4232 = vpop.f32.mrb[0].mxu0
  %v4233 = vadd.f32 %v3827, %v4232
  %v4234 = vpop.f32.mrb[0].mxu0
  %v4235 = vadd.f32 %v3831, %v4234
  %4236 = vmatprep.mubr.bf16.mxu0 %v3683
  %4237 = vmatmul.mubr.bf16.gmra.mrb[0].mxu0 %v3682
  %v4238 = vpop.f32.mrb[0].mxu0
  %v4239 = vadd.f32 %v3827, %v4238
  %v4240 = vpop.f32.mrb[0].mxu0
  %v4241 = vadd.f32 %v3831, %v4240
  %v4242 = vpop.f32.mrb[0].mxu0
  %v4243 = vadd.f32 %v3827, %v4242
  %v4244 = vpop.f32.mrb[0].mxu0
  %v4245 = vadd.f32 %v3831, %v4244
  %4246 = vmatprep.mubr.bf16.mxu0 %v3687
  %4247 = vmatmul.mubr.bf16.gmra.mrb[0].mxu0 %v3686
  %v4248 = vpop.f32.mrb[0].mxu0
  %v4249 = vadd.f32 %v3827, %v4248
  %v4250 = vpop.f32.mrb[0].mxu0
  %v4251 = vadd.f32 %v3831, %v4250
  %v4252 = vpop.f32.mrb[0].mxu0
  %v4253 = vadd.f32 %v3827, %v4252
  %v4254 = vpop.f32.mrb[0].mxu0
  %v4255 = vadd.f32 %v3831, %v4254
  %4256 = vmatprep.mubr.bf16.mxu0 %v3691
  %4257 = vmatmul.mubr.bf16.gmra.mrb[0].mxu0 %v3690
  %v4258 = vpop.f32.mrb[0].mxu0
  %v4259 = vadd.f32 %v3827, %v4258
  %v4260 = vpop.f32.mrb[0].mxu0
  %v4261 = vadd.f32 %v3831, %v4260
  %v4262 = vpop.f32.mrb[0].mxu0
  %v4263 = vadd.f32 %v3827, %v4262
  %v4264 = vpop.f32.mrb[0].mxu0
  %v4265 = vadd.f32 %v3831, %v4264
  %4266 = vmatprep.mubr.bf16.mxu0 %v3695
  %4267 = vmatmul.mubr.bf16.gmra.mrb[0].mxu0 %v3694
  %v4268 = vpop.f32.mrb[0].mxu0
  %v4269 = vadd.f32 %v3827, %v4268
  %v4270 = vpop.f32.mrb[0].mxu0
  %v4271 = vadd.f32 %v3831, %v4270
  %v4272 = vpop.f32.mrb[0].mxu0
  %v4273 = vadd.f32 %v3827, %v4272
  %v4274 = vpop.f32.mrb[0].mxu0
  %v4275 = vadd.f32 %v3831, %v4274
  %4276 = vmatprep.mubr.bf16.mxu0 %v3699
  %4277 = vmatmul.mubr.bf16.gmra.mrb[0].mxu0 %v3698
  %v4278 = vpop.f32.mrb[0].mxu0
  %v4279 = vadd.f32 %v3827, %v4278
  %v4280 = vpop.f32.mrb[0].mxu0
  %v4281 = vadd.f32 %v3831, %v4280
  %v4282 = vpop.f32.mrb[0].mxu0
  %v4283 = vadd.f32 %v3827, %v4282
  %v4284 = vpop.f32.mrb[0].mxu0
  %v4285 = vadd.f32 %v3831, %v4284
  %4286 = vmatprep.mubr.bf16.mxu0 %v3703
  %4287 = vmatmul.mubr.bf16.gmra.mrb[0].mxu0 %v3702
  %v4288 = vpop.f32.mrb[0].mxu0
  %v4289 = vadd.f32 %v3827, %v4288
  %v4290 = vpop.f32.mrb[0].mxu0
  %v4291 = vadd.f32 %v3831, %v4290
  %v4292 = vpop.f32.mrb[0].mxu0
  %v4293 = vadd.f32 %v3827, %v4292
  %v4294 = vpop.f32.mrb[0].mxu0
  %v4295 = vadd.f32 %v3831, %v4294
  %4296 = vmatprep.mubr.bf16.mxu0 %v3707
  %4297 = vmatmul.mubr.bf16.gmra.mrb[0].mxu0 %v3706
  %v4298 = vpop.f32.mrb[0].mxu0
  %v4299 = vadd.f32 %v3827, %v4298
  %v4300 = vpop.f32.mrb[0].mxu0
  %v4301 = vadd.f32 %v3831, %v4300
  %v4302 = vpop.f32.mrb[0].mxu0
  %v4303 = vadd.f32 %v3827, %v4302
  %v4304 = vpop.f32.mrb[0].mxu0
  %v4305 = vadd.f32 %v3831, %v4304
  %4306 = vmatprep.mubr.bf16.mxu0 %v3711
  %4307 = vmatmul.mubr.bf16.gmra.mrb[0].mxu0 %v3710
  %v4308 = vpop.f32.mrb[0].mxu0
  %v4309 = vadd.f32 %v3827, %v4308
  %v4310 = vpop.f32.mrb[0].mxu0
  %v4311 = vadd.f32 %v3831, %v4310
  %v4312 = vpop.f32.mrb[0].mxu0
  %v4313 = vadd.f32 %v3827, %v4312
  %v4314 = vpop.f32.mrb[0].mxu0
  %v4315 = vadd.f32 %v3831, %v4314
  %4316 = vmatprep.mubr.bf16.mxu0 %v3715
  %4317 = vmatmul.mubr.bf16.gmra.mrb[0].mxu0 %v3714
  %v4318 = vpop.f32.mrb[0].mxu0
  %v4319 = vadd.f32 %v3827, %v4318
  %v4320 = vpop.f32.mrb[0].mxu0
  %v4321 = vadd.f32 %v3831, %v4320
  %v4322 = vpop.f32.mrb[0].mxu0
  %v4323 = vadd.f32 %v3827, %v4322
  %v4324 = vpop.f32.mrb[0].mxu0
  %v4325 = vadd.f32 %v3831, %v4324
  %4326 = vmatprep.mubr.bf16.mxu0 %v3719
  %4327 = vmatmul.mubr.bf16.gmra.mrb[0].mxu0 %v3718
  %v4328 = vpop.f32.mrb[0].mxu0
  %v4329 = vadd.f32 %v3827, %v4328
  %v4330 = vpop.f32.mrb[0].mxu0
  %v4331 = vadd.f32 %v3831, %v4330
  %v4332 = vpop.f32.mrb[0].mxu0
  %v4333 = vadd.f32 %v3827, %v4332
  %v4334 = vpop.f32.mrb[0].mxu0
  %v4335 = vadd.f32 %v3831, %v4334
  %4336 = vmatprep.mubr.bf16.mxu0 %v3723
  %4337 = vmatmul.mubr.bf16.gmra.mrb[0].mxu0 %v3722
  %v4338 = vpop.f32.mrb[0].mxu0
  %v4339 = vadd.f32 %v3827, %v4338
  %v4340 = vpop.f32.mrb[0].mxu0
  %v4341 = vadd.f32 %v3831, %v4340
  %v4342 = vpop.f32.mrb[0].mxu0
  %v4343 = vadd.f32 %v3827, %v4342
  %v4344 = vpop.f32.mrb[0].mxu0
  %v4345 = vadd.f32 %v3831, %v4344
  %4346 = vmatprep.mubr.bf16.mxu0 %v3727
  %4347 = vmatmul.mubr.bf16.gmra.mrb[0].mxu0 %v3726
  %v4348 = vpop.f32.mrb[0].mxu0
  %v4349 = vadd.f32 %v3827, %v4348
  %v4350 = vpop.f32.mrb[0].mxu0
  %v4351 = vadd.f32 %v3831, %v4350
  %v4352 = vpop.f32.mrb[0].mxu0
  %v4353 = vadd.f32 %v3827, %v4352
  %v4354 = vpop.f32.mrb[0].mxu0
  %v4355 = vadd.f32 %v3831, %v4354
  %4356 = vmatprep.mubr.bf16.mxu0 %v3731
  %4357 = vmatmul.mubr.bf16.gmra.mrb[0].mxu0 %v3730
  %v4358 = vpop.f32.mrb[0].mxu0
  %v4359 = vadd.f32 %v3827, %v4358
  %v4360 = vpop.f32.mrb[0].mxu0
  %v4361 = vadd.f32 %v3831, %v4360
  %v4362 = vpop.f32.mrb[0].mxu0
  %v4363 = vadd.f32 %v3827, %v4362
  %v4364 = vpop.f32.mrb[0].mxu0
  %v4365 = vadd.f32 %v3831, %v4364
  %4366 = vmatprep.mubr.bf16.mxu0 %v3735
  %4367 = vmatmul.mubr.bf16.gmra.mrb[0].mxu0 %v3734
  %v4368 = vpop.f32.mrb[0].mxu0
  %v4369 = vadd.f32 %v3827, %v4368
  %v4370 = vpop.f32.mrb[0].mxu0
  %v4371 = vadd.f32 %v3831, %v4370
  %v4372 = vpop.f32.mrb[0].mxu0
  %v4373 = vadd.f32 %v3827, %v4372
  %v4374 = vpop.f32.mrb[0].mxu0
  %v4375 = vadd.f32 %v3831, %v4374
  %4376 = vmatprep.mubr.bf16.mxu0 %v3739
  %4377 = vmatmul.mubr.bf16.gmra.mrb[0].mxu0 %v3738
  %v4378 = vpop.f32.mrb[0].mxu0
  %v4379 = vadd.f32 %v3827, %v4378
  %v4380 = vpop.f32.mrb[0].mxu0
  %v4381 = vadd.f32 %v3831, %v4380
  %v4382 = vpop.f32.mrb[0].mxu0
  %v4383 = vadd.f32 %v3827, %v4382
  %v4384 = vpop.f32.mrb[0].mxu0
  %v4385 = vadd.f32 %v3831, %v4384
  %4386 = vmatprep.mubr.bf16.mxu0 %v3743
  %4387 = vmatmul.mubr.bf16.gmra.mrb[0].mxu0 %v3742
  %v4388 = vpop.f32.mrb[0].mxu0
  %v4389 = vadd.f32 %v3827, %v4388
  %v4390 = vpop.f32.mrb[0].mxu0
  %v4391 = vadd.f32 %v3831, %v4390
  %v4392 = vpop.f32.mrb[0].mxu0
  %v4393 = vadd.f32 %v3827, %v4392
  %v4394 = vpop.f32.mrb[0].mxu0
  %v4395 = vadd.f32 %v3831, %v4394
  %4396 = vmatprep.mubr.bf16.mxu0 %v3747
  %4397 = vmatmul.mubr.bf16.gmra.mrb[0].mxu0 %v3746
  %v4398 = vpop.f32.mrb[0].mxu0
  %v4399 = vadd.f32 %v3827, %v4398
  %v4400 = vpop.f32.mrb[0].mxu0
  %v4401 = vadd.f32 %v3831, %v4400
  %v4402 = vpop.f32.mrb[0].mxu0
  %v4403 = vadd.f32 %v3827, %v4402
  %v4404 = vpop.f32.mrb[0].mxu0
  %v4405 = vadd.f32 %v3831, %v4404
  %4406 = vmatprep.mubr.bf16.mxu0 %v3751
  %4407 = vmatmul.mubr.bf16.gmra.mrb[0].mxu0 %v3750
  %v4408 = vpop.f32.mrb[0].mxu0
  %v4409 = vadd.f32 %v3827, %v4408
  %v4410 = vpop.f32.mrb[0].mxu0
  %v4411 = vadd.f32 %v3831, %v4410
  %v4412 = vpop.f32.mrb[0].mxu0
  %v4413 = vadd.f32 %v3827, %v4412
  %v4414 = vpop.f32.mrb[0].mxu0
  %v4415 = vadd.f32 %v3831, %v4414
  %4416 = vmatprep.mubr.bf16.mxu0 %v3755
  %4417 = vmatmul.mubr.bf16.gmra.mrb[0].mxu0 %v3754
  %v4418 = vpop.f32.mrb[0].mxu0
  %v4419 = vadd.f32 %v3827, %v4418
  %v4420 = vpop.f32.mrb[0].mxu0
  %v4421 = vadd.f32 %v3831, %v4420
  %v4422 = vpop.f32.mrb[0].mxu0
  %v4423 = vadd.f32 %v3827, %v4422
  %v4424 = vpop.f32.mrb[0].mxu0
  %v4425 = vadd.f32 %v3831, %v4424
  %4426 = vdwg.mxu0
  %4427 = vmatprep.subr.bf16.mxu0 %v4059
  %4428 = vmatpush1.bf16.msra.mxu0 %v4058
  %4429 = vmatprep.subr.bf16.mxu0 %v4061
  %4430 = vmatpush1.bf16.msra.mxu0 %v4060
  %4431 = vmatprep.subr.bf16.mxu0 %v4063
  %4432 = vmatpush1.bf16.msra.mxu0 %v4062
  %4433 = vmatprep.subr.bf16.mxu0 %v4065
  %4434 = vmatpush1.bf16.msra.mxu0 %v4064
  %4435 = vmatprep.subr.bf16.mxu0 %v4067
  %4436 = vmatpush1.bf16.msra.mxu0 %v4066
  %4437 = vmatprep.subr.bf16.mxu0 %v4069
  %4438 = vmatpush1.bf16.msra.mxu0 %v4068
  %4439 = vmatprep.subr.bf16.mxu0 %v4071
  %4440 = vmatpush1.bf16.msra.mxu0 %v4070
  %4441 = vmatprep.subr.bf16.mxu0 %v4073
  %4442 = vmatpush1.bf16.msra.mxu0 %v4072
  %4443 = vmatprep.subr.bf16.mxu0 %v4075
  %4444 = vmatpush1.bf16.msra.mxu0 %v4074
  %4445 = vmatprep.subr.bf16.mxu0 %v4077
  %4446 = vmatpush1.bf16.msra.mxu0 %v4076
  %4447 = vmatprep.subr.bf16.mxu0 %v4079
  %4448 = vmatpush1.bf16.msra.mxu0 %v4078
  %4449 = vmatprep.subr.bf16.mxu0 %v4081
  %4450 = vmatpush1.bf16.msra.mxu0 %v4080
  %4451 = vmatprep.subr.bf16.mxu0 %v4083
  %4452 = vmatpush1.bf16.msra.mxu0 %v4082
  %4453 = vmatprep.subr.bf16.mxu0 %v4085
  %4454 = vmatpush1.bf16.msra.mxu0 %v4084
  %4455 = vmatprep.subr.bf16.mxu0 %v4087
  %4456 = vmatpush1.bf16.msra.mxu0 %v4086
  %4457 = vmatprep.subr.bf16.mxu0 %v4089
  %4458 = vmatpush1.bf16.msra.mxu0 %v4088
  %4459 = vmatprep.mubr.bf16.mxu0 %v3665
  %4460 = vmatmul.mubr.bf16.gmra.mrb[0].mxu0 %v3664
  %v4461 = vpop.f32.mrb[0].mxu0
  %v4462 = vadd.f32 %v4189, %v4461
  %v4463 = vpop.f32.mrb[0].mxu0
  %v4464 = vadd.f32 %v4191, %v4463
  %v4465 = vpop.f32.mrb[0].mxu0
  %v4466 = vadd.f32 %v4193, %v4465
  %v4467 = vpop.f32.mrb[0].mxu0
  %v4468 = vadd.f32 %v4195, %v4467
  %4469 = vmatprep.mubr.bf16.mxu0 %v3669
  %4470 = vmatmul.mubr.bf16.gmra.mrb[0].mxu0 %v3668
  %v4471 = vpop.f32.mrb[0].mxu0
  %v4472 = vadd.f32 %v4199, %v4471
  %v4473 = vpop.f32.mrb[0].mxu0
  %v4474 = vadd.f32 %v4201, %v4473
  %v4475 = vpop.f32.mrb[0].mxu0
  %v4476 = vadd.f32 %v4203, %v4475
  %v4477 = vpop.f32.mrb[0].mxu0
  %v4478 = vadd.f32 %v4205, %v4477
  %4479 = vmatprep.mubr.bf16.mxu0 %v3673
  %4480 = vmatmul.mubr.bf16.gmra.mrb[0].mxu0 %v3672
  %v4481 = vpop.f32.mrb[0].mxu0
  %v4482 = vadd.f32 %v4209, %v4481
  %v4483 = vpop.f32.mrb[0].mxu0
  %v4484 = vadd.f32 %v4211, %v4483
  %v4485 = vpop.f32.mrb[0].mxu0
  %v4486 = vadd.f32 %v4213, %v4485
  %v4487 = vpop.f32.mrb[0].mxu0
  %v4488 = vadd.f32 %v4215, %v4487
  %4489 = vmatprep.mubr.bf16.mxu0 %v3677
  %4490 = vmatmul.mubr.bf16.gmra.mrb[0].mxu0 %v3676
  %v4491 = vpop.f32.mrb[0].mxu0
  %v4492 = vadd.f32 %v4219, %v4491
  %v4493 = vpop.f32.mrb[0].mxu0
  %v4494 = vadd.f32 %v4221, %v4493
  %v4495 = vpop.f32.mrb[0].mxu0
  %v4496 = vadd.f32 %v4223, %v4495
  %v4497 = vpop.f32.mrb[0].mxu0
  %v4498 = vadd.f32 %v4225, %v4497
  %4499 = vmatprep.mubr.bf16.mxu0 %v3681
  %4500 = vmatmul.mubr.bf16.gmra.mrb[0].mxu0 %v3680
  %v4501 = vpop.f32.mrb[0].mxu0
  %v4502 = vadd.f32 %v4229, %v4501
  %v4503 = vpop.f32.mrb[0].mxu0
  %v4504 = vadd.f32 %v4231, %v4503
  %v4505 = vpop.f32.mrb[0].mxu0
  %v4506 = vadd.f32 %v4233, %v4505
  %v4507 = vpop.f32.mrb[0].mxu0
  %v4508 = vadd.f32 %v4235, %v4507
  %4509 = vmatprep.mubr.bf16.mxu0 %v3685
  %4510 = vmatmul.mubr.bf16.gmra.mrb[0].mxu0 %v3684
  %v4511 = vpop.f32.mrb[0].mxu0
  %v4512 = vadd.f32 %v4239, %v4511
  %v4513 = vpop.f32.mrb[0].mxu0
  %v4514 = vadd.f32 %v4241, %v4513
  %v4515 = vpop.f32.mrb[0].mxu0
  %v4516 = vadd.f32 %v4243, %v4515
  %v4517 = vpop.f32.mrb[0].mxu0
  %v4518 = vadd.f32 %v4245, %v4517
  %4519 = vmatprep.mubr.bf16.mxu0 %v3689
  %4520 = vmatmul.mubr.bf16.gmra.mrb[0].mxu0 %v3688
  %v4521 = vpop.f32.mrb[0].mxu0
  %v4522 = vadd.f32 %v4249, %v4521
  %v4523 = vpop.f32.mrb[0].mxu0
  %v4524 = vadd.f32 %v4251, %v4523
  %v4525 = vpop.f32.mrb[0].mxu0
  %v4526 = vadd.f32 %v4253, %v4525
  %v4527 = vpop.f32.mrb[0].mxu0
  %v4528 = vadd.f32 %v4255, %v4527
  %4529 = vmatprep.mubr.bf16.mxu0 %v3693
  %4530 = vmatmul.mubr.bf16.gmra.mrb[0].mxu0 %v3692
  %v4531 = vpop.f32.mrb[0].mxu0
  %v4532 = vadd.f32 %v4259, %v4531
  %v4533 = vpop.f32.mrb[0].mxu0
  %v4534 = vadd.f32 %v4261, %v4533
  %v4535 = vpop.f32.mrb[0].mxu0
  %v4536 = vadd.f32 %v4263, %v4535
  %v4537 = vpop.f32.mrb[0].mxu0
  %v4538 = vadd.f32 %v4265, %v4537
  %4539 = vmatprep.mubr.bf16.mxu0 %v3697
  %4540 = vmatmul.mubr.bf16.gmra.mrb[0].mxu0 %v3696
  %v4541 = vpop.f32.mrb[0].mxu0
  %v4542 = vadd.f32 %v4269, %v4541
  %v4543 = vpop.f32.mrb[0].mxu0
  %v4544 = vadd.f32 %v4271, %v4543
  %v4545 = vpop.f32.mrb[0].mxu0
  %v4546 = vadd.f32 %v4273, %v4545
  %v4547 = vpop.f32.mrb[0].mxu0
  %v4548 = vadd.f32 %v4275, %v4547
  %4549 = vmatprep.mubr.bf16.mxu0 %v3701
  %4550 = vmatmul.mubr.bf16.gmra.mrb[0].mxu0 %v3700
  %v4551 = vpop.f32.mrb[0].mxu0
  %v4552 = vadd.f32 %v4279, %v4551
  %v4553 = vpop.f32.mrb[0].mxu0
  %v4554 = vadd.f32 %v4281, %v4553
  %v4555 = vpop.f32.mrb[0].mxu0
  %v4556 = vadd.f32 %v4283, %v4555
  %v4557 = vpop.f32.mrb[0].mxu0
  %v4558 = vadd.f32 %v4285, %v4557
  %4559 = vmatprep.mubr.bf16.mxu0 %v3705
  %4560 = vmatmul.mubr.bf16.gmra.mrb[0].mxu0 %v3704
  %v4561 = vpop.f32.mrb[0].mxu0
  %v4562 = vadd.f32 %v4289, %v4561
  %v4563 = vpop.f32.mrb[0].mxu0
  %v4564 = vadd.f32 %v4291, %v4563
  %v4565 = vpop.f32.mrb[0].mxu0
  %v4566 = vadd.f32 %v4293, %v4565
  %v4567 = vpop.f32.mrb[0].mxu0
  %v4568 = vadd.f32 %v4295, %v4567
  %4569 = vmatprep.mubr.bf16.mxu0 %v3709
  %4570 = vmatmul.mubr.bf16.gmra.mrb[0].mxu0 %v3708
  %v4571 = vpop.f32.mrb[0].mxu0
  %v4572 = vadd.f32 %v4299, %v4571
  %v4573 = vpop.f32.mrb[0].mxu0
  %v4574 = vadd.f32 %v4301, %v4573
  %v4575 = vpop.f32.mrb[0].mxu0
  %v4576 = vadd.f32 %v4303, %v4575
  %v4577 = vpop.f32.mrb[0].mxu0
  %v4578 = vadd.f32 %v4305, %v4577
  %4579 = vmatprep.mubr.bf16.mxu0 %v3713
  %4580 = vmatmul.mubr.bf16.gmra.mrb[0].mxu0 %v3712
  %v4581 = vpop.f32.mrb[0].mxu0
  %v4582 = vadd.f32 %v4309, %v4581
  %v4583 = vpop.f32.mrb[0].mxu0
  %v4584 = vadd.f32 %v4311, %v4583
  %v4585 = vpop.f32.mrb[0].mxu0
  %v4586 = vadd.f32 %v4313, %v4585
  %v4587 = vpop.f32.mrb[0].mxu0
  %v4588 = vadd.f32 %v4315, %v4587
  %4589 = vmatprep.mubr.bf16.mxu0 %v3717
  %4590 = vmatmul.mubr.bf16.gmra.mrb[0].mxu0 %v3716
  %v4591 = vpop.f32.mrb[0].mxu0
  %v4592 = vadd.f32 %v4319, %v4591
  %v4593 = vpop.f32.mrb[0].mxu0
  %v4594 = vadd.f32 %v4321, %v4593
  %v4595 = vpop.f32.mrb[0].mxu0
  %v4596 = vadd.f32 %v4323, %v4595
  %v4597 = vpop.f32.mrb[0].mxu0
  %v4598 = vadd.f32 %v4325, %v4597
  %4599 = vmatprep.mubr.bf16.mxu0 %v3721
  %4600 = vmatmul.mubr.bf16.gmra.mrb[0].mxu0 %v3720
  %v4601 = vpop.f32.mrb[0].mxu0
  %v4602 = vadd.f32 %v4329, %v4601
  %v4603 = vpop.f32.mrb[0].mxu0
  %v4604 = vadd.f32 %v4331, %v4603
  %v4605 = vpop.f32.mrb[0].mxu0
  %v4606 = vadd.f32 %v4333, %v4605
  %v4607 = vpop.f32.mrb[0].mxu0
  %v4608 = vadd.f32 %v4335, %v4607
  %4609 = vmatprep.mubr.bf16.mxu0 %v3725
  %4610 = vmatmul.mubr.bf16.gmra.mrb[0].mxu0 %v3724
  %v4611 = vpop.f32.mrb[0].mxu0
  %v4612 = vadd.f32 %v4339, %v4611
  %v4613 = vpop.f32.mrb[0].mxu0
  %v4614 = vadd.f32 %v4341, %v4613
  %v4615 = vpop.f32.mrb[0].mxu0
  %v4616 = vadd.f32 %v4343, %v4615
  %v4617 = vpop.f32.mrb[0].mxu0
  %v4618 = vadd.f32 %v4345, %v4617
  %4619 = vmatprep.mubr.bf16.mxu0 %v3729
  %4620 = vmatmul.mubr.bf16.gmra.mrb[0].mxu0 %v3728
  %v4621 = vpop.f32.mrb[0].mxu0
  %v4622 = vadd.f32 %v4349, %v4621
  %v4623 = vpop.f32.mrb[0].mxu0
  %v4624 = vadd.f32 %v4351, %v4623
  %v4625 = vpop.f32.mrb[0].mxu0
  %v4626 = vadd.f32 %v4353, %v4625
  %v4627 = vpop.f32.mrb[0].mxu0
  %v4628 = vadd.f32 %v4355, %v4627
  %4629 = vmatprep.mubr.bf16.mxu0 %v3733
  %4630 = vmatmul.mubr.bf16.gmra.mrb[0].mxu0 %v3732
  %v4631 = vpop.f32.mrb[0].mxu0
  %v4632 = vadd.f32 %v4359, %v4631
  %v4633 = vpop.f32.mrb[0].mxu0
  %v4634 = vadd.f32 %v4361, %v4633
  %v4635 = vpop.f32.mrb[0].mxu0
  %v4636 = vadd.f32 %v4363, %v4635
  %v4637 = vpop.f32.mrb[0].mxu0
  %v4638 = vadd.f32 %v4365, %v4637
  %4639 = vmatprep.mubr.bf16.mxu0 %v3737
  %4640 = vmatmul.mubr.bf16.gmra.mrb[0].mxu0 %v3736
  %v4641 = vpop.f32.mrb[0].mxu0
  %v4642 = vadd.f32 %v4369, %v4641
  %v4643 = vpop.f32.mrb[0].mxu0
  %v4644 = vadd.f32 %v4371, %v4643
  %v4645 = vpop.f32.mrb[0].mxu0
  %v4646 = vadd.f32 %v4373, %v4645
  %v4647 = vpop.f32.mrb[0].mxu0
  %v4648 = vadd.f32 %v4375, %v4647
  %4649 = vmatprep.mubr.bf16.mxu0 %v3741
  %4650 = vmatmul.mubr.bf16.gmra.mrb[0].mxu0 %v3740
  %v4651 = vpop.f32.mrb[0].mxu0
  %v4652 = vadd.f32 %v4379, %v4651
  %v4653 = vpop.f32.mrb[0].mxu0
  %v4654 = vadd.f32 %v4381, %v4653
  %v4655 = vpop.f32.mrb[0].mxu0
  %v4656 = vadd.f32 %v4383, %v4655
  %v4657 = vpop.f32.mrb[0].mxu0
  %v4658 = vadd.f32 %v4385, %v4657
  %4659 = vmatprep.mubr.bf16.mxu0 %v3745
  %4660 = vmatmul.mubr.bf16.gmra.mrb[0].mxu0 %v3744
  %v4661 = vpop.f32.mrb[0].mxu0
  %v4662 = vadd.f32 %v4389, %v4661
  %v4663 = vpop.f32.mrb[0].mxu0
  %v4664 = vadd.f32 %v4391, %v4663
  %v4665 = vpop.f32.mrb[0].mxu0
  %v4666 = vadd.f32 %v4393, %v4665
  %v4667 = vpop.f32.mrb[0].mxu0
  %v4668 = vadd.f32 %v4395, %v4667
  %4669 = vmatprep.mubr.bf16.mxu0 %v3749
  %4670 = vmatmul.mubr.bf16.gmra.mrb[0].mxu0 %v3748
  %v4671 = vpop.f32.mrb[0].mxu0
  %v4672 = vadd.f32 %v4399, %v4671
  %v4673 = vpop.f32.mrb[0].mxu0
  %v4674 = vadd.f32 %v4401, %v4673
  %v4675 = vpop.f32.mrb[0].mxu0
  %v4676 = vadd.f32 %v4403, %v4675
  %v4677 = vpop.f32.mrb[0].mxu0
  %v4678 = vadd.f32 %v4405, %v4677
  %4679 = vmatprep.mubr.bf16.mxu0 %v3753
  %4680 = vmatmul.mubr.bf16.gmra.mrb[0].mxu0 %v3752
  %v4681 = vpop.f32.mrb[0].mxu0
  %v4682 = vadd.f32 %v4409, %v4681
  %v4683 = vpop.f32.mrb[0].mxu0
  %v4684 = vadd.f32 %v4411, %v4683
  %v4685 = vpop.f32.mrb[0].mxu0
  %v4686 = vadd.f32 %v4413, %v4685
  %v4687 = vpop.f32.mrb[0].mxu0
  %v4688 = vadd.f32 %v4415, %v4687
  %4689 = vmatprep.mubr.bf16.mxu0 %v3757
  %4690 = vmatmul.mubr.bf16.gmra.mrb[0].mxu0 %v3756
  %v4691 = vpop.f32.mrb[0].mxu0
  %v4692 = vadd.f32 %v4419, %v4691
  %v4693 = vpop.f32.mrb[0].mxu0
  %v4694 = vadd.f32 %v4421, %v4693
  %v4695 = vpop.f32.mrb[0].mxu0
  %v4696 = vadd.f32 %v4423, %v4695
  %v4697 = vpop.f32.mrb[0].mxu0
  %v4698 = vadd.f32 %v4425, %v4697
  %4699 = vdwg.mxu0
  %v4700 = vmax.f32 %v4462, 0.0
  %v4701 = vmax.f32 %v4464, 0.0
  %v4702 = vmax.f32 %v4466, 0.0
  %v4703 = vmax.f32 %v4468, 0.0
  %v4704 = vmax.f32 %v4472, 0.0
  %v4705 = vmax.f32 %v4474, 0.0
  %v4706 = vmax.f32 %v4476, 0.0
  %v4707 = vmax.f32 %v4478, 0.0
  %v4708 = vmax.f32 %v4482, 0.0
  %v4709 = vmax.f32 %v4484, 0.0
  %v4710 = vmax.f32 %v4486, 0.0
  %v4711 = vmax.f32 %v4488, 0.0
  %v4712 = vmax.f32 %v4492, 0.0
  %v4713 = vmax.f32 %v4494, 0.0
  %v4714 = vmax.f32 %v4496, 0.0
  %v4715 = vmax.f32 %v4498, 0.0
  %v4716 = vmax.f32 %v4502, 0.0
  %v4717 = vmax.f32 %v4504, 0.0
  %v4718 = vmax.f32 %v4506, 0.0
  %v4719 = vmax.f32 %v4508, 0.0
  %v4720 = vmax.f32 %v4512, 0.0
  %v4721 = vmax.f32 %v4514, 0.0
  %v4722 = vmax.f32 %v4516, 0.0
  %v4723 = vmax.f32 %v4518, 0.0
  %v4724 = vmax.f32 %v4522, 0.0
  %v4725 = vmax.f32 %v4524, 0.0
  %v4726 = vmax.f32 %v4526, 0.0
  %v4727 = vmax.f32 %v4528, 0.0
  %v4728 = vmax.f32 %v4532, 0.0
  %v4729 = vmax.f32 %v4534, 0.0
  %v4730 = vmax.f32 %v4536, 0.0
  %v4731 = vmax.f32 %v4538, 0.0
  %v4732 = vmax.f32 %v4542, 0.0
  %v4733 = vmax.f32 %v4544, 0.0
  %v4734 = vmax.f32 %v4546, 0.0
  %v4735 = vmax.f32 %v4548, 0.0
  %v4736 = vmax.f32 %v4552, 0.0
  %v4737 = vmax.f32 %v4554, 0.0
  %v4738 = vmax.f32 %v4556, 0.0
  %v4739 = vmax.f32 %v4558, 0.0
  %v4740 = vmax.f32 %v4562, 0.0
  %v4741 = vmax.f32 %v4564, 0.0
  %v4742 = vmax.f32 %v4566, 0.0
  %v4743 = vmax.f32 %v4568, 0.0
  %v4744 = vmax.f32 %v4572, 0.0
  %v4745 = vmax.f32 %v4574, 0.0
  %v4746 = vmax.f32 %v4576, 0.0
  %v4747 = vmax.f32 %v4578, 0.0
  %v4748 = vmax.f32 %v4582, 0.0
  %v4749 = vmax.f32 %v4584, 0.0
  %v4750 = vmax.f32 %v4586, 0.0
  %v4751 = vmax.f32 %v4588, 0.0
  %v4752 = vmax.f32 %v4592, 0.0
  %v4753 = vmax.f32 %v4594, 0.0
  %v4754 = vmax.f32 %v4596, 0.0
  %v4755 = vmax.f32 %v4598, 0.0
  %v4756 = vmax.f32 %v4602, 0.0
  %v4757 = vmax.f32 %v4604, 0.0
  %v4758 = vmax.f32 %v4606, 0.0
  %v4759 = vmax.f32 %v4608, 0.0
  %v4760 = vmax.f32 %v4612, 0.0
  %v4761 = vmax.f32 %v4614, 0.0
  %v4762 = vmax.f32 %v4616, 0.0
  %v4763 = vmax.f32 %v4618, 0.0
  %v4764 = vmax.f32 %v4622, 0.0
  %v4765 = vmax.f32 %v4624, 0.0
  %v4766 = vmax.f32 %v4626, 0.0
  %v4767 = vmax.f32 %v4628, 0.0
  %v4768 = vmax.f32 %v4632, 0.0
  %v4769 = vmax.f32 %v4634, 0.0
  %v4770 = vmax.f32 %v4636, 0.0
  %v4771 = vmax.f32 %v4638, 0.0
  %v4772 = vmax.f32 %v4642, 0.0
  %v4773 = vmax.f32 %v4644, 0.0
  %v4774 = vmax.f32 %v4646, 0.0
  %v4775 = vmax.f32 %v4648, 0.0
  %v4776 = vmax.f32 %v4652, 0.0
  %v4777 = vmax.f32 %v4654, 0.0
  %v4778 = vmax.f32 %v4656, 0.0
  %v4779 = vmax.f32 %v4658, 0.0
  %v4780 = vmax.f32 %v4662, 0.0
  %v4781 = vmax.f32 %v4664, 0.0
  %v4782 = vmax.f32 %v4666, 0.0
  %v4783 = vmax.f32 %v4668, 0.0
  %v4784 = vmax.f32 %v4672, 0.0
  %v4785 = vmax.f32 %v4674, 0.0
  %v4786 = vmax.f32 %v4676, 0.0
  %v4787 = vmax.f32 %v4678, 0.0
  %v4788 = vmax.f32 %v4682, 0.0
  %v4789 = vmax.f32 %v4684, 0.0
  %v4790 = vmax.f32 %v4686, 0.0
  %v4791 = vmax.f32 %v4688, 0.0
  %v4792 = vmax.f32 %v4692, 0.0
  %v4793 = vmax.f32 %v4694, 0.0
  %v4794 = vmax.f32 %v4696, 0.0
  %v4795 = vmax.f32 %v4698, 0.0
  %v4796 = vpack.c.bf16 %v4702, %v4700
  %v4797 = vpack.c.bf16 %v4703, %v4701
  %v4798 = vpack.c.bf16 %v4706, %v4704
  %v4799 = vpack.c.bf16 %v4707, %v4705
  %v4800 = vpack.c.bf16 %v4710, %v4708
  %v4801 = vpack.c.bf16 %v4711, %v4709
  %v4802 = vpack.c.bf16 %v4714, %v4712
  %v4803 = vpack.c.bf16 %v4715, %v4713
  %v4804 = vpack.c.bf16 %v4718, %v4716
  %v4805 = vpack.c.bf16 %v4719, %v4717
  %v4806 = vpack.c.bf16 %v4722, %v4720
  %v4807 = vpack.c.bf16 %v4723, %v4721
  %v4808 = vpack.c.bf16 %v4726, %v4724
  %v4809 = vpack.c.bf16 %v4727, %v4725
  %v4810 = vpack.c.bf16 %v4730, %v4728
  %v4811 = vpack.c.bf16 %v4731, %v4729
  %v4812 = vpack.c.bf16 %v4734, %v4732
  %v4813 = vpack.c.bf16 %v4735, %v4733
  %v4814 = vpack.c.bf16 %v4738, %v4736
  %v4815 = vpack.c.bf16 %v4739, %v4737
  %v4816 = vpack.c.bf16 %v4742, %v4740
  %v4817 = vpack.c.bf16 %v4743, %v4741
  %v4818 = vpack.c.bf16 %v4746, %v4744
  %v4819 = vpack.c.bf16 %v4747, %v4745
  %v4820 = vpack.c.bf16 %v4750, %v4748
  %v4821 = vpack.c.bf16 %v4751, %v4749
  %v4822 = vpack.c.bf16 %v4754, %v4752
  %v4823 = vpack.c.bf16 %v4755, %v4753
  %v4824 = vpack.c.bf16 %v4758, %v4756
  %v4825 = vpack.c.bf16 %v4759, %v4757
  %v4826 = vpack.c.bf16 %v4762, %v4760
  %v4827 = vpack.c.bf16 %v4763, %v4761
  %v4828 = vpack.c.bf16 %v4766, %v4764
  %v4829 = vpack.c.bf16 %v4767, %v4765
  %v4830 = vpack.c.bf16 %v4770, %v4768
  %v4831 = vpack.c.bf16 %v4771, %v4769
  %v4832 = vpack.c.bf16 %v4774, %v4772
  %v4833 = vpack.c.bf16 %v4775, %v4773
  %v4834 = vpack.c.bf16 %v4778, %v4776
  %v4835 = vpack.c.bf16 %v4779, %v4777
  %v4836 = vpack.c.bf16 %v4782, %v4780
  %v4837 = vpack.c.bf16 %v4783, %v4781
  %v4838 = vpack.c.bf16 %v4786, %v4784
  %v4839 = vpack.c.bf16 %v4787, %v4785
  %v4840 = vpack.c.bf16 %v4790, %v4788
  %v4841 = vpack.c.bf16 %v4791, %v4789
  %v4842 = vpack.c.bf16 %v4794, %v4792
  %v4843 = vpack.c.bf16 %v4795, %v4793
  %v4844 = vld [vmem:[%s9] sm:$0xf]
  %v4845 = vld [vmem:[%s9 + $0x4] sm:$0xf]
  %v4846 = vld [vmem:[%s9 + $0x8] sm:$0xf]
  %v4847 = vld [vmem:[%s9 + $0xc] sm:$0xf]
  %v4848 = vld [vmem:[%s9 + $0x10] sm:$0xf]
  %v4849 = vld [vmem:[%s9 + $0x14] sm:$0xf]
  %v4850 = vld [vmem:[%s9 + $0x18] sm:$0xf]
  %v4851 = vld [vmem:[%s9 + $0x1c] sm:$0xf]
  %v4852 = vld [vmem:[%s9 + $0x20] sm:$0xf]
  %v4853 = vld [vmem:[%s9 + $0x24] sm:$0xf]
  %v4854 = vld [vmem:[%s9 + $0x28] sm:$0xf]
  %v4855 = vld [vmem:[%s9 + $0x2c] sm:$0xf]
  %v4856 = vld [vmem:[%s9 + $0x30] sm:$0xf]
  %v4857 = vld [vmem:[%s9 + $0x34] sm:$0xf]
  %v4858 = vld [vmem:[%s9 + $0x38] sm:$0xf]
  %v4859 = vld [vmem:[%s9 + $0x3c] sm:$0xf]
  %v4860 = vld [vmem:[%s9 + $0x40] sm:$0xf]
  %v4861 = vld [vmem:[%s9 + $0x44] sm:$0xf]
  %v4862 = vld [vmem:[%s9 + $0x48] sm:$0xf]
  %v4863 = vld [vmem:[%s9 + $0x4c] sm:$0xf]
  %v4864 = vld [vmem:[%s9 + $0x50] sm:$0xf]
  %v4865 = vld [vmem:[%s9 + $0x54] sm:$0xf]
  %v4866 = vld [vmem:[%s9 + $0x58] sm:$0xf]
  %v4867 = vld [vmem:[%s9 + $0x5c] sm:$0xf]
  %v4868 = vld [vmem:[%s9 + $0x60] sm:$0xf]
  %v4869 = vld [vmem:[%s9 + $0x64] sm:$0xf]
  %v4870 = vld [vmem:[%s9 + $0x68] sm:$0xf]
  %v4871 = vld [vmem:[%s9 + $0x6c] sm:$0xf]
  %v4872 = vld [vmem:[%s9 + $0x70] sm:$0xf]
  %v4873 = vld [vmem:[%s9 + $0x74] sm:$0xf]
  %v4874 = vld [vmem:[%s9 + $0x78] sm:$0xf]
  %v4875 = vld [vmem:[%s9 + $0x7c] sm:$0xf]
  %v4876 = vld [vmem:[%s10] sm:$0x1]
  %v4878 = vlaneseq
  %v4879 = vshrl.u32 %v4878, 7
  %v4880 = vsub.s32 0, %v4879
  %v4881 = vrot.slane %v4876, %v4880
  %v4915 = vunpack.c.l.b16 %v4844
  %v4916 = vunpack.c.l.b16 %v4845
  %v4917 = vunpack.c.l.b16 %v4846
  %v4918 = vunpack.c.l.b16 %v4847
  %v4919 = vunpack.c.l.b16 %v4848
  %v4920 = vunpack.c.l.b16 %v4849
  %v4921 = vunpack.c.l.b16 %v4850
  %v4922 = vunpack.c.l.b16 %v4851
  %v4923 = vunpack.c.l.b16 %v4852
  %v4924 = vunpack.c.l.b16 %v4853
  %v4925 = vunpack.c.l.b16 %v4854
  %v4926 = vunpack.c.l.b16 %v4855
  %v4927 = vunpack.c.l.b16 %v4856
  %v4928 = vunpack.c.l.b16 %v4857
  %v4929 = vunpack.c.l.b16 %v4858
  %v4930 = vunpack.c.l.b16 %v4859
  %v4931 = vunpack.c.l.b16 %v4860
  %v4932 = vunpack.c.l.b16 %v4861
  %v4933 = vunpack.c.l.b16 %v4862
  %v4934 = vunpack.c.l.b16 %v4863
  %v4935 = vunpack.c.l.b16 %v4864
  %v4936 = vunpack.c.l.b16 %v4865
  %v4937 = vunpack.c.l.b16 %v4866
  %v4938 = vunpack.c.l.b16 %v4867
  %v4939 = vunpack.c.l.b16 %v4868
  %v4940 = vunpack.c.l.b16 %v4869
  %v4941 = vunpack.c.l.b16 %v4870
  %v4942 = vunpack.c.l.b16 %v4871
  %v4943 = vunpack.c.l.b16 %v4872
  %v4944 = vunpack.c.l.b16 %v4873
  %v4945 = vunpack.c.l.b16 %v4874
  %v4946 = vunpack.c.l.b16 %v4875
  %v4947 = vpack.c.b16 %v4916, %v4915
  %v4948 = vpack.c.b16 %v4918, %v4917
  %v4949 = vpack.c.b16 %v4920, %v4919
  %v4950 = vpack.c.b16 %v4922, %v4921
  %v4951 = vpack.c.b16 %v4924, %v4923
  %v4952 = vpack.c.b16 %v4926, %v4925
  %v4953 = vpack.c.b16 %v4928, %v4927
  %v4954 = vpack.c.b16 %v4930, %v4929
  %v4955 = vpack.c.b16 %v4932, %v4931
  %v4956 = vpack.c.b16 %v4934, %v4933
  %v4957 = vpack.c.b16 %v4936, %v4935
  %v4958 = vpack.c.b16 %v4938, %v4937
  %v4959 = vpack.c.b16 %v4940, %v4939
  %v4960 = vpack.c.b16 %v4942, %v4941
  %v4961 = vpack.c.b16 %v4944, %v4943
  %v4962 = vpack.c.b16 %v4946, %v4945
  %4979 = vmatprep.subr.bf16.mxu0 0
  %4980 = vmatpush1.bf16.msra.mxu0 %v4947
  %4981 = vmatprep.subr.bf16.mxu0 0
  %4982 = vmatpush1.bf16.msra.mxu0 %v4948
  %4983 = vmatprep.subr.bf16.mxu0 0
  %4984 = vmatpush1.bf16.msra.mxu0 %v4949
  %4985 = vmatprep.subr.bf16.mxu0 0
  %4986 = vmatpush1.bf16.msra.mxu0 %v4950
  %4987 = vmatprep.subr.bf16.mxu0 0
  %4988 = vmatpush1.bf16.msra.mxu0 %v4951
  %4989 = vmatprep.subr.bf16.mxu0 0
  %4990 = vmatpush1.bf16.msra.mxu0 %v4952
  %4991 = vmatprep.subr.bf16.mxu0 0
  %4992 = vmatpush1.bf16.msra.mxu0 %v4953
  %4993 = vmatprep.subr.bf16.mxu0 0
  %4994 = vmatpush1.bf16.msra.mxu0 %v4954
  %4995 = vmatprep.subr.bf16.mxu0 0
  %4996 = vmatpush1.bf16.msra.mxu0 %v4955
  %4997 = vmatprep.subr.bf16.mxu0 0
  %4998 = vmatpush1.bf16.msra.mxu0 %v4956
  %4999 = vmatprep.subr.bf16.mxu0 0
  %5000 = vmatpush1.bf16.msra.mxu0 %v4957
  %5001 = vmatprep.subr.bf16.mxu0 0
  %5002 = vmatpush1.bf16.msra.mxu0 %v4958
  %5003 = vmatprep.subr.bf16.mxu0 0
  %5004 = vmatpush1.bf16.msra.mxu0 %v4959
  %5005 = vmatprep.subr.bf16.mxu0 0
  %5006 = vmatpush1.bf16.msra.mxu0 %v4960
  %5007 = vmatprep.subr.bf16.mxu0 0
  %5008 = vmatpush1.bf16.msra.mxu0 %v4961
  %5009 = vmatprep.subr.bf16.mxu0 0
  %5010 = vmatpush1.bf16.msra.mxu0 %v4962
  %5011 = vmatprep.mubr.bf16.mxu0 %v4797
  %5012 = vmatmul.mubr.bf16.gmra.mrb[0].mxu0 %v4796
  %v5013 = vpop.f32.mrb[0].mxu0
  %v5014 = vadd.f32 %v4881, %v5013
  %v5015 = vpop.f32.mrb[0].mxu0
  %v5016 = vpop.f32.mrb[0].mxu0
  %v5017 = vadd.f32 %v4881, %v5016
  %v5018 = vpop.f32.mrb[0].mxu0
  %5019 = vmatprep.mubr.bf16.mxu0 %v4799
  %5020 = vmatmul.mubr.bf16.gmra.mrb[0].mxu0 %v4798
  %v5021 = vpop.f32.mrb[0].mxu0
  %v5022 = vadd.f32 %v4881, %v5021
  %v5023 = vpop.f32.mrb[0].mxu0
  %v5024 = vpop.f32.mrb[0].mxu0
  %v5025 = vadd.f32 %v4881, %v5024
  %v5026 = vpop.f32.mrb[0].mxu0
  %5027 = vmatprep.mubr.bf16.mxu0 %v4801
  %5028 = vmatmul.mubr.bf16.gmra.mrb[0].mxu0 %v4800
  %v5029 = vpop.f32.mrb[0].mxu0
  %v5030 = vadd.f32 %v4881, %v5029
  %v5031 = vpop.f32.mrb[0].mxu0
  %v5032 = vpop.f32.mrb[0].mxu0
  %v5033 = vadd.f32 %v4881, %v5032
  %v5034 = vpop.f32.mrb[0].mxu0
  %5035 = vmatprep.mubr.bf16.mxu0 %v4803
  %5036 = vmatmul.mubr.bf16.gmra.mrb[0].mxu0 %v4802
  %v5037 = vpop.f32.mrb[0].mxu0
  %v5038 = vadd.f32 %v4881, %v5037
  %v5039 = vpop.f32.mrb[0].mxu0
  %v5040 = vpop.f32.mrb[0].mxu0
  %v5041 = vadd.f32 %v4881, %v5040
  %v5042 = vpop.f32.mrb[0].mxu0
  %5043 = vmatprep.mubr.bf16.mxu0 %v4805
  %5044 = vmatmul.mubr.bf16.gmra.mrb[0].mxu0 %v4804
  %v5045 = vpop.f32.mrb[0].mxu0
  %v5046 = vadd.f32 %v4881, %v5045
  %v5047 = vpop.f32.mrb[0].mxu0
  %v5048 = vpop.f32.mrb[0].mxu0
  %v5049 = vadd.f32 %v4881, %v5048
  %v5050 = vpop.f32.mrb[0].mxu0
  %5051 = vmatprep.mubr.bf16.mxu0 %v4807
  %5052 = vmatmul.mubr.bf16.gmra.mrb[0].mxu0 %v4806
  %v5053 = vpop.f32.mrb[0].mxu0
  %v5054 = vadd.f32 %v4881, %v5053
  %v5055 = vpop.f32.mrb[0].mxu0
  %v5056 = vpop.f32.mrb[0].mxu0
  %v5057 = vadd.f32 %v4881, %v5056
  %v5058 = vpop.f32.mrb[0].mxu0
  %5059 = vmatprep.mubr.bf16.mxu0 %v4809
  %5060 = vmatmul.mubr.bf16.gmra.mrb[0].mxu0 %v4808
  %v5061 = vpop.f32.mrb[0].mxu0
  %v5062 = vadd.f32 %v4881, %v5061
  %v5063 = vpop.f32.mrb[0].mxu0
  %v5064 = vpop.f32.mrb[0].mxu0
  %v5065 = vadd.f32 %v4881, %v5064
  %v5066 = vpop.f32.mrb[0].mxu0
  %5067 = vmatprep.mubr.bf16.mxu0 %v4811
  %5068 = vmatmul.mubr.bf16.gmra.mrb[0].mxu0 %v4810
  %v5069 = vpop.f32.mrb[0].mxu0
  %v5070 = vadd.f32 %v4881, %v5069
  %v5071 = vpop.f32.mrb[0].mxu0
  %v5072 = vpop.f32.mrb[0].mxu0
  %v5073 = vadd.f32 %v4881, %v5072
  %v5074 = vpop.f32.mrb[0].mxu0
  %5075 = vmatprep.mubr.bf16.mxu0 %v4813
  %5076 = vmatmul.mubr.bf16.gmra.mrb[0].mxu0 %v4812
  %v5077 = vpop.f32.mrb[0].mxu0
  %v5078 = vadd.f32 %v4881, %v5077
  %v5079 = vpop.f32.mrb[0].mxu0
  %v5080 = vpop.f32.mrb[0].mxu0
  %v5081 = vadd.f32 %v4881, %v5080
  %v5082 = vpop.f32.mrb[0].mxu0
  %5083 = vmatprep.mubr.bf16.mxu0 %v4815
  %5084 = vmatmul.mubr.bf16.gmra.mrb[0].mxu0 %v4814
  %v5085 = vpop.f32.mrb[0].mxu0
  %v5086 = vadd.f32 %v4881, %v5085
  %v5087 = vpop.f32.mrb[0].mxu0
  %v5088 = vpop.f32.mrb[0].mxu0
  %v5089 = vadd.f32 %v4881, %v5088
  %v5090 = vpop.f32.mrb[0].mxu0
  %5091 = vmatprep.mubr.bf16.mxu0 %v4817
  %5092 = vmatmul.mubr.bf16.gmra.mrb[0].mxu0 %v4816
  %v5093 = vpop.f32.mrb[0].mxu0
  %v5094 = vadd.f32 %v4881, %v5093
  %v5095 = vpop.f32.mrb[0].mxu0
  %v5096 = vpop.f32.mrb[0].mxu0
  %v5097 = vadd.f32 %v4881, %v5096
  %v5098 = vpop.f32.mrb[0].mxu0
  %5099 = vmatprep.mubr.bf16.mxu0 %v4819
  %5100 = vmatmul.mubr.bf16.gmra.mrb[0].mxu0 %v4818
  %v5101 = vpop.f32.mrb[0].mxu0
  %v5102 = vadd.f32 %v4881, %v5101
  %v5103 = vpop.f32.mrb[0].mxu0
  %v5104 = vpop.f32.mrb[0].mxu0
  %v5105 = vadd.f32 %v4881, %v5104
  %v5106 = vpop.f32.mrb[0].mxu0
  %5107 = vmatprep.mubr.bf16.mxu0 %v4821
  %5108 = vmatmul.mubr.bf16.gmra.mrb[0].mxu0 %v4820
  %v5109 = vpop.f32.mrb[0].mxu0
  %v5110 = vadd.f32 %v4881, %v5109
  %v5111 = vpop.f32.mrb[0].mxu0
  %v5112 = vpop.f32.mrb[0].mxu0
  %v5113 = vadd.f32 %v4881, %v5112
  %v5114 = vpop.f32.mrb[0].mxu0
  %5115 = vmatprep.mubr.bf16.mxu0 %v4823
  %5116 = vmatmul.mubr.bf16.gmra.mrb[0].mxu0 %v4822
  %v5117 = vpop.f32.mrb[0].mxu0
  %v5118 = vadd.f32 %v4881, %v5117
  %v5119 = vpop.f32.mrb[0].mxu0
  %v5120 = vpop.f32.mrb[0].mxu0
  %v5121 = vadd.f32 %v4881, %v5120
  %v5122 = vpop.f32.mrb[0].mxu0
  %5123 = vmatprep.mubr.bf16.mxu0 %v4825
  %5124 = vmatmul.mubr.bf16.gmra.mrb[0].mxu0 %v4824
  %v5125 = vpop.f32.mrb[0].mxu0
  %v5126 = vadd.f32 %v4881, %v5125
  %v5127 = vpop.f32.mrb[0].mxu0
  %v5128 = vpop.f32.mrb[0].mxu0
  %v5129 = vadd.f32 %v4881, %v5128
  %v5130 = vpop.f32.mrb[0].mxu0
  %5131 = vmatprep.mubr.bf16.mxu0 %v4827
  %5132 = vmatmul.mubr.bf16.gmra.mrb[0].mxu0 %v4826
  %v5133 = vpop.f32.mrb[0].mxu0
  %v5134 = vadd.f32 %v4881, %v5133
  %v5135 = vpop.f32.mrb[0].mxu0
  %v5136 = vpop.f32.mrb[0].mxu0
  %v5137 = vadd.f32 %v4881, %v5136
  %v5138 = vpop.f32.mrb[0].mxu0
  %5139 = vmatprep.mubr.bf16.mxu0 %v4829
  %5140 = vmatmul.mubr.bf16.gmra.mrb[0].mxu0 %v4828
  %v5141 = vpop.f32.mrb[0].mxu0
  %v5142 = vadd.f32 %v4881, %v5141
  %v5143 = vpop.f32.mrb[0].mxu0
  %v5144 = vpop.f32.mrb[0].mxu0
  %v5145 = vadd.f32 %v4881, %v5144
  %v5146 = vpop.f32.mrb[0].mxu0
  %5147 = vmatprep.mubr.bf16.mxu0 %v4831
  %5148 = vmatmul.mubr.bf16.gmra.mrb[0].mxu0 %v4830
  %v5149 = vpop.f32.mrb[0].mxu0
  %v5150 = vadd.f32 %v4881, %v5149
  %v5151 = vpop.f32.mrb[0].mxu0
  %v5152 = vpop.f32.mrb[0].mxu0
  %v5153 = vadd.f32 %v4881, %v5152
  %v5154 = vpop.f32.mrb[0].mxu0
  %5155 = vmatprep.mubr.bf16.mxu0 %v4833
  %5156 = vmatmul.mubr.bf16.gmra.mrb[0].mxu0 %v4832
  %v5157 = vpop.f32.mrb[0].mxu0
  %v5158 = vadd.f32 %v4881, %v5157
  %v5159 = vpop.f32.mrb[0].mxu0
  %v5160 = vpop.f32.mrb[0].mxu0
  %v5161 = vadd.f32 %v4881, %v5160
  %v5162 = vpop.f32.mrb[0].mxu0
  %5163 = vmatprep.mubr.bf16.mxu0 %v4835
  %5164 = vmatmul.mubr.bf16.gmra.mrb[0].mxu0 %v4834
  %v5165 = vpop.f32.mrb[0].mxu0
  %v5166 = vadd.f32 %v4881, %v5165
  %v5167 = vpop.f32.mrb[0].mxu0
  %v5168 = vpop.f32.mrb[0].mxu0
  %v5169 = vadd.f32 %v4881, %v5168
  %v5170 = vpop.f32.mrb[0].mxu0
  %5171 = vmatprep.mubr.bf16.mxu0 %v4837
  %5172 = vmatmul.mubr.bf16.gmra.mrb[0].mxu0 %v4836
  %v5173 = vpop.f32.mrb[0].mxu0
  %v5174 = vadd.f32 %v4881, %v5173
  %v5175 = vpop.f32.mrb[0].mxu0
  %v5176 = vpop.f32.mrb[0].mxu0
  %v5177 = vadd.f32 %v4881, %v5176
  %v5178 = vpop.f32.mrb[0].mxu0
  %5179 = vmatprep.mubr.bf16.mxu0 %v4839
  %5180 = vmatmul.mubr.bf16.gmra.mrb[0].mxu0 %v4838
  %v5181 = vpop.f32.mrb[0].mxu0
  %v5182 = vadd.f32 %v4881, %v5181
  %v5183 = vpop.f32.mrb[0].mxu0
  %v5184 = vpop.f32.mrb[0].mxu0
  %v5185 = vadd.f32 %v4881, %v5184
  %v5186 = vpop.f32.mrb[0].mxu0
  %5187 = vmatprep.mubr.bf16.mxu0 %v4841
  %5188 = vmatmul.mubr.bf16.gmra.mrb[0].mxu0 %v4840
  %v5189 = vpop.f32.mrb[0].mxu0
  %v5190 = vadd.f32 %v4881, %v5189
  %v5191 = vpop.f32.mrb[0].mxu0
  %v5192 = vpop.f32.mrb[0].mxu0
  %v5193 = vadd.f32 %v4881, %v5192
  %v5194 = vpop.f32.mrb[0].mxu0
  %5195 = vmatprep.mubr.bf16.mxu0 %v4843
  %5196 = vmatmul.mubr.bf16.gmra.mrb[0].mxu0 %v4842
  %v5197 = vpop.f32.mrb[0].mxu0
  %v5198 = vadd.f32 %v4881, %v5197
  %v5199 = vpop.f32.mrb[0].mxu0
  %v5200 = vpop.f32.mrb[0].mxu0
  %v5201 = vadd.f32 %v4881, %v5200
  %v5202 = vpop.f32.mrb[0].mxu0
  %5203 = vdwg.mxu0
  %v5204 = vmax.f32 %v5014, 0.0
  %v5205 = vmax.f32 %v5017, 0.0
  %v5206 = vmax.f32 %v5022, 0.0
  %v5207 = vmax.f32 %v5025, 0.0
  %v5208 = vmax.f32 %v5030, 0.0
  %v5209 = vmax.f32 %v5033, 0.0
  %v5210 = vmax.f32 %v5038, 0.0
  %v5211 = vmax.f32 %v5041, 0.0
  %v5212 = vmax.f32 %v5046, 0.0
  %v5213 = vmax.f32 %v5049, 0.0
  %v5214 = vmax.f32 %v5054, 0.0
  %v5215 = vmax.f32 %v5057, 0.0
  %v5216 = vmax.f32 %v5062, 0.0
  %v5217 = vmax.f32 %v5065, 0.0
  %v5218 = vmax.f32 %v5070, 0.0
  %v5219 = vmax.f32 %v5073, 0.0
  %v5220 = vmax.f32 %v5078, 0.0
  %v5221 = vmax.f32 %v5081, 0.0
  %v5222 = vmax.f32 %v5086, 0.0
  %v5223 = vmax.f32 %v5089, 0.0
  %v5224 = vmax.f32 %v5094, 0.0
  %v5225 = vmax.f32 %v5097, 0.0
  %v5226 = vmax.f32 %v5102, 0.0
  %v5227 = vmax.f32 %v5105, 0.0
  %v5228 = vmax.f32 %v5110, 0.0
  %v5229 = vmax.f32 %v5113, 0.0
  %v5230 = vmax.f32 %v5118, 0.0
  %v5231 = vmax.f32 %v5121, 0.0
  %v5232 = vmax.f32 %v5126, 0.0
  %v5233 = vmax.f32 %v5129, 0.0
  %v5234 = vmax.f32 %v5134, 0.0
  %v5235 = vmax.f32 %v5137, 0.0
  %v5236 = vmax.f32 %v5142, 0.0
  %v5237 = vmax.f32 %v5145, 0.0
  %v5238 = vmax.f32 %v5150, 0.0
  %v5239 = vmax.f32 %v5153, 0.0
  %v5240 = vmax.f32 %v5158, 0.0
  %v5241 = vmax.f32 %v5161, 0.0
  %v5242 = vmax.f32 %v5166, 0.0
  %v5243 = vmax.f32 %v5169, 0.0
  %v5244 = vmax.f32 %v5174, 0.0
  %v5245 = vmax.f32 %v5177, 0.0
  %v5246 = vmax.f32 %v5182, 0.0
  %v5247 = vmax.f32 %v5185, 0.0
  %v5248 = vmax.f32 %v5190, 0.0
  %v5249 = vmax.f32 %v5193, 0.0
  %v5250 = vmax.f32 %v5198, 0.0
  %v5251 = vmax.f32 %v5201, 0.0
  %v5252 = vpack.c.bf16 %v5205, %v5204
  %v5253 = vpack.c.bf16 %v5207, %v5206
  %v5254 = vpack.c.bf16 %v5209, %v5208
  %v5255 = vpack.c.bf16 %v5211, %v5210
  %v5256 = vpack.c.bf16 %v5213, %v5212
  %v5257 = vpack.c.bf16 %v5215, %v5214
  %v5258 = vpack.c.bf16 %v5217, %v5216
  %v5259 = vpack.c.bf16 %v5219, %v5218
  %v5260 = vpack.c.bf16 %v5221, %v5220
  %v5261 = vpack.c.bf16 %v5223, %v5222
  %v5262 = vpack.c.bf16 %v5225, %v5224
  %v5263 = vpack.c.bf16 %v5227, %v5226
  %v5264 = vpack.c.bf16 %v5229, %v5228
  %v5265 = vpack.c.bf16 %v5231, %v5230
  %v5266 = vpack.c.bf16 %v5233, %v5232
  %v5267 = vpack.c.bf16 %v5235, %v5234
  %v5268 = vpack.c.bf16 %v5237, %v5236
  %v5269 = vpack.c.bf16 %v5239, %v5238
  %v5270 = vpack.c.bf16 %v5241, %v5240
  %v5271 = vpack.c.bf16 %v5243, %v5242
  %v5272 = vpack.c.bf16 %v5245, %v5244
  %v5273 = vpack.c.bf16 %v5247, %v5246
  %v5274 = vpack.c.bf16 %v5249, %v5248
  %v5275 = vpack.c.bf16 %v5251, %v5250
  %v5276 = vld [vmem:[%s11] sm:$0xf]
  %v5277 = vld [vmem:[%s11 + $0x4] sm:$0xf]
  %v5278 = vld [vmem:[%s11 + $0x8] sm:$0xf]
  %v5279 = vld [vmem:[%s11 + $0xc] sm:$0xf]
  %v5280 = vld [vmem:[%s11 + $0x10] sm:$0xf]
  %v5281 = vld [vmem:[%s11 + $0x14] sm:$0xf]
  %v5282 = vld [vmem:[%s11 + $0x18] sm:$0xf]
  %v5283 = vld [vmem:[%s11 + $0x1c] sm:$0xf]
  %v5284 = vld [vmem:[%s11 + $0x20] sm:$0xf]
  %v5285 = vld [vmem:[%s11 + $0x24] sm:$0xf]
  %v5286 = vld [vmem:[%s11 + $0x28] sm:$0xf]
  %v5287 = vld [vmem:[%s11 + $0x2c] sm:$0xf]
  %v5288 = vld [vmem:[%s11 + $0x30] sm:$0xf]
  %v5289 = vld [vmem:[%s11 + $0x34] sm:$0xf]
  %v5290 = vld [vmem:[%s11 + $0x38] sm:$0xf]
  %v5291 = vld [vmem:[%s11 + $0x3c] sm:$0xf]
  %v5292 = vld [vmem:[%s12] sm:$0x1]
  %v5294 = vlaneseq
  %v5295 = vshrl.u32 %v5294, 7
  %v5296 = vsub.s32 0, %v5295
  %v5297 = vrot.slane %v5292, %v5296
  %v5315 = vunpack.c.l.b16 %v5276
  %v5316 = vunpack.c.l.b16 %v5277
  %v5317 = vunpack.c.l.b16 %v5278
  %v5318 = vunpack.c.l.b16 %v5279
  %v5319 = vunpack.c.l.b16 %v5280
  %v5320 = vunpack.c.l.b16 %v5281
  %v5321 = vunpack.c.l.b16 %v5282
  %v5322 = vunpack.c.l.b16 %v5283
  %v5323 = vunpack.c.l.b16 %v5284
  %v5324 = vunpack.c.l.b16 %v5285
  %v5325 = vunpack.c.l.b16 %v5286
  %v5326 = vunpack.c.l.b16 %v5287
  %v5327 = vunpack.c.l.b16 %v5288
  %v5328 = vunpack.c.l.b16 %v5289
  %v5329 = vunpack.c.l.b16 %v5290
  %v5330 = vunpack.c.l.b16 %v5291
  %v5331 = vpack.c.b16 %v5316, %v5315
  %v5332 = vpack.c.b16 %v5318, %v5317
  %v5333 = vpack.c.b16 %v5320, %v5319
  %v5334 = vpack.c.b16 %v5322, %v5321
  %v5335 = vpack.c.b16 %v5324, %v5323
  %v5336 = vpack.c.b16 %v5326, %v5325
  %v5337 = vpack.c.b16 %v5328, %v5327
  %v5338 = vpack.c.b16 %v5330, %v5329
  %5347 = vmatprep.subr.bf16.mxu0 0
  %5348 = vmatpush1.bf16.msra.mxu0 %v5331
  %5349 = vmatprep.subr.bf16.mxu0 0
  %5350 = vmatpush1.bf16.msra.mxu0 %v5332
  %5351 = vmatprep.subr.bf16.mxu0 0
  %5352 = vmatpush1.bf16.msra.mxu0 %v5333
  %5353 = vmatprep.subr.bf16.mxu0 0
  %5354 = vmatpush1.bf16.msra.mxu0 %v5334
  %5355 = vmatprep.subr.bf16.mxu0 0
  %5356 = vmatpush1.bf16.msra.mxu0 %v5335
  %5357 = vmatprep.subr.bf16.mxu0 0
  %5358 = vmatpush1.bf16.msra.mxu0 %v5336
  %5359 = vmatprep.subr.bf16.mxu0 0
  %5360 = vmatpush1.bf16.msra.mxu0 %v5337
  %5361 = vmatprep.subr.bf16.mxu0 0
  %5362 = vmatpush1.bf16.msra.mxu0 %v5338
  %5363 = vmatprep.subr.bf16.mxu0 0
  %5364 = vmatpush1.bf16.msra.mxu0 0
  %5365 = vmatprep.subr.bf16.mxu0 0
  %5366 = vmatpush1.bf16.msra.mxu0 0
  %5367 = vmatprep.subr.bf16.mxu0 0
  %5368 = vmatpush1.bf16.msra.mxu0 0
  %5369 = vmatprep.subr.bf16.mxu0 0
  %5370 = vmatpush1.bf16.msra.mxu0 0
  %5371 = vmatprep.subr.bf16.mxu0 0
  %5372 = vmatpush1.bf16.msra.mxu0 0
  %5373 = vmatprep.subr.bf16.mxu0 0
  %5374 = vmatpush1.bf16.msra.mxu0 0
  %5375 = vmatprep.subr.bf16.mxu0 0
  %5376 = vmatpush1.bf16.msra.mxu0 0
  %5377 = vmatprep.subr.bf16.mxu0 0
  %5378 = vmatpush1.bf16.msra.mxu0 0
  %5379 = vmatprep.mubr.bf16.mxu0 0
  %5380 = vmatmul.mubr.bf16.gmra.mrb[0].mxu0 %v5252
  %v5381 = vpop.f32.mrb[0].mxu0
  %v5382 = vadd.f32 %v5297, %v5381
  %v5383 = vpop.f32.mrb[0].mxu0
  %v5384 = vpop.f32.mrb[0].mxu0
  %v5385 = vadd.f32 %v5297, %v5384
  %v5386 = vpop.f32.mrb[0].mxu0
  %5387 = vmatprep.mubr.bf16.mxu0 0
  %5388 = vmatmul.mubr.bf16.gmra.mrb[0].mxu0 %v5253
  %v5389 = vpop.f32.mrb[0].mxu0
  %v5390 = vadd.f32 %v5297, %v5389
  %v5391 = vpop.f32.mrb[0].mxu0
  %v5392 = vpop.f32.mrb[0].mxu0
  %v5393 = vadd.f32 %v5297, %v5392
  %v5394 = vpop.f32.mrb[0].mxu0
  %5395 = vmatprep.mubr.bf16.mxu0 0
  %5396 = vmatmul.mubr.bf16.gmra.mrb[0].mxu0 %v5254
  %v5397 = vpop.f32.mrb[0].mxu0
  %v5398 = vadd.f32 %v5297, %v5397
  %v5399 = vpop.f32.mrb[0].mxu0
  %v5400 = vpop.f32.mrb[0].mxu0
  %v5401 = vadd.f32 %v5297, %v5400
  %v5402 = vpop.f32.mrb[0].mxu0
  %5403 = vmatprep.mubr.bf16.mxu0 0
  %5404 = vmatmul.mubr.bf16.gmra.mrb[0].mxu0 %v5255
  %v5405 = vpop.f32.mrb[0].mxu0
  %v5406 = vadd.f32 %v5297, %v5405
  %v5407 = vpop.f32.mrb[0].mxu0
  %v5408 = vpop.f32.mrb[0].mxu0
  %v5409 = vadd.f32 %v5297, %v5408
  %v5410 = vpop.f32.mrb[0].mxu0
  %5411 = vmatprep.mubr.bf16.mxu0 0
  %5412 = vmatmul.mubr.bf16.gmra.mrb[0].mxu0 %v5256
  %v5413 = vpop.f32.mrb[0].mxu0
  %v5414 = vadd.f32 %v5297, %v5413
  %v5415 = vpop.f32.mrb[0].mxu0
  %v5416 = vpop.f32.mrb[0].mxu0
  %v5417 = vadd.f32 %v5297, %v5416
  %v5418 = vpop.f32.mrb[0].mxu0
  %5419 = vmatprep.mubr.bf16.mxu0 0
  %5420 = vmatmul.mubr.bf16.gmra.mrb[0].mxu0 %v5257
  %v5421 = vpop.f32.mrb[0].mxu0
  %v5422 = vadd.f32 %v5297, %v5421
  %v5423 = vpop.f32.mrb[0].mxu0
  %v5424 = vpop.f32.mrb[0].mxu0
  %v5425 = vadd.f32 %v5297, %v5424
  %v5426 = vpop.f32.mrb[0].mxu0
  %5427 = vmatprep.mubr.bf16.mxu0 0
  %5428 = vmatmul.mubr.bf16.gmra.mrb[0].mxu0 %v5258
  %v5429 = vpop.f32.mrb[0].mxu0
  %v5430 = vadd.f32 %v5297, %v5429
  %v5431 = vpop.f32.mrb[0].mxu0
  %v5432 = vpop.f32.mrb[0].mxu0
  %v5433 = vadd.f32 %v5297, %v5432
  %v5434 = vpop.f32.mrb[0].mxu0
  %5435 = vmatprep.mubr.bf16.mxu0 0
  %5436 = vmatmul.mubr.bf16.gmra.mrb[0].mxu0 %v5259
  %v5437 = vpop.f32.mrb[0].mxu0
  %v5438 = vadd.f32 %v5297, %v5437
  %v5439 = vpop.f32.mrb[0].mxu0
  %v5440 = vpop.f32.mrb[0].mxu0
  %v5441 = vadd.f32 %v5297, %v5440
  %v5442 = vpop.f32.mrb[0].mxu0
  %5443 = vmatprep.mubr.bf16.mxu0 0
  %5444 = vmatmul.mubr.bf16.gmra.mrb[0].mxu0 %v5260
  %v5445 = vpop.f32.mrb[0].mxu0
  %v5446 = vadd.f32 %v5297, %v5445
  %v5447 = vpop.f32.mrb[0].mxu0
  %v5448 = vpop.f32.mrb[0].mxu0
  %v5449 = vadd.f32 %v5297, %v5448
  %v5450 = vpop.f32.mrb[0].mxu0
  %5451 = vmatprep.mubr.bf16.mxu0 0
  %5452 = vmatmul.mubr.bf16.gmra.mrb[0].mxu0 %v5261
  %v5453 = vpop.f32.mrb[0].mxu0
  %v5454 = vadd.f32 %v5297, %v5453
  %v5455 = vpop.f32.mrb[0].mxu0
  %v5456 = vpop.f32.mrb[0].mxu0
  %v5457 = vadd.f32 %v5297, %v5456
  %v5458 = vpop.f32.mrb[0].mxu0
  %5459 = vmatprep.mubr.bf16.mxu0 0
  %5460 = vmatmul.mubr.bf16.gmra.mrb[0].mxu0 %v5262
  %v5461 = vpop.f32.mrb[0].mxu0
  %v5462 = vadd.f32 %v5297, %v5461
  %v5463 = vpop.f32.mrb[0].mxu0
  %v5464 = vpop.f32.mrb[0].mxu0
  %v5465 = vadd.f32 %v5297, %v5464
  %v5466 = vpop.f32.mrb[0].mxu0
  %5467 = vmatprep.mubr.bf16.mxu0 0
  %5468 = vmatmul.mubr.bf16.gmra.mrb[0].mxu0 %v5263
  %v5469 = vpop.f32.mrb[0].mxu0
  %v5470 = vadd.f32 %v5297, %v5469
  %v5471 = vpop.f32.mrb[0].mxu0
  %v5472 = vpop.f32.mrb[0].mxu0
  %v5473 = vadd.f32 %v5297, %v5472
  %v5474 = vpop.f32.mrb[0].mxu0
  %5475 = vmatprep.mubr.bf16.mxu0 0
  %5476 = vmatmul.mubr.bf16.gmra.mrb[0].mxu0 %v5264
  %v5477 = vpop.f32.mrb[0].mxu0
  %v5478 = vadd.f32 %v5297, %v5477
  %v5479 = vpop.f32.mrb[0].mxu0
  %v5480 = vpop.f32.mrb[0].mxu0
  %v5481 = vadd.f32 %v5297, %v5480
  %v5482 = vpop.f32.mrb[0].mxu0
  %5483 = vmatprep.mubr.bf16.mxu0 0
  %5484 = vmatmul.mubr.bf16.gmra.mrb[0].mxu0 %v5265
  %v5485 = vpop.f32.mrb[0].mxu0
  %v5486 = vadd.f32 %v5297, %v5485
  %v5487 = vpop.f32.mrb[0].mxu0
  %v5488 = vpop.f32.mrb[0].mxu0
  %v5489 = vadd.f32 %v5297, %v5488
  %v5490 = vpop.f32.mrb[0].mxu0
  %5491 = vmatprep.mubr.bf16.mxu0 0
  %5492 = vmatmul.mubr.bf16.gmra.mrb[0].mxu0 %v5266
  %v5493 = vpop.f32.mrb[0].mxu0
  %v5494 = vadd.f32 %v5297, %v5493
  %v5495 = vpop.f32.mrb[0].mxu0
  %v5496 = vpop.f32.mrb[0].mxu0
  %v5497 = vadd.f32 %v5297, %v5496
  %v5498 = vpop.f32.mrb[0].mxu0
  %5499 = vmatprep.mubr.bf16.mxu0 0
  %5500 = vmatmul.mubr.bf16.gmra.mrb[0].mxu0 %v5267
  %v5501 = vpop.f32.mrb[0].mxu0
  %v5502 = vadd.f32 %v5297, %v5501
  %v5503 = vpop.f32.mrb[0].mxu0
  %v5504 = vpop.f32.mrb[0].mxu0
  %v5505 = vadd.f32 %v5297, %v5504
  %v5506 = vpop.f32.mrb[0].mxu0
  %5507 = vmatprep.mubr.bf16.mxu0 0
  %5508 = vmatmul.mubr.bf16.gmra.mrb[0].mxu0 %v5268
  %v5509 = vpop.f32.mrb[0].mxu0
  %v5510 = vadd.f32 %v5297, %v5509
  %v5511 = vpop.f32.mrb[0].mxu0
  %v5512 = vpop.f32.mrb[0].mxu0
  %v5513 = vadd.f32 %v5297, %v5512
  %v5514 = vpop.f32.mrb[0].mxu0
  %5515 = vmatprep.mubr.bf16.mxu0 0
  %5516 = vmatmul.mubr.bf16.gmra.mrb[0].mxu0 %v5269
  %v5517 = vpop.f32.mrb[0].mxu0
  %v5518 = vadd.f32 %v5297, %v5517
  %v5519 = vpop.f32.mrb[0].mxu0
  %v5520 = vpop.f32.mrb[0].mxu0
  %v5521 = vadd.f32 %v5297, %v5520
  %v5522 = vpop.f32.mrb[0].mxu0
  %5523 = vmatprep.mubr.bf16.mxu0 0
  %5524 = vmatmul.mubr.bf16.gmra.mrb[0].mxu0 %v5270
  %v5525 = vpop.f32.mrb[0].mxu0
  %v5526 = vadd.f32 %v5297, %v5525
  %v5527 = vpop.f32.mrb[0].mxu0
  %v5528 = vpop.f32.mrb[0].mxu0
  %v5529 = vadd.f32 %v5297, %v5528
  %v5530 = vpop.f32.mrb[0].mxu0
  %5531 = vmatprep.mubr.bf16.mxu0 0
  %5532 = vmatmul.mubr.bf16.gmra.mrb[0].mxu0 %v5271
  %v5533 = vpop.f32.mrb[0].mxu0
  %v5534 = vadd.f32 %v5297, %v5533
  %v5535 = vpop.f32.mrb[0].mxu0
  %v5536 = vpop.f32.mrb[0].mxu0
  %v5537 = vadd.f32 %v5297, %v5536
  %v5538 = vpop.f32.mrb[0].mxu0
  %5539 = vmatprep.mubr.bf16.mxu0 0
  %5540 = vmatmul.mubr.bf16.gmra.mrb[0].mxu0 %v5272
  %v5541 = vpop.f32.mrb[0].mxu0
  %v5542 = vadd.f32 %v5297, %v5541
  %v5543 = vpop.f32.mrb[0].mxu0
  %v5544 = vpop.f32.mrb[0].mxu0
  %v5545 = vadd.f32 %v5297, %v5544
  %v5546 = vpop.f32.mrb[0].mxu0
  %5547 = vmatprep.mubr.bf16.mxu0 0
  %5548 = vmatmul.mubr.bf16.gmra.mrb[0].mxu0 %v5273
  %v5549 = vpop.f32.mrb[0].mxu0
  %v5550 = vadd.f32 %v5297, %v5549
  %v5551 = vpop.f32.mrb[0].mxu0
  %v5552 = vpop.f32.mrb[0].mxu0
  %v5553 = vadd.f32 %v5297, %v5552
  %v5554 = vpop.f32.mrb[0].mxu0
  %5555 = vmatprep.mubr.bf16.mxu0 0
  %5556 = vmatmul.mubr.bf16.gmra.mrb[0].mxu0 %v5274
  %v5557 = vpop.f32.mrb[0].mxu0
  %v5558 = vadd.f32 %v5297, %v5557
  %v5559 = vpop.f32.mrb[0].mxu0
  %v5560 = vpop.f32.mrb[0].mxu0
  %v5561 = vadd.f32 %v5297, %v5560
  %v5562 = vpop.f32.mrb[0].mxu0
  %5563 = vmatprep.mubr.bf16.mxu0 0
  %5564 = vmatmul.mubr.bf16.gmra.mrb[0].mxu0 %v5275
  %v5565 = vpop.f32.mrb[0].mxu0
  %v5566 = vadd.f32 %v5297, %v5565
  %v5567 = vpop.f32.mrb[0].mxu0
  %v5568 = vpop.f32.mrb[0].mxu0
  %v5569 = vadd.f32 %v5297, %v5568
  %v5570 = vpop.f32.mrb[0].mxu0
  %5571 = vdwg.mxu0
  %v5572 = vpack.c.bf16 %v5385, %v5382
  %v5573 = vpack.c.bf16 %v5393, %v5390
  %v5574 = vpack.c.bf16 %v5401, %v5398
  %v5575 = vpack.c.bf16 %v5409, %v5406
  %v5576 = vpack.c.bf16 %v5417, %v5414
  %v5577 = vpack.c.bf16 %v5425, %v5422
  %v5578 = vpack.c.bf16 %v5433, %v5430
  %v5579 = vpack.c.bf16 %v5441, %v5438
  %v5580 = vpack.c.bf16 %v5449, %v5446
  %v5581 = vpack.c.bf16 %v5457, %v5454
  %v5582 = vpack.c.bf16 %v5465, %v5462
  %v5583 = vpack.c.bf16 %v5473, %v5470
  %v5584 = vpack.c.bf16 %v5481, %v5478
  %v5585 = vpack.c.bf16 %v5489, %v5486
  %v5586 = vpack.c.bf16 %v5497, %v5494
  %v5587 = vpack.c.bf16 %v5505, %v5502
  %v5588 = vpack.c.bf16 %v5513, %v5510
  %v5589 = vpack.c.bf16 %v5521, %v5518
  %v5590 = vpack.c.bf16 %v5529, %v5526
  %v5591 = vpack.c.bf16 %v5537, %v5534
  %v5592 = vpack.c.bf16 %v5545, %v5542
  %v5593 = vpack.c.bf16 %v5553, %v5550
  %v5594 = vpack.c.bf16 %v5561, %v5558
  %v5595 = vpack.c.bf16 %v5569, %v5566
  %v5620 = vunpack.c.l.b16 %v5572
  %v5621 = vunpack.c.h.b16 %v5572
  %v5622 = vunpack.c.l.b16 %v5573
  %v5623 = vunpack.c.h.b16 %v5573
  %v5624 = vunpack.c.l.b16 %v5574
  %v5625 = vunpack.c.h.b16 %v5574
  %v5626 = vunpack.c.l.b16 %v5575
  %v5627 = vunpack.c.h.b16 %v5575
  %v5628 = vunpack.c.l.b16 %v5576
  %v5629 = vunpack.c.h.b16 %v5576
  %v5630 = vunpack.c.l.b16 %v5577
  %v5631 = vunpack.c.h.b16 %v5577
  %v5632 = vunpack.c.l.b16 %v5578
  %v5633 = vunpack.c.h.b16 %v5578
  %v5634 = vunpack.c.l.b16 %v5579
  %v5635 = vunpack.c.h.b16 %v5579
  %v5636 = vunpack.c.l.b16 %v5580
  %v5637 = vunpack.c.h.b16 %v5580
  %v5638 = vunpack.c.l.b16 %v5581
  %v5639 = vunpack.c.h.b16 %v5581
  %v5640 = vunpack.c.l.b16 %v5582
  %v5641 = vunpack.c.h.b16 %v5582
  %v5642 = vunpack.c.l.b16 %v5583
  %v5643 = vunpack.c.h.b16 %v5583
  %v5644 = vunpack.c.l.b16 %v5584
  %v5645 = vunpack.c.h.b16 %v5584
  %v5646 = vunpack.c.l.b16 %v5585
  %v5647 = vunpack.c.h.b16 %v5585
  %v5648 = vunpack.c.l.b16 %v5586
  %v5649 = vunpack.c.h.b16 %v5586
  %v5650 = vunpack.c.l.b16 %v5587
  %v5651 = vunpack.c.h.b16 %v5587
  %v5652 = vunpack.c.l.b16 %v5588
  %v5653 = vunpack.c.h.b16 %v5588
  %v5654 = vunpack.c.l.b16 %v5589
  %v5655 = vunpack.c.h.b16 %v5589
  %v5656 = vunpack.c.l.b16 %v5590
  %v5657 = vunpack.c.h.b16 %v5590
  %v5658 = vunpack.c.l.b16 %v5591
  %v5659 = vunpack.c.h.b16 %v5591
  %v5660 = vunpack.c.l.b16 %v5592
  %v5661 = vunpack.c.h.b16 %v5592
  %v5662 = vunpack.c.l.b16 %v5593
  %v5663 = vunpack.c.h.b16 %v5593
  %v5664 = vunpack.c.l.b16 %v5594
  %v5665 = vunpack.c.h.b16 %v5594
  %v5666 = vunpack.c.l.b16 %v5595
  %v5667 = vunpack.c.h.b16 %v5595
  %v5668 = vpack.c.b16 %v5620, %v5620
  %v5669 = vpack.c.b16 %v5621, %v5621
  %v5670 = vpack.c.b16 %v5622, %v5622
  %v5671 = vpack.c.b16 %v5623, %v5623
  %v5672 = vpack.c.b16 %v5624, %v5624
  %v5673 = vpack.c.b16 %v5625, %v5625
  %v5674 = vpack.c.b16 %v5626, %v5626
  %v5675 = vpack.c.b16 %v5627, %v5627
  %v5676 = vpack.c.b16 %v5628, %v5628
  %v5677 = vpack.c.b16 %v5629, %v5629
  %v5678 = vpack.c.b16 %v5630, %v5630
  %v5679 = vpack.c.b16 %v5631, %v5631
  %v5680 = vpack.c.b16 %v5632, %v5632
  %v5681 = vpack.c.b16 %v5633, %v5633
  %v5682 = vpack.c.b16 %v5634, %v5634
  %v5683 = vpack.c.b16 %v5635, %v5635
  %v5684 = vpack.c.b16 %v5636, %v5636
  %v5685 = vpack.c.b16 %v5637, %v5637
  %v5686 = vpack.c.b16 %v5638, %v5638
  %v5687 = vpack.c.b16 %v5639, %v5639
  %v5688 = vpack.c.b16 %v5640, %v5640
  %v5689 = vpack.c.b16 %v5641, %v5641
  %v5690 = vpack.c.b16 %v5642, %v5642
  %v5691 = vpack.c.b16 %v5643, %v5643
  %v5692 = vpack.c.b16 %v5644, %v5644
  %v5693 = vpack.c.b16 %v5645, %v5645
  %v5694 = vpack.c.b16 %v5646, %v5646
  %v5695 = vpack.c.b16 %v5647, %v5647
  %v5696 = vpack.c.b16 %v5648, %v5648
  %v5697 = vpack.c.b16 %v5649, %v5649
  %v5698 = vpack.c.b16 %v5650, %v5650
  %v5699 = vpack.c.b16 %v5651, %v5651
  %v5700 = vpack.c.b16 %v5652, %v5652
  %v5701 = vpack.c.b16 %v5653, %v5653
  %v5702 = vpack.c.b16 %v5654, %v5654
  %v5703 = vpack.c.b16 %v5655, %v5655
  %v5704 = vpack.c.b16 %v5656, %v5656
  %v5705 = vpack.c.b16 %v5657, %v5657
  %v5706 = vpack.c.b16 %v5658, %v5658
  %v5707 = vpack.c.b16 %v5659, %v5659
  %v5708 = vpack.c.b16 %v5660, %v5660
  %v5709 = vpack.c.b16 %v5661, %v5661
  %v5710 = vpack.c.b16 %v5662, %v5662
  %v5711 = vpack.c.b16 %v5663, %v5663
  %v5712 = vpack.c.b16 %v5664, %v5664
  %v5713 = vpack.c.b16 %v5665, %v5665
  %v5714 = vpack.c.b16 %v5666, %v5666
  %v5715 = vpack.c.b16 %v5667, %v5667
  %5764 = vst [vmem:[%s13] sm:$0xf] %v5668
  %5765 = vst [vmem:[%s13 + $0x4] sm:$0xf] %v5669
  %5766 = vst [vmem:[%s13 + $0x8] sm:$0xf] %v5670
  %5767 = vst [vmem:[%s13 + $0xc] sm:$0xf] %v5671
  %5768 = vst [vmem:[%s13 + $0x10] sm:$0xf] %v5672
  %5769 = vst [vmem:[%s13 + $0x14] sm:$0xf] %v5673
  %5770 = vst [vmem:[%s13 + $0x18] sm:$0xf] %v5674
  %5771 = vst [vmem:[%s13 + $0x1c] sm:$0xf] %v5675
  %5772 = vst [vmem:[%s13 + $0x20] sm:$0xf] %v5676
  %5773 = vst [vmem:[%s13 + $0x24] sm:$0xf] %v5677
  %5774 = vst [vmem:[%s13 + $0x28] sm:$0xf] %v5678
  %5775 = vst [vmem:[%s13 + $0x2c] sm:$0xf] %v5679
  %5776 = vst [vmem:[%s13 + $0x30] sm:$0xf] %v5680
  %5777 = vst [vmem:[%s13 + $0x34] sm:$0xf] %v5681
  %5778 = vst [vmem:[%s13 + $0x38] sm:$0xf] %v5682
  %5779 = vst [vmem:[%s13 + $0x3c] sm:$0xf] %v5683
  %5780 = vst [vmem:[%s13 + $0x40] sm:$0xf] %v5684
  %5781 = vst [vmem:[%s13 + $0x44] sm:$0xf] %v5685
  %5782 = vst [vmem:[%s13 + $0x48] sm:$0xf] %v5686
  %5783 = vst [vmem:[%s13 + $0x4c] sm:$0xf] %v5687
  %5784 = vst [vmem:[%s13 + $0x50] sm:$0xf] %v5688
  %5785 = vst [vmem:[%s13 + $0x54] sm:$0xf] %v5689
  %5786 = vst [vmem:[%s13 + $0x58] sm:$0xf] %v5690
  %5787 = vst [vmem:[%s13 + $0x5c] sm:$0xf] %v5691
  %5788 = vst [vmem:[%s13 + $0x60] sm:$0xf] %v5692
  %5789 = vst [vmem:[%s13 + $0x64] sm:$0xf] %v5693
  %5790 = vst [vmem:[%s13 + $0x68] sm:$0xf] %v5694
  %5791 = vst [vmem:[%s13 + $0x6c] sm:$0xf] %v5695
  %5792 = vst [vmem:[%s13 + $0x70] sm:$0xf] %v5696
  %5793 = vst [vmem:[%s13 + $0x74] sm:$0xf] %v5697
  %5794 = vst [vmem:[%s13 + $0x78] sm:$0xf] %v5698
  %5795 = vst [vmem:[%s13 + $0x7c] sm:$0xf] %v5699
  %5796 = vst [vmem:[%s13 + $0x80] sm:$0xf] %v5700
  %5797 = vst [vmem:[%s13 + $0x84] sm:$0xf] %v5701
  %5798 = vst [vmem:[%s13 + $0x88] sm:$0xf] %v5702
  %5799 = vst [vmem:[%s13 + $0x8c] sm:$0xf] %v5703
  %5800 = vst [vmem:[%s13 + $0x90] sm:$0xf] %v5704
  %5801 = vst [vmem:[%s13 + $0x94] sm:$0xf] %v5705
  %5802 = vst [vmem:[%s13 + $0x98] sm:$0xf] %v5706
  %5803 = vst [vmem:[%s13 + $0x9c] sm:$0xf] %v5707
  %5804 = vst [vmem:[%s13 + $0xa0] sm:$0xf] %v5708
  %5805 = vst [vmem:[%s13 + $0xa4] sm:$0xf] %v5709
  %5806 = vst [vmem:[%s13 + $0xa8] sm:$0xf] %v5710
  %5807 = vst [vmem:[%s13 + $0xac] sm:$0xf] %v5711
  %5808 = vst [vmem:[%s13 + $0xb0] sm:$0xf] %v5712
  %5809 = vst [vmem:[%s13 + $0xb4] sm:$0xf] %v5713
  %5810 = vst [vmem:[%s13 + $0xb8] sm:$0xf] %v5714
  %5811 = vst [vmem:[%s13 + $0xbc] sm:$0xf] %v5715
  // Predicated region
  $region54: #{_encoder_net_forward_impl.1} parent=0 // pred_check
    _
  $region55: #{_encoder_net_forward_impl.1} parent=0 // pred_check_branch
    %5813 = sbr.rel (0) target = $region57
  $region56: #{_encoder_net_forward_impl.1} parent=0 // pred_region
    _
  $region57: #{_encoder_net_forward_impl.1} parent=0 // pred_fallthru
    _
  // Predicated region
  $region58: #{_encoder_net_forward_impl.1} parent=0 // pred_check
    _
  $region59: #{_encoder_net_forward_impl.1} parent=0 // pred_check_branch
    %5815 = sbr.rel (0) target = $region61
  $region60: #{_encoder_net_forward_impl.1} parent=0 // pred_region
    _
  $region61: #{_encoder_net_forward_impl.1} parent=0 // pred_fallthru
    _

</llo_original>
